<compile_context>
chip_gen: v7x
topology: tpu7x:2x2x1
jax: 0.10.0
libtpu: 0.0.40
codegen_flags: <defaults>
</compile_context>

<pallas_src>
import numpy as np
import jax
import jax.numpy as jnp
from jax import lax
from jax.experimental import pallas as pl
from jax.experimental.pallas import tpu as pltpu


# conv2 tap offsets inside the 7-wide flattened pooled map (row = i*7 + j)
_CONV2_OFFS = tuple(di * 7 + dj for di in range(3) for dj in range(3))
# the 25 valid conv2 output rows (i, j in 0..4) inside the 7-wide flattened map
_FC_ROWS = tuple(i * 7 + j for i in range(5) for j in range(5))

_POOLED_ROWS = 49          # 7 * 7
_PAD_ROWS = 72             # >= max(_CONV2_OFFS) + 49 = 65, rounded up to a multiple of 8


# ---------------------------- fused Pallas kernel ---------------------------

def _fused_cnn_kernel(p_ref, w1_ref, b1_ref, w2_ref, b2_ref, wfc_ref, bfc_ref,
                      o_ref, pooled_scr):
    """One grid step == one image.

    p_ref   : [1, 4, 49, 9]  conv1 im2col, grouped by 2x2 pool-window offset
    w1_ref  : [9, 10]        conv1 weight (tap-major)
    b1_ref  : [1, 10]
    w2_ref  : [9, 10, 10]    conv2 weight as (tap, cin, cout)
    b2_ref  : [1, 10]
    wfc_ref : [25, 10, 256]  fc weight with PyTorch flatten order folded in
    bfc_ref : [1, 256]
    o_ref   : [1, 1, 256]
    pooled_scr : VMEM [72, 10] scratch for the pooled 7x7x10 map (+ zero apron)
    """
    # ---------- conv1 (4 matmuls, one per pool offset) + maxpool + bias + relu ----------
    # relu(max(.)) == max(relu(.)) and the bias is shared, so pool first.
    m = jnp.dot(p_ref[0, 0], w1_ref[...], preferred_element_type=jnp.float32)
    for rc in range(1, 4):
        m = jnp.maximum(
            m, jnp.dot(p_ref[0, rc], w1_ref[...], preferred_element_type=jnp.float32))
    pooled = jnp.maximum(m + b1_ref[...], 0.0)                    # [49, 10]

    # Stash into a zero-padded scratch so every conv2 tap is a plain sublane slice.
    pooled_scr[...] = jnp.zeros((_PAD_ROWS, 10), jnp.float32)
    pooled_scr[0:_POOLED_ROWS, :] = pooled

    # ---------- conv2: 9 accumulated [49,10] @ [10,10] matmuls + bias + relu ----------
    acc = jnp.dot(pooled_scr[0:_POOLED_ROWS, :], w2_ref[0],
                  preferred_element_type=jnp.float32)
    for t in range(1, 9):
        off = _CONV2_OFFS[t]
        acc = acc + jnp.dot(pooled_scr[off:off + _POOLED_ROWS, :], w2_ref[t],
                            preferred_element_type=jnp.float32)
    a2 = jnp.maximum(acc + b2_ref[...], 0.0)                      # [49, 10]; rows with i>4/j>4 unused

    # ---------- fc(250 -> 256) + sigmoid ----------
    # The NCHW flatten permutation is baked into wfc_ref, so we just contract
    # the 25 valid spatial rows against their [10, 256] weight slabs.
    z = bfc_ref[...]                                              # [1, 256]
    for s25, row in enumerate(_FC_ROWS):
        z = z + jnp.dot(a2[row:row + 1, :], wfc_ref[s25],
                        preferred_element_type=jnp.float32)
    o_ref[0] = 1.0 / (1.0 + jnp.exp(-z))                          # sigmoid, lane-dense store


# ---------------------------- parameters ------------------------------------

def init_params(key):
    """PyTorch-layout parameters (OIHW conv weights, [out,in] fc weight)."""
    k1, k2, k3, k4, k5, k6 = jax.random.split(key, 6)

    def u(k, shape, fan_in):
        b = 1.0 / np.sqrt(fan_in)
        return jax.random.uniform(k, shape, jnp.float32, -b, b)

    return dict(
        w1=u(k1, (10, 1, 3, 3), 9),   b1=u(k2, (10,), 9),
        w2=u(k3, (10, 10, 3, 3), 90), b2=u(k4, (10,), 90),
        wfc=u(k5, (256, 250), 250),   bfc=u(k6, (256,), 250),
    )


def pack_params(params):
    """One-time re-layout of the weights into the kernel's format.

    Folds the PyTorch NCHW flatten order (feature = o*25 + i*5 + j) into the fc
    weight, so the kernel never needs a transpose/reshape of activations.
    """
    w1, b1 = params["w1"], params["b1"]
    w2, b2 = params["w2"], params["b2"]
    wfc, bfc = params["wfc"], params["bfc"]
    return dict(
        w1=w1.reshape(10, 9).T,                          # [9(tap), 10(out)]
        b1=b1.reshape(1, 10),
        w2=w2.reshape(10, 10, 9).transpose(2, 1, 0),     # [9(tap), 10(cin), 10(cout)]
        b2=b2.reshape(1, 10),
        wfc=wfc.reshape(256, 10, 25).transpose(2, 1, 0),  # [25(pos), 10(ch), 256]
        bfc=bfc.reshape(1, 256),
    )


# ---------------------------- forward pass -----------------------------------

def cnn_forward(x, pk):
    """x: [B, 1, 16, 16] float32 (NCHW).  pk: packed params.  Returns [B, 256]."""
    B = x.shape[0]
    xm = x[:, 0]                                                  # [B, 16, 16]

    # conv1 im2col grouped by pool-window offset (the only JAX-side glue):
    # P[b, r*2+c, i*7+j, di*3+dj] = x[b, 2i+r+di, 2j+c+dj]
    taps = jnp.stack([xm[:, di:di + 14, dj:dj + 14]
                      for di in range(3) for dj in range(3)], axis=-1)   # [B,14,14,9]
    P = (taps.reshape(B, 7, 2, 7, 2, 9)
             .transpose(0, 2, 4, 1, 3, 5)
             .reshape(B, 4, 49, 9))

    out = pl.pallas_call(
        _fused_cnn_kernel,
        out_shape=jax.ShapeDtypeStruct((B, 1, 256), jnp.float32),
        grid=(B,),
        in_specs=[
            pl.BlockSpec((1, 4, 49, 9), lambda b: (b, 0, 0, 0)),
            pl.BlockSpec((9, 10), lambda b: (0, 0)),
            pl.BlockSpec((1, 10), lambda b: (0, 0)),
            pl.BlockSpec((9, 10, 10), lambda b: (0, 0, 0)),
            pl.BlockSpec((1, 10), lambda b: (0, 0)),
            pl.BlockSpec((25, 10, 256), lambda b: (0, 0, 0)),
            pl.BlockSpec((1, 256), lambda b: (0, 0)),
        ],
        out_specs=pl.BlockSpec((1, 1, 256), lambda b: (b, 0, 0)),
        scratch_shapes=[pltpu.VMEM((_PAD_ROWS, 10), jnp.float32)],
        compiler_params=pltpu.CompilerParams(
            dimension_semantics=("arbitrary",)),   # single-TC; cross-core split not worth it here
    )(P, pk["w1"], pk["b1"], pk["w2"], pk["b2"], pk["wfc"], pk["bfc"])
    return out.reshape(B, 256)


# ---------------------------- pure-JAX reference ----------------------------

def reference_forward(x, params):
    w1, b1 = params["w1"], params["b1"]
    w2, b2 = params["w2"], params["b2"]
    wfc, bfc = params["wfc"], params["bfc"]
    dn = ("NCHW", "OIHW", "NCHW")
    y1 = lax.conv_general_dilated(x, w1, (1, 1), "VALID", dimension_numbers=dn)
    y1 = jnp.maximum(y1 + b1[None, :, None, None], 0.0)
    p1 = lax.reduce_window(y1, -jnp.inf, lax.max, (1, 1, 2, 2), (1, 1, 2, 2), "VALID")
    y2 = lax.conv_general_dilated(p1, w2, (1, 1), "VALID", dimension_numbers=dn)
    y2 = jnp.maximum(y2 + b2[None, :, None, None], 0.0)
    f = y2.reshape(x.shape[0], -1)
    z = f @ wfc.T + bfc
    return jax.nn.sigmoid(z)


if __name__ == "__main__":
    key = jax.random.PRNGKey(0)
    kx, kp = jax.random.split(key)
    B = 2
    x = jax.random.normal(kx, (B, 1, 16, 16), jnp.float32)
    params = init_params(kp)
    pk = pack_params(params)          # one-time weight re-layout (outside the jitted forward)

    out = jax.jit(cnn_forward)(x, pk)
    out = jax.block_until_ready(out)
    assert out.shape == (B, 256) and out.dtype == jnp.float32

    ref = reference_forward(x, params)
    assert jnp.allclose(out, ref, atol=2e-5, rtol=1e-5)
    print("KERNEL_OK")
</pallas_src>

<mosaic_0001>
module attributes {stable_mosaic.version = 11 : i64} {
  func.func @_fused_cnn_kernel(%arg0: i32, %arg1: memref<1x4x49x9xf32, #tpu.memory_space<vmem>>, %arg2: memref<9x10xf32, #tpu.memory_space<vmem>>, %arg3: memref<1x10xf32, #tpu.memory_space<vmem>>, %arg4: memref<9x10x10xf32, #tpu.memory_space<vmem>>, %arg5: memref<1x10xf32, #tpu.memory_space<vmem>>, %arg6: memref<25x10x256xf32, #tpu.memory_space<vmem>>, %arg7: memref<1x256xf32, #tpu.memory_space<vmem>>, %arg8: memref<1x1x256xf32, #tpu.memory_space<vmem>>, %arg9: memref<72x10xf32, #tpu.memory_space<vmem>>) attributes {dimension_semantics = [#tpu.dimension_semantics<arbitrary>], iteration_bounds = array<i64: 2>, scalar_prefetch = 0 : i64, scratch_operands = 1 : i64, tpu.core_type = #tpu.core_type<tc>, window_params = [{transform_indices = @transform_0, window_bounds = array<i64: 1, 4, 49, 9>}, {pipeline_mode = #tpu.pipeline_mode<synchronous>, transform_indices = @transform_1, window_bounds = array<i64: 9, 10>}, {pipeline_mode = #tpu.pipeline_mode<synchronous>, transform_indices = @transform_2, window_bounds = array<i64: 1, 10>}, {pipeline_mode = #tpu.pipeline_mode<synchronous>, transform_indices = @transform_3, window_bounds = array<i64: 9, 10, 10>}, {pipeline_mode = #tpu.pipeline_mode<synchronous>, transform_indices = @transform_4, window_bounds = array<i64: 1, 10>}, {pipeline_mode = #tpu.pipeline_mode<synchronous>, transform_indices = @transform_5, window_bounds = array<i64: 25, 10, 256>}, {pipeline_mode = #tpu.pipeline_mode<synchronous>, transform_indices = @transform_6, window_bounds = array<i64: 1, 256>}, {transform_indices = @transform_7, window_bounds = array<i64: 1, 1, 256>}]} {
    %c0 = arith.constant 0 : index
    %c0_0 = arith.constant 0 : index
    %c0_1 = arith.constant 0 : index
    %c0_2 = arith.constant 0 : index
    %0 = vector.load %arg1[%c0, %c0_0, %c0_1, %c0_2] : memref<1x4x49x9xf32, #tpu.memory_space<vmem>>, vector<1x1x49x9xf32>
    %1 = vector.shape_cast %0 : vector<1x1x49x9xf32> to vector<49x9xf32>
    %c0_3 = arith.constant 0 : index
    %c0_4 = arith.constant 0 : index
    %2 = vector.load %arg2[%c0_3, %c0_4] : memref<9x10xf32, #tpu.memory_space<vmem>>, vector<9x10xf32>
    %cst = arith.constant dense<0.000000e+00> : vector<49x10xf32>
    %3 = tpu.matmul %1, %2, %cst {dimension_numbers = #tpu.dot_dimension_numbers<[1], [0], [0], [1], [0, 0, 1, 1], [], []>} : vector<49x9xf32>, vector<9x10xf32>, vector<49x10xf32> -> vector<49x10xf32>
    %c0_5 = arith.constant 0 : index
    %c1 = arith.constant 1 : index
    %c0_6 = arith.constant 0 : index
    %c0_7 = arith.constant 0 : index
    %4 = vector.load %arg1[%c0_5, %c1, %c0_6, %c0_7] : memref<1x4x49x9xf32, #tpu.memory_space<vmem>>, vector<1x1x49x9xf32>
    %5 = vector.shape_cast %4 : vector<1x1x49x9xf32> to vector<49x9xf32>
    %c0_8 = arith.constant 0 : index
    %c0_9 = arith.constant 0 : index
    %6 = vector.load %arg2[%c0_8, %c0_9] : memref<9x10xf32, #tpu.memory_space<vmem>>, vector<9x10xf32>
    %cst_10 = arith.constant dense<0.000000e+00> : vector<49x10xf32>
    %7 = tpu.matmul %5, %6, %cst_10 {dimension_numbers = #tpu.dot_dimension_numbers<[1], [0], [0], [1], [0, 0, 1, 1], [], []>} : vector<49x9xf32>, vector<9x10xf32>, vector<49x10xf32> -> vector<49x10xf32>
    %8 = arith.maximumf %3, %7 : vector<49x10xf32>
    %c0_11 = arith.constant 0 : index
    %c2 = arith.constant 2 : index
    %c0_12 = arith.constant 0 : index
    %c0_13 = arith.constant 0 : index
    %9 = vector.load %arg1[%c0_11, %c2, %c0_12, %c0_13] : memref<1x4x49x9xf32, #tpu.memory_space<vmem>>, vector<1x1x49x9xf32>
    %10 = vector.shape_cast %9 : vector<1x1x49x9xf32> to vector<49x9xf32>
    %c0_14 = arith.constant 0 : index
    %c0_15 = arith.constant 0 : index
    %11 = vector.load %arg2[%c0_14, %c0_15] : memref<9x10xf32, #tpu.memory_space<vmem>>, vector<9x10xf32>
    %cst_16 = arith.constant dense<0.000000e+00> : vector<49x10xf32>
    %12 = tpu.matmul %10, %11, %cst_16 {dimension_numbers = #tpu.dot_dimension_numbers<[1], [0], [0], [1], [0, 0, 1, 1], [], []>} : vector<49x9xf32>, vector<9x10xf32>, vector<49x10xf32> -> vector<49x10xf32>
    %13 = arith.maximumf %8, %12 : vector<49x10xf32>
    %c0_17 = arith.constant 0 : index
    %c3 = arith.constant 3 : index
    %c0_18 = arith.constant 0 : index
    %c0_19 = arith.constant 0 : index
    %14 = vector.load %arg1[%c0_17, %c3, %c0_18, %c0_19] : memref<1x4x49x9xf32, #tpu.memory_space<vmem>>, vector<1x1x49x9xf32>
    %15 = vector.shape_cast %14 : vector<1x1x49x9xf32> to vector<49x9xf32>
    %c0_20 = arith.constant 0 : index
    %c0_21 = arith.constant 0 : index
    %16 = vector.load %arg2[%c0_20, %c0_21] : memref<9x10xf32, #tpu.memory_space<vmem>>, vector<9x10xf32>
    %cst_22 = arith.constant dense<0.000000e+00> : vector<49x10xf32>
    %17 = tpu.matmul %15, %16, %cst_22 {dimension_numbers = #tpu.dot_dimension_numbers<[1], [0], [0], [1], [0, 0, 1, 1], [], []>} : vector<49x9xf32>, vector<9x10xf32>, vector<49x10xf32> -> vector<49x10xf32>
    %18 = arith.maximumf %13, %17 : vector<49x10xf32>
    %c0_23 = arith.constant 0 : index
    %c0_24 = arith.constant 0 : index
    %19 = vector.load %arg3[%c0_23, %c0_24] : memref<1x10xf32, #tpu.memory_space<vmem>>, vector<1x10xf32>
    %20 = vector.broadcast %19 : vector<1x10xf32> to vector<49x10xf32>
    %21 = arith.addf %18, %20 : vector<49x10xf32>
    %cst_25 = arith.constant 0.000000e+00 : f32
    %22 = vector.broadcast %cst_25 : f32 to vector<49x10xf32>
    %23 = arith.maximumf %21, %22 : vector<49x10xf32>
    %cst_26 = arith.constant 0.000000e+00 : f32
    %24 = vector.broadcast %cst_26 : f32 to vector<72x10xf32>
    %c0_27 = arith.constant 0 : index
    %c0_28 = arith.constant 0 : index
    %25 = vector.load %arg9[%c0_27, %c0_28] : memref<72x10xf32, #tpu.memory_space<vmem>>, vector<72x10xf32>
    tpu.vector_store %arg9[%c0_27, %c0_28], %24 {strides = array<i32>} : memref<72x10xf32, #tpu.memory_space<vmem>>, vector<72x10xf32>,
    %c0_29 = arith.constant 0 : index
    %c0_30 = arith.constant 0 : index
    %26 = vector.load %arg9[%c0_29, %c0_30] : memref<72x10xf32, #tpu.memory_space<vmem>>, vector<49x10xf32>
    tpu.vector_store %arg9[%c0_29, %c0_30], %23 {strides = array<i32>} : memref<72x10xf32, #tpu.memory_space<vmem>>, vector<49x10xf32>,
    %c0_31 = arith.constant 0 : index
    %c0_32 = arith.constant 0 : index
    %27 = vector.load %arg9[%c0_31, %c0_32] : memref<72x10xf32, #tpu.memory_space<vmem>>, vector<49x10xf32>
    %c0_33 = arith.constant 0 : index
    %c0_34 = arith.constant 0 : index
    %c0_35 = arith.constant 0 : index
    %28 = vector.load %arg4[%c0_33, %c0_34, %c0_35] : memref<9x10x10xf32, #tpu.memory_space<vmem>>, vector<1x10x10xf32>
    %29 = vector.shape_cast %28 : vector<1x10x10xf32> to vector<10x10xf32>
    %cst_36 = arith.constant dense<0.000000e+00> : vector<49x10xf32>
    %30 = tpu.matmul %27, %29, %cst_36 {dimension_numbers = #tpu.dot_dimension_numbers<[1], [0], [0], [1], [0, 0, 1, 1], [], []>} : vector<49x10xf32>, vector<10x10xf32>, vector<49x10xf32> -> vector<49x10xf32>
    %c1_37 = arith.constant 1 : index
    %c0_38 = arith.constant 0 : index
    %31 = vector.load %arg9[%c1_37, %c0_38] : memref<72x10xf32, #tpu.memory_space<vmem>>, vector<49x10xf32>
    %c1_39 = arith.constant 1 : index
    %c0_40 = arith.constant 0 : index
    %c0_41 = arith.constant 0 : index
    %32 = vector.load %arg4[%c1_39, %c0_40, %c0_41] : memref<9x10x10xf32, #tpu.memory_space<vmem>>, vector<1x10x10xf32>
    %33 = vector.shape_cast %32 : vector<1x10x10xf32> to vector<10x10xf32>
    %cst_42 = arith.constant dense<0.000000e+00> : vector<49x10xf32>
    %34 = tpu.matmul %31, %33, %cst_42 {dimension_numbers = #tpu.dot_dimension_numbers<[1], [0], [0], [1], [0, 0, 1, 1], [], []>} : vector<49x10xf32>, vector<10x10xf32>, vector<49x10xf32> -> vector<49x10xf32>
    %35 = arith.addf %30, %34 : vector<49x10xf32>
    %c2_43 = arith.constant 2 : index
    %c0_44 = arith.constant 0 : index
    %36 = vector.load %arg9[%c2_43, %c0_44] : memref<72x10xf32, #tpu.memory_space<vmem>>, vector<49x10xf32>
    %c2_45 = arith.constant 2 : index
    %c0_46 = arith.constant 0 : index
    %c0_47 = arith.constant 0 : index
    %37 = vector.load %arg4[%c2_45, %c0_46, %c0_47] : memref<9x10x10xf32, #tpu.memory_space<vmem>>, vector<1x10x10xf32>
    %38 = vector.shape_cast %37 : vector<1x10x10xf32> to vector<10x10xf32>
    %cst_48 = arith.constant dense<0.000000e+00> : vector<49x10xf32>
    %39 = tpu.matmul %36, %38, %cst_48 {dimension_numbers = #tpu.dot_dimension_numbers<[1], [0], [0], [1], [0, 0, 1, 1], [], []>} : vector<49x10xf32>, vector<10x10xf32>, vector<49x10xf32> -> vector<49x10xf32>
    %40 = arith.addf %35, %39 : vector<49x10xf32>
    %c7 = arith.constant 7 : index
    %c0_49 = arith.constant 0 : index
    %41 = vector.load %arg9[%c7, %c0_49] : memref<72x10xf32, #tpu.memory_space<vmem>>, vector<49x10xf32>
    %c3_50 = arith.constant 3 : index
    %c0_51 = arith.constant 0 : index
    %c0_52 = arith.constant 0 : index
    %42 = vector.load %arg4[%c3_50, %c0_51, %c0_52] : memref<9x10x10xf32, #tpu.memory_space<vmem>>, vector<1x10x10xf32>
    %43 = vector.shape_cast %42 : vector<1x10x10xf32> to vector<10x10xf32>
    %cst_53 = arith.constant dense<0.000000e+00> : vector<49x10xf32>
    %44 = tpu.matmul %41, %43, %cst_53 {dimension_numbers = #tpu.dot_dimension_numbers<[1], [0], [0], [1], [0, 0, 1, 1], [], []>} : vector<49x10xf32>, vector<10x10xf32>, vector<49x10xf32> -> vector<49x10xf32>
    %45 = arith.addf %40, %44 : vector<49x10xf32>
    %c8 = arith.constant 8 : index
    %c0_54 = arith.constant 0 : index
    %46 = vector.load %arg9[%c8, %c0_54] : memref<72x10xf32, #tpu.memory_space<vmem>>, vector<49x10xf32>
    %c4 = arith.constant 4 : index
    %c0_55 = arith.constant 0 : index
    %c0_56 = arith.constant 0 : index
    %47 = vector.load %arg4[%c4, %c0_55, %c0_56] : memref<9x10x10xf32, #tpu.memory_space<vmem>>, vector<1x10x10xf32>
    %48 = vector.shape_cast %47 : vector<1x10x10xf32> to vector<10x10xf32>
    %cst_57 = arith.constant dense<0.000000e+00> : vector<49x10xf32>
    %49 = tpu.matmul %46, %48, %cst_57 {dimension_numbers = #tpu.dot_dimension_numbers<[1], [0], [0], [1], [0, 0, 1, 1], [], []>} : vector<49x10xf32>, vector<10x10xf32>, vector<49x10xf32> -> vector<49x10xf32>
    %50 = arith.addf %45, %49 : vector<49x10xf32>
    %c9 = arith.constant 9 : index
    %c0_58 = arith.constant 0 : index
    %51 = vector.load %arg9[%c9, %c0_58] : memref<72x10xf32, #tpu.memory_space<vmem>>, vector<49x10xf32>
    %c5 = arith.constant 5 : index
    %c0_59 = arith.constant 0 : index
    %c0_60 = arith.constant 0 : index
    %52 = vector.load %arg4[%c5, %c0_59, %c0_60] : memref<9x10x10xf32, #tpu.memory_space<vmem>>, vector<1x10x10xf32>
    %53 = vector.shape_cast %52 : vector<1x10x10xf32> to vector<10x10xf32>
    %cst_61 = arith.constant dense<0.000000e+00> : vector<49x10xf32>
    %54 = tpu.matmul %51, %53, %cst_61 {dimension_numbers = #tpu.dot_dimension_numbers<[1], [0], [0], [1], [0, 0, 1, 1], [], []>} : vector<49x10xf32>, vector<10x10xf32>, vector<49x10xf32> -> vector<49x10xf32>
    %55 = arith.addf %50, %54 : vector<49x10xf32>
    %c14 = arith.constant 14 : index
    %c0_62 = arith.constant 0 : index
    %56 = vector.load %arg9[%c14, %c0_62] : memref<72x10xf32, #tpu.memory_space<vmem>>, vector<49x10xf32>
    %c6 = arith.constant 6 : index
    %c0_63 = arith.constant 0 : index
    %c0_64 = arith.constant 0 : index
    %57 = vector.load %arg4[%c6, %c0_63, %c0_64] : memref<9x10x10xf32, #tpu.memory_space<vmem>>, vector<1x10x10xf32>
    %58 = vector.shape_cast %57 : vector<1x10x10xf32> to vector<10x10xf32>
    %cst_65 = arith.constant dense<0.000000e+00> : vector<49x10xf32>
    %59 = tpu.matmul %56, %58, %cst_65 {dimension_numbers = #tpu.dot_dimension_numbers<[1], [0], [0], [1], [0, 0, 1, 1], [], []>} : vector<49x10xf32>, vector<10x10xf32>, vector<49x10xf32> -> vector<49x10xf32>
    %60 = arith.addf %55, %59 : vector<49x10xf32>
    %c15 = arith.constant 15 : index
    %c0_66 = arith.constant 0 : index
    %61 = vector.load %arg9[%c15, %c0_66] : memref<72x10xf32, #tpu.memory_space<vmem>>, vector<49x10xf32>
    %c7_67 = arith.constant 7 : index
    %c0_68 = arith.constant 0 : index
    %c0_69 = arith.constant 0 : index
    %62 = vector.load %arg4[%c7_67, %c0_68, %c0_69] : memref<9x10x10xf32, #tpu.memory_space<vmem>>, vector<1x10x10xf32>
    %63 = vector.shape_cast %62 : vector<1x10x10xf32> to vector<10x10xf32>
    %cst_70 = arith.constant dense<0.000000e+00> : vector<49x10xf32>
    %64 = tpu.matmul %61, %63, %cst_70 {dimension_numbers = #tpu.dot_dimension_numbers<[1], [0], [0], [1], [0, 0, 1, 1], [], []>} : vector<49x10xf32>, vector<10x10xf32>, vector<49x10xf32> -> vector<49x10xf32>
    %65 = arith.addf %60, %64 : vector<49x10xf32>
    %c16 = arith.constant 16 : index
    %c0_71 = arith.constant 0 : index
    %66 = vector.load %arg9[%c16, %c0_71] : memref<72x10xf32, #tpu.memory_space<vmem>>, vector<49x10xf32>
    %c8_72 = arith.constant 8 : index
    %c0_73 = arith.constant 0 : index
    %c0_74 = arith.constant 0 : index
    %67 = vector.load %arg4[%c8_72, %c0_73, %c0_74] : memref<9x10x10xf32, #tpu.memory_space<vmem>>, vector<1x10x10xf32>
    %68 = vector.shape_cast %67 : vector<1x10x10xf32> to vector<10x10xf32>
    %cst_75 = arith.constant dense<0.000000e+00> : vector<49x10xf32>
    %69 = tpu.matmul %66, %68, %cst_75 {dimension_numbers = #tpu.dot_dimension_numbers<[1], [0], [0], [1], [0, 0, 1, 1], [], []>} : vector<49x10xf32>, vector<10x10xf32>, vector<49x10xf32> -> vector<49x10xf32>
    %70 = arith.addf %65, %69 : vector<49x10xf32>
    %c0_76 = arith.constant 0 : index
    %c0_77 = arith.constant 0 : index
    %71 = vector.load %arg5[%c0_76, %c0_77] : memref<1x10xf32, #tpu.memory_space<vmem>>, vector<1x10xf32>
    %72 = vector.broadcast %71 : vector<1x10xf32> to vector<49x10xf32>
    %73 = arith.addf %70, %72 : vector<49x10xf32>
    %cst_78 = arith.constant 0.000000e+00 : f32
    %74 = vector.broadcast %cst_78 : f32 to vector<49x10xf32>
    %75 = arith.maximumf %73, %74 : vector<49x10xf32>
    %c0_79 = arith.constant 0 : index
    %c0_80 = arith.constant 0 : index
    %76 = vector.load %arg7[%c0_79, %c0_80] : memref<1x256xf32, #tpu.memory_space<vmem>>, vector<1x256xf32>
    %77 = vector.extract_strided_slice %75 {offsets = [0, 0], sizes = [1, 10], strides = [1, 1]} : vector<49x10xf32> to vector<1x10xf32>
    %c0_81 = arith.constant 0 : index
    %c0_82 = arith.constant 0 : index
    %c0_83 = arith.constant 0 : index
    %78 = vector.load %arg6[%c0_81, %c0_82, %c0_83] : memref<25x10x256xf32, #tpu.memory_space<vmem>>, vector<1x10x256xf32>
    %79 = vector.shape_cast %78 : vector<1x10x256xf32> to vector<10x256xf32>
    %cst_84 = arith.constant dense<0.000000e+00> : vector<1x256xf32>
    %80 = tpu.matmul %77, %79, %cst_84 {dimension_numbers = #tpu.dot_dimension_numbers<[1], [0], [0], [1], [0, 0, 1, 1], [], []>} : vector<1x10xf32>, vector<10x256xf32>, vector<1x256xf32> -> vector<1x256xf32>
    %81 = arith.addf %76, %80 : vector<1x256xf32>
    %82 = vector.extract_strided_slice %75 {offsets = [1, 0], sizes = [1, 10], strides = [1, 1]} : vector<49x10xf32> to vector<1x10xf32>
    %c1_85 = arith.constant 1 : index
    %c0_86 = arith.constant 0 : index
    %c0_87 = arith.constant 0 : index
    %83 = vector.load %arg6[%c1_85, %c0_86, %c0_87] : memref<25x10x256xf32, #tpu.memory_space<vmem>>, vector<1x10x256xf32>
    %84 = vector.shape_cast %83 : vector<1x10x256xf32> to vector<10x256xf32>
    %cst_88 = arith.constant dense<0.000000e+00> : vector<1x256xf32>
    %85 = tpu.matmul %82, %84, %cst_88 {dimension_numbers = #tpu.dot_dimension_numbers<[1], [0], [0], [1], [0, 0, 1, 1], [], []>} : vector<1x10xf32>, vector<10x256xf32>, vector<1x256xf32> -> vector<1x256xf32>
    %86 = arith.addf %81, %85 : vector<1x256xf32>
    %87 = vector.extract_strided_slice %75 {offsets = [2, 0], sizes = [1, 10], strides = [1, 1]} : vector<49x10xf32> to vector<1x10xf32>
    %c2_89 = arith.constant 2 : index
    %c0_90 = arith.constant 0 : index
    %c0_91 = arith.constant 0 : index
    %88 = vector.load %arg6[%c2_89, %c0_90, %c0_91] : memref<25x10x256xf32, #tpu.memory_space<vmem>>, vector<1x10x256xf32>
    %89 = vector.shape_cast %88 : vector<1x10x256xf32> to vector<10x256xf32>
    %cst_92 = arith.constant dense<0.000000e+00> : vector<1x256xf32>
    %90 = tpu.matmul %87, %89, %cst_92 {dimension_numbers = #tpu.dot_dimension_numbers<[1], [0], [0], [1], [0, 0, 1, 1], [], []>} : vector<1x10xf32>, vector<10x256xf32>, vector<1x256xf32> -> vector<1x256xf32>
    %91 = arith.addf %86, %90 : vector<1x256xf32>
    %92 = vector.extract_strided_slice %75 {offsets = [3, 0], sizes = [1, 10], strides = [1, 1]} : vector<49x10xf32> to vector<1x10xf32>
    %c3_93 = arith.constant 3 : index
    %c0_94 = arith.constant 0 : index
    %c0_95 = arith.constant 0 : index
    %93 = vector.load %arg6[%c3_93, %c0_94, %c0_95] : memref<25x10x256xf32, #tpu.memory_space<vmem>>, vector<1x10x256xf32>
    %94 = vector.shape_cast %93 : vector<1x10x256xf32> to vector<10x256xf32>
    %cst_96 = arith.constant dense<0.000000e+00> : vector<1x256xf32>
    %95 = tpu.matmul %92, %94, %cst_96 {dimension_numbers = #tpu.dot_dimension_numbers<[1], [0], [0], [1], [0, 0, 1, 1], [], []>} : vector<1x10xf32>, vector<10x256xf32>, vector<1x256xf32> -> vector<1x256xf32>
    %96 = arith.addf %91, %95 : vector<1x256xf32>
    %97 = vector.extract_strided_slice %75 {offsets = [4, 0], sizes = [1, 10], strides = [1, 1]} : vector<49x10xf32> to vector<1x10xf32>
    %c4_97 = arith.constant 4 : index
    %c0_98 = arith.constant 0 : index
    %c0_99 = arith.constant 0 : index
    %98 = vector.load %arg6[%c4_97, %c0_98, %c0_99] : memref<25x10x256xf32, #tpu.memory_space<vmem>>, vector<1x10x256xf32>
    %99 = vector.shape_cast %98 : vector<1x10x256xf32> to vector<10x256xf32>
    %cst_100 = arith.constant dense<0.000000e+00> : vector<1x256xf32>
    %100 = tpu.matmul %97, %99, %cst_100 {dimension_numbers = #tpu.dot_dimension_numbers<[1], [0], [0], [1], [0, 0, 1, 1], [], []>} : vector<1x10xf32>, vector<10x256xf32>, vector<1x256xf32> -> vector<1x256xf32>
    %101 = arith.addf %96, %100 : vector<1x256xf32>
    %102 = vector.extract_strided_slice %75 {offsets = [7, 0], sizes = [1, 10], strides = [1, 1]} : vector<49x10xf32> to vector<1x10xf32>
    %c5_101 = arith.constant 5 : index
    %c0_102 = arith.constant 0 : index
    %c0_103 = arith.constant 0 : index
    %103 = vector.load %arg6[%c5_101, %c0_102, %c0_103] : memref<25x10x256xf32, #tpu.memory_space<vmem>>, vector<1x10x256xf32>
    %104 = vector.shape_cast %103 : vector<1x10x256xf32> to vector<10x256xf32>
    %cst_104 = arith.constant dense<0.000000e+00> : vector<1x256xf32>
    %105 = tpu.matmul %102, %104, %cst_104 {dimension_numbers = #tpu.dot_dimension_numbers<[1], [0], [0], [1], [0, 0, 1, 1], [], []>} : vector<1x10xf32>, vector<10x256xf32>, vector<1x256xf32> -> vector<1x256xf32>
    %106 = arith.addf %101, %105 : vector<1x256xf32>
    %107 = vector.extract_strided_slice %75 {offsets = [8, 0], sizes = [1, 10], strides = [1, 1]} : vector<49x10xf32> to vector<1x10xf32>
    %c6_105 = arith.constant 6 : index
    %c0_106 = arith.constant 0 : index
    %c0_107 = arith.constant 0 : index
    %108 = vector.load %arg6[%c6_105, %c0_106, %c0_107] : memref<25x10x256xf32, #tpu.memory_space<vmem>>, vector<1x10x256xf32>
    %109 = vector.shape_cast %108 : vector<1x10x256xf32> to vector<10x256xf32>
    %cst_108 = arith.constant dense<0.000000e+00> : vector<1x256xf32>
    %110 = tpu.matmul %107, %109, %cst_108 {dimension_numbers = #tpu.dot_dimension_numbers<[1], [0], [0], [1], [0, 0, 1, 1], [], []>} : vector<1x10xf32>, vector<10x256xf32>, vector<1x256xf32> -> vector<1x256xf32>
    %111 = arith.addf %106, %110 : vector<1x256xf32>
    %112 = vector.extract_strided_slice %75 {offsets = [9, 0], sizes = [1, 10], strides = [1, 1]} : vector<49x10xf32> to vector<1x10xf32>
    %c7_109 = arith.constant 7 : index
    %c0_110 = arith.constant 0 : index
    %c0_111 = arith.constant 0 : index
    %113 = vector.load %arg6[%c7_109, %c0_110, %c0_111] : memref<25x10x256xf32, #tpu.memory_space<vmem>>, vector<1x10x256xf32>
    %114 = vector.shape_cast %113 : vector<1x10x256xf32> to vector<10x256xf32>
    %cst_112 = arith.constant dense<0.000000e+00> : vector<1x256xf32>
    %115 = tpu.matmul %112, %114, %cst_112 {dimension_numbers = #tpu.dot_dimension_numbers<[1], [0], [0], [1], [0, 0, 1, 1], [], []>} : vector<1x10xf32>, vector<10x256xf32>, vector<1x256xf32> -> vector<1x256xf32>
    %116 = arith.addf %111, %115 : vector<1x256xf32>
    %117 = vector.extract_strided_slice %75 {offsets = [10, 0], sizes = [1, 10], strides = [1, 1]} : vector<49x10xf32> to vector<1x10xf32>
    %c8_113 = arith.constant 8 : index
    %c0_114 = arith.constant 0 : index
    %c0_115 = arith.constant 0 : index
    %118 = vector.load %arg6[%c8_113, %c0_114, %c0_115] : memref<25x10x256xf32, #tpu.memory_space<vmem>>, vector<1x10x256xf32>
    %119 = vector.shape_cast %118 : vector<1x10x256xf32> to vector<10x256xf32>
    %cst_116 = arith.constant dense<0.000000e+00> : vector<1x256xf32>
    %120 = tpu.matmul %117, %119, %cst_116 {dimension_numbers = #tpu.dot_dimension_numbers<[1], [0], [0], [1], [0, 0, 1, 1], [], []>} : vector<1x10xf32>, vector<10x256xf32>, vector<1x256xf32> -> vector<1x256xf32>
    %121 = arith.addf %116, %120 : vector<1x256xf32>
    %122 = vector.extract_strided_slice %75 {offsets = [11, 0], sizes = [1, 10], strides = [1, 1]} : vector<49x10xf32> to vector<1x10xf32>
    %c9_117 = arith.constant 9 : index
    %c0_118 = arith.constant 0 : index
    %c0_119 = arith.constant 0 : index
    %123 = vector.load %arg6[%c9_117, %c0_118, %c0_119] : memref<25x10x256xf32, #tpu.memory_space<vmem>>, vector<1x10x256xf32>
    %124 = vector.shape_cast %123 : vector<1x10x256xf32> to vector<10x256xf32>
    %cst_120 = arith.constant dense<0.000000e+00> : vector<1x256xf32>
    %125 = tpu.matmul %122, %124, %cst_120 {dimension_numbers = #tpu.dot_dimension_numbers<[1], [0], [0], [1], [0, 0, 1, 1], [], []>} : vector<1x10xf32>, vector<10x256xf32>, vector<1x256xf32> -> vector<1x256xf32>
    %126 = arith.addf %121, %125 : vector<1x256xf32>
    %127 = vector.extract_strided_slice %75 {offsets = [14, 0], sizes = [1, 10], strides = [1, 1]} : vector<49x10xf32> to vector<1x10xf32>
    %c10 = arith.constant 10 : index
    %c0_121 = arith.constant 0 : index
    %c0_122 = arith.constant 0 : index
    %128 = vector.load %arg6[%c10, %c0_121, %c0_122] : memref<25x10x256xf32, #tpu.memory_space<vmem>>, vector<1x10x256xf32>
    %129 = vector.shape_cast %128 : vector<1x10x256xf32> to vector<10x256xf32>
    %cst_123 = arith.constant dense<0.000000e+00> : vector<1x256xf32>
    %130 = tpu.matmul %127, %129, %cst_123 {dimension_numbers = #tpu.dot_dimension_numbers<[1], [0], [0], [1], [0, 0, 1, 1], [], []>} : vector<1x10xf32>, vector<10x256xf32>, vector<1x256xf32> -> vector<1x256xf32>
    %131 = arith.addf %126, %130 : vector<1x256xf32>
    %132 = vector.extract_strided_slice %75 {offsets = [15, 0], sizes = [1, 10], strides = [1, 1]} : vector<49x10xf32> to vector<1x10xf32>
    %c11 = arith.constant 11 : index
    %c0_124 = arith.constant 0 : index
    %c0_125 = arith.constant 0 : index
    %133 = vector.load %arg6[%c11, %c0_124, %c0_125] : memref<25x10x256xf32, #tpu.memory_space<vmem>>, vector<1x10x256xf32>
    %134 = vector.shape_cast %133 : vector<1x10x256xf32> to vector<10x256xf32>
    %cst_126 = arith.constant dense<0.000000e+00> : vector<1x256xf32>
    %135 = tpu.matmul %132, %134, %cst_126 {dimension_numbers = #tpu.dot_dimension_numbers<[1], [0], [0], [1], [0, 0, 1, 1], [], []>} : vector<1x10xf32>, vector<10x256xf32>, vector<1x256xf32> -> vector<1x256xf32>
    %136 = arith.addf %131, %135 : vector<1x256xf32>
    %137 = vector.extract_strided_slice %75 {offsets = [16, 0], sizes = [1, 10], strides = [1, 1]} : vector<49x10xf32> to vector<1x10xf32>
    %c12 = arith.constant 12 : index
    %c0_127 = arith.constant 0 : index
    %c0_128 = arith.constant 0 : index
    %138 = vector.load %arg6[%c12, %c0_127, %c0_128] : memref<25x10x256xf32, #tpu.memory_space<vmem>>, vector<1x10x256xf32>
    %139 = vector.shape_cast %138 : vector<1x10x256xf32> to vector<10x256xf32>
    %cst_129 = arith.constant dense<0.000000e+00> : vector<1x256xf32>
    %140 = tpu.matmul %137, %139, %cst_129 {dimension_numbers = #tpu.dot_dimension_numbers<[1], [0], [0], [1], [0, 0, 1, 1], [], []>} : vector<1x10xf32>, vector<10x256xf32>, vector<1x256xf32> -> vector<1x256xf32>
    %141 = arith.addf %136, %140 : vector<1x256xf32>
    %142 = vector.extract_strided_slice %75 {offsets = [17, 0], sizes = [1, 10], strides = [1, 1]} : vector<49x10xf32> to vector<1x10xf32>
    %c13 = arith.constant 13 : index
    %c0_130 = arith.constant 0 : index
    %c0_131 = arith.constant 0 : index
    %143 = vector.load %arg6[%c13, %c0_130, %c0_131] : memref<25x10x256xf32, #tpu.memory_space<vmem>>, vector<1x10x256xf32>
    %144 = vector.shape_cast %143 : vector<1x10x256xf32> to vector<10x256xf32>
    %cst_132 = arith.constant dense<0.000000e+00> : vector<1x256xf32>
    %145 = tpu.matmul %142, %144, %cst_132 {dimension_numbers = #tpu.dot_dimension_numbers<[1], [0], [0], [1], [0, 0, 1, 1], [], []>} : vector<1x10xf32>, vector<10x256xf32>, vector<1x256xf32> -> vector<1x256xf32>
    %146 = arith.addf %141, %145 : vector<1x256xf32>
    %147 = vector.extract_strided_slice %75 {offsets = [18, 0], sizes = [1, 10], strides = [1, 1]} : vector<49x10xf32> to vector<1x10xf32>
    %c14_133 = arith.constant 14 : index
    %c0_134 = arith.constant 0 : index
    %c0_135 = arith.constant 0 : index
    %148 = vector.load %arg6[%c14_133, %c0_134, %c0_135] : memref<25x10x256xf32, #tpu.memory_space<vmem>>, vector<1x10x256xf32>
    %149 = vector.shape_cast %148 : vector<1x10x256xf32> to vector<10x256xf32>
    %cst_136 = arith.constant dense<0.000000e+00> : vector<1x256xf32>
    %150 = tpu.matmul %147, %149, %cst_136 {dimension_numbers = #tpu.dot_dimension_numbers<[1], [0], [0], [1], [0, 0, 1, 1], [], []>} : vector<1x10xf32>, vector<10x256xf32>, vector<1x256xf32> -> vector<1x256xf32>
    %151 = arith.addf %146, %150 : vector<1x256xf32>
    %152 = vector.extract_strided_slice %75 {offsets = [21, 0], sizes = [1, 10], strides = [1, 1]} : vector<49x10xf32> to vector<1x10xf32>
    %c15_137 = arith.constant 15 : index
    %c0_138 = arith.constant 0 : index
    %c0_139 = arith.constant 0 : index
    %153 = vector.load %arg6[%c15_137, %c0_138, %c0_139] : memref<25x10x256xf32, #tpu.memory_space<vmem>>, vector<1x10x256xf32>
    %154 = vector.shape_cast %153 : vector<1x10x256xf32> to vector<10x256xf32>
    %cst_140 = arith.constant dense<0.000000e+00> : vector<1x256xf32>
    %155 = tpu.matmul %152, %154, %cst_140 {dimension_numbers = #tpu.dot_dimension_numbers<[1], [0], [0], [1], [0, 0, 1, 1], [], []>} : vector<1x10xf32>, vector<10x256xf32>, vector<1x256xf32> -> vector<1x256xf32>
    %156 = arith.addf %151, %155 : vector<1x256xf32>
    %157 = vector.extract_strided_slice %75 {offsets = [22, 0], sizes = [1, 10], strides = [1, 1]} : vector<49x10xf32> to vector<1x10xf32>
    %c16_141 = arith.constant 16 : index
    %c0_142 = arith.constant 0 : index
    %c0_143 = arith.constant 0 : index
    %158 = vector.load %arg6[%c16_141, %c0_142, %c0_143] : memref<25x10x256xf32, #tpu.memory_space<vmem>>, vector<1x10x256xf32>
    %159 = vector.shape_cast %158 : vector<1x10x256xf32> to vector<10x256xf32>
    %cst_144 = arith.constant dense<0.000000e+00> : vector<1x256xf32>
    %160 = tpu.matmul %157, %159, %cst_144 {dimension_numbers = #tpu.dot_dimension_numbers<[1], [0], [0], [1], [0, 0, 1, 1], [], []>} : vector<1x10xf32>, vector<10x256xf32>, vector<1x256xf32> -> vector<1x256xf32>
    %161 = arith.addf %156, %160 : vector<1x256xf32>
    %162 = vector.extract_strided_slice %75 {offsets = [23, 0], sizes = [1, 10], strides = [1, 1]} : vector<49x10xf32> to vector<1x10xf32>
    %c17 = arith.constant 17 : index
    %c0_145 = arith.constant 0 : index
    %c0_146 = arith.constant 0 : index
    %163 = vector.load %arg6[%c17, %c0_145, %c0_146] : memref<25x10x256xf32, #tpu.memory_space<vmem>>, vector<1x10x256xf32>
    %164 = vector.shape_cast %163 : vector<1x10x256xf32> to vector<10x256xf32>
    %cst_147 = arith.constant dense<0.000000e+00> : vector<1x256xf32>
    %165 = tpu.matmul %162, %164, %cst_147 {dimension_numbers = #tpu.dot_dimension_numbers<[1], [0], [0], [1], [0, 0, 1, 1], [], []>} : vector<1x10xf32>, vector<10x256xf32>, vector<1x256xf32> -> vector<1x256xf32>
    %166 = arith.addf %161, %165 : vector<1x256xf32>
    %167 = vector.extract_strided_slice %75 {offsets = [24, 0], sizes = [1, 10], strides = [1, 1]} : vector<49x10xf32> to vector<1x10xf32>
    %c18 = arith.constant 18 : index
    %c0_148 = arith.constant 0 : index
    %c0_149 = arith.constant 0 : index
    %168 = vector.load %arg6[%c18, %c0_148, %c0_149] : memref<25x10x256xf32, #tpu.memory_space<vmem>>, vector<1x10x256xf32>
    %169 = vector.shape_cast %168 : vector<1x10x256xf32> to vector<10x256xf32>
    %cst_150 = arith.constant dense<0.000000e+00> : vector<1x256xf32>
    %170 = tpu.matmul %167, %169, %cst_150 {dimension_numbers = #tpu.dot_dimension_numbers<[1], [0], [0], [1], [0, 0, 1, 1], [], []>} : vector<1x10xf32>, vector<10x256xf32>, vector<1x256xf32> -> vector<1x256xf32>
    %171 = arith.addf %166, %170 : vector<1x256xf32>
    %172 = vector.extract_strided_slice %75 {offsets = [25, 0], sizes = [1, 10], strides = [1, 1]} : vector<49x10xf32> to vector<1x10xf32>
    %c19 = arith.constant 19 : index
    %c0_151 = arith.constant 0 : index
    %c0_152 = arith.constant 0 : index
    %173 = vector.load %arg6[%c19, %c0_151, %c0_152] : memref<25x10x256xf32, #tpu.memory_space<vmem>>, vector<1x10x256xf32>
    %174 = vector.shape_cast %173 : vector<1x10x256xf32> to vector<10x256xf32>
    %cst_153 = arith.constant dense<0.000000e+00> : vector<1x256xf32>
    %175 = tpu.matmul %172, %174, %cst_153 {dimension_numbers = #tpu.dot_dimension_numbers<[1], [0], [0], [1], [0, 0, 1, 1], [], []>} : vector<1x10xf32>, vector<10x256xf32>, vector<1x256xf32> -> vector<1x256xf32>
    %176 = arith.addf %171, %175 : vector<1x256xf32>
    %177 = vector.extract_strided_slice %75 {offsets = [28, 0], sizes = [1, 10], strides = [1, 1]} : vector<49x10xf32> to vector<1x10xf32>
    %c20 = arith.constant 20 : index
    %c0_154 = arith.constant 0 : index
    %c0_155 = arith.constant 0 : index
    %178 = vector.load %arg6[%c20, %c0_154, %c0_155] : memref<25x10x256xf32, #tpu.memory_space<vmem>>, vector<1x10x256xf32>
    %179 = vector.shape_cast %178 : vector<1x10x256xf32> to vector<10x256xf32>
    %cst_156 = arith.constant dense<0.000000e+00> : vector<1x256xf32>
    %180 = tpu.matmul %177, %179, %cst_156 {dimension_numbers = #tpu.dot_dimension_numbers<[1], [0], [0], [1], [0, 0, 1, 1], [], []>} : vector<1x10xf32>, vector<10x256xf32>, vector<1x256xf32> -> vector<1x256xf32>
    %181 = arith.addf %176, %180 : vector<1x256xf32>
    %182 = vector.extract_strided_slice %75 {offsets = [29, 0], sizes = [1, 10], strides = [1, 1]} : vector<49x10xf32> to vector<1x10xf32>
    %c21 = arith.constant 21 : index
    %c0_157 = arith.constant 0 : index
    %c0_158 = arith.constant 0 : index
    %183 = vector.load %arg6[%c21, %c0_157, %c0_158] : memref<25x10x256xf32, #tpu.memory_space<vmem>>, vector<1x10x256xf32>
    %184 = vector.shape_cast %183 : vector<1x10x256xf32> to vector<10x256xf32>
    %cst_159 = arith.constant dense<0.000000e+00> : vector<1x256xf32>
    %185 = tpu.matmul %182, %184, %cst_159 {dimension_numbers = #tpu.dot_dimension_numbers<[1], [0], [0], [1], [0, 0, 1, 1], [], []>} : vector<1x10xf32>, vector<10x256xf32>, vector<1x256xf32> -> vector<1x256xf32>
    %186 = arith.addf %181, %185 : vector<1x256xf32>
    %187 = vector.extract_strided_slice %75 {offsets = [30, 0], sizes = [1, 10], strides = [1, 1]} : vector<49x10xf32> to vector<1x10xf32>
    %c22 = arith.constant 22 : index
    %c0_160 = arith.constant 0 : index
    %c0_161 = arith.constant 0 : index
    %188 = vector.load %arg6[%c22, %c0_160, %c0_161] : memref<25x10x256xf32, #tpu.memory_space<vmem>>, vector<1x10x256xf32>
    %189 = vector.shape_cast %188 : vector<1x10x256xf32> to vector<10x256xf32>
    %cst_162 = arith.constant dense<0.000000e+00> : vector<1x256xf32>
    %190 = tpu.matmul %187, %189, %cst_162 {dimension_numbers = #tpu.dot_dimension_numbers<[1], [0], [0], [1], [0, 0, 1, 1], [], []>} : vector<1x10xf32>, vector<10x256xf32>, vector<1x256xf32> -> vector<1x256xf32>
    %191 = arith.addf %186, %190 : vector<1x256xf32>
    %192 = vector.extract_strided_slice %75 {offsets = [31, 0], sizes = [1, 10], strides = [1, 1]} : vector<49x10xf32> to vector<1x10xf32>
    %c23 = arith.constant 23 : index
    %c0_163 = arith.constant 0 : index
    %c0_164 = arith.constant 0 : index
    %193 = vector.load %arg6[%c23, %c0_163, %c0_164] : memref<25x10x256xf32, #tpu.memory_space<vmem>>, vector<1x10x256xf32>
    %194 = vector.shape_cast %193 : vector<1x10x256xf32> to vector<10x256xf32>
    %cst_165 = arith.constant dense<0.000000e+00> : vector<1x256xf32>
    %195 = tpu.matmul %192, %194, %cst_165 {dimension_numbers = #tpu.dot_dimension_numbers<[1], [0], [0], [1], [0, 0, 1, 1], [], []>} : vector<1x10xf32>, vector<10x256xf32>, vector<1x256xf32> -> vector<1x256xf32>
    %196 = arith.addf %191, %195 : vector<1x256xf32>
    %197 = vector.extract_strided_slice %75 {offsets = [32, 0], sizes = [1, 10], strides = [1, 1]} : vector<49x10xf32> to vector<1x10xf32>
    %c24 = arith.constant 24 : index
    %c0_166 = arith.constant 0 : index
    %c0_167 = arith.constant 0 : index
    %198 = vector.load %arg6[%c24, %c0_166, %c0_167] : memref<25x10x256xf32, #tpu.memory_space<vmem>>, vector<1x10x256xf32>
    %199 = vector.shape_cast %198 : vector<1x10x256xf32> to vector<10x256xf32>
    %cst_168 = arith.constant dense<0.000000e+00> : vector<1x256xf32>
    %200 = tpu.matmul %197, %199, %cst_168 {dimension_numbers = #tpu.dot_dimension_numbers<[1], [0], [0], [1], [0, 0, 1, 1], [], []>} : vector<1x10xf32>, vector<10x256xf32>, vector<1x256xf32> -> vector<1x256xf32>
    %201 = arith.addf %196, %200 : vector<1x256xf32>
    %cst_169 = arith.constant 0.000000e+00 : f32
    %202 = vector.broadcast %cst_169 : f32 to vector<1x256xf32>
    %203 = arith.subf %202, %201 : vector<1x256xf32>
    %204 = math.exp %203 : vector<1x256xf32>
    %cst_170 = arith.constant 1.000000e+00 : f32
    %205 = vector.broadcast %cst_170 : f32 to vector<1x256xf32>
    %206 = arith.addf %205, %204 : vector<1x256xf32>
    %cst_171 = arith.constant 1.000000e+00 : f32
    %207 = vector.broadcast %cst_171 : f32 to vector<1x256xf32>
    %208 = arith.divf %207, %206 : vector<1x256xf32>
    %c0_172 = arith.constant 0 : index
    %c0_173 = arith.constant 0 : index
    %c0_174 = arith.constant 0 : index
    %209 = vector.load %arg8[%c0_172, %c0_173, %c0_174] : memref<1x1x256xf32, #tpu.memory_space<vmem>>, vector<1x1x256xf32>
    %210 = vector.shape_cast %209 : vector<1x1x256xf32> to vector<1x256xf32>
    %211 = vector.shape_cast %208 : vector<1x256xf32> to vector<1x1x256xf32>
    tpu.vector_store %arg8[%c0_172, %c0_173, %c0_174], %211 {strides = array<i32>} : memref<1x1x256xf32, #tpu.memory_space<vmem>>, vector<1x1x256xf32>,
    return
  }
  func.func @transform_0(%arg0: i32) -> (i32, i32, i32, i32) {
    %c0_i32 = arith.constant 0 : i32
    %c0_i32_0 = arith.constant 0 : i32
    %c0_i32_1 = arith.constant 0 : i32
    %c0_i32_2 = arith.constant 0 : i32
    return %arg0, %c0_i32, %c0_i32_0, %c0_i32_1 : i32, i32, i32, i32
  }
  func.func @transform_1(%arg0: i32) -> (i32, i32) {
    %c0_i32 = arith.constant 0 : i32
    %c0_i32_0 = arith.constant 0 : i32
    %c0_i32_1 = arith.constant 0 : i32
    return %c0_i32, %c0_i32_0 : i32, i32
  }
  func.func @transform_2(%arg0: i32) -> (i32, i32) {
    %c0_i32 = arith.constant 0 : i32
    %c0_i32_0 = arith.constant 0 : i32
    %c0_i32_1 = arith.constant 0 : i32
    return %c0_i32, %c0_i32_0 : i32, i32
  }
  func.func @transform_3(%arg0: i32) -> (i32, i32, i32) {
    %c0_i32 = arith.constant 0 : i32
    %c0_i32_0 = arith.constant 0 : i32
    %c0_i32_1 = arith.constant 0 : i32
    %c0_i32_2 = arith.constant 0 : i32
    return %c0_i32, %c0_i32_0, %c0_i32_1 : i32, i32, i32
  }
  func.func @transform_4(%arg0: i32) -> (i32, i32) {
    %c0_i32 = arith.constant 0 : i32
    %c0_i32_0 = arith.constant 0 : i32
    %c0_i32_1 = arith.constant 0 : i32
    return %c0_i32, %c0_i32_0 : i32, i32
  }
  func.func @transform_5(%arg0: i32) -> (i32, i32, i32) {
    %c0_i32 = arith.constant 0 : i32
    %c0_i32_0 = arith.constant 0 : i32
    %c0_i32_1 = arith.constant 0 : i32
    %c0_i32_2 = arith.constant 0 : i32
    return %c0_i32, %c0_i32_0, %c0_i32_1 : i32, i32, i32
  }
  func.func @transform_6(%arg0: i32) -> (i32, i32) {
    %c0_i32 = arith.constant 0 : i32
    %c0_i32_0 = arith.constant 0 : i32
    %c0_i32_1 = arith.constant 0 : i32
    return %c0_i32, %c0_i32_0 : i32, i32
  }
  func.func @transform_7(%arg0: i32) -> (i32, i32, i32) {
    %c0_i32 = arith.constant 0 : i32
    %c0_i32_0 = arith.constant 0 : i32
    %c0_i32_1 = arith.constant 0 : i32
    return %arg0, %c0_i32, %c0_i32_0 : i32, i32, i32
  }
}

</mosaic_0001>

<llo_original>
// kernel: cnn_forward.1
$region0: #{cnn_forward.1}
  #allocation0 [shape = 'u32[]', space=smem, size = 0x4, offset = 0x4, fixed_abs, tag = 'smem constant byte address 0x4 - core index']
  #allocation1 [shape = 'u32[144,128]{1,0:T(1,128)}', space=vmem, size = 0x12000, scoped, tag = 'internal scratch']
  #allocation2 [shape = 'f32[72,10]{1,0:T(8,128)}', space=vmem, size = 0x9000, scoped, tag = 'scratch operand']
  %s0 = inlined_call_operand.vmem [shape: f32[2,4,49,9], index: 0, kind: input, shape index: {}]
  %s1 = inlined_call_operand.vmem [shape: f32[9,10], index: 1, kind: input, shape index: {}]
  %s2 = inlined_call_operand.vmem [shape: f32[1,10], index: 2, kind: input, shape index: {}]
  %s3 = inlined_call_operand.vmem [shape: f32[9,10,10], index: 3, kind: input, shape index: {}]
  %s4 = inlined_call_operand.vmem [shape: f32[1,10], index: 4, kind: input, shape index: {}]
  %s5 = inlined_call_operand.vmem [shape: f32[25,10,256], index: 5, kind: input, shape index: {}]
  %s6 = inlined_call_operand.vmem [shape: f32[1,256], index: 6, kind: input, shape index: {}]
  %s7 = inlined_call_operand.vmem [shape: f32[2,1,256], index: 7, kind: output, shape index: {}]
  %s8 = sld [smem:[#allocation0]]
  $region61: #{cnn_forward.1} parent=0
    _
  %s10 = ssub.s32 1, %s8
  %s11 = scalar_select 0, %s10, %s8
  loop: start=0, step=1, limit=4
  $region2: #{cnn_forward.1} parent=0 // loop_pre_header
    _
  $region3: #{cnn_forward.1} parent=0 // loop_header
    %s13 = sphi 0, %s17
    %p14 = scmp.ge.s32.totalorder %s13, 4
    %s23 = sphi 0, %s25
    %s26 = sphi 0, %s23
    %s27 = sphi 0, %s26
    %s43 = sphi 0, %s27
    %s47 = sphi 0, %s47
    %s49 = sphi 0, %s47
    %s50 = sphi 0, %s49
    %s64 = sphi 0, %s50
    %s68 = sphi 0, %s68
    %s70 = sphi 0, %s68
    %s71 = sphi 0, %s70
    %s85 = sphi 0, %s71
    %s89 = sphi 0, %s89
    %s91 = sphi 0, %s89
    %s92 = sphi 0, %s91
    %s106 = sphi 0, %s92
    %s110 = sphi 0, %s110
    %s112 = sphi 0, %s110
    %s113 = sphi 0, %s112
    %s127 = sphi 0, %s113
    %s131 = sphi 0, %s131
    %s133 = sphi 0, %s131
    %s134 = sphi 0, %s133
    %s148 = sphi 0, %s134
    %s152 = sphi 0, %s152
    %s154 = sphi 0, %s152
    %s155 = sphi 0, %s154
    %s169 = sphi 0, %s155
    %s175 = sphi 0, %s177
    %s178 = sphi 0, %s175
    %s179 = sphi 0, %s178
    %s195 = sphi 0, %s179
  $region4: #{cnn_forward.1} parent=0 // loop_header_branch
    %16 = sbr.rel (%p14) target = $region8
  $region5: #{cnn_forward.1} parent=0 // loop_body
    %s18 = ssub.s32 %s13, 1
    %s19 = ssub.s32 %s13, 2
    %s20 = sadd.s32 %s13, 1
    %s21 = ssub.s32 %s13, %s20
    %p22 = scmp.eq.s32.totalorder %s21, 0
    %s24 = sadd.s32 %s23, 1
    %s25 = scalar_select %p22, %s23, %s24
    %p28 = pneg %p22
    %p29 = scmp.eq.s32.totalorder %s13, 1
    %p30 = por %p28, %p29
    %p31 = scmp.ne.s32.totalorder %s23, %s26
    %p32 = scmp.eq.s32.totalorder %s13, 0
    %p33 = por %p31, %p32
    %p34 = scmp.ne.s32.totalorder %s23, %s26
    %p35 = scmp.eq.s32.totalorder %s18, 1
    %p36 = por %p34, %p35
    %p37 = scmp.ne.s32.totalorder %s26, %s27
    %p38 = scmp.eq.s32.totalorder %s18, 0
    %p39 = por %p37, %p38
    %p40 = scmp.ne.s32.totalorder %s26, %s27
    %p41 = scmp.eq.s32.totalorder %s19, 1
    %p42 = por %p40, %p41
    %p44 = scmp.ne.s32.totalorder %s27, %s43
    %p45 = scmp.eq.s32.totalorder %s19, 0
    %p46 = por %p44, %p45
    %s48 = sadd.s32 %s47, 1
    %p51 = scmp.eq.s32.totalorder %s13, 1
    %p52 = scmp.ne.s32.totalorder %s47, %s49
    %p53 = scmp.eq.s32.totalorder %s13, 0
    %p54 = por %p52, %p53
    %p55 = scmp.ne.s32.totalorder %s47, %s49
    %p56 = scmp.eq.s32.totalorder %s18, 1
    %p57 = por %p55, %p56
    %p58 = scmp.ne.s32.totalorder %s49, %s50
    %p59 = scmp.eq.s32.totalorder %s18, 0
    %p60 = por %p58, %p59
    %p61 = scmp.ne.s32.totalorder %s49, %s50
    %p62 = scmp.eq.s32.totalorder %s19, 1
    %p63 = por %p61, %p62
    %p65 = scmp.ne.s32.totalorder %s50, %s64
    %p66 = scmp.eq.s32.totalorder %s19, 0
    %p67 = por %p65, %p66
    %s69 = sadd.s32 %s68, 1
    %p72 = scmp.eq.s32.totalorder %s13, 1
    %p73 = scmp.ne.s32.totalorder %s68, %s70
    %p74 = scmp.eq.s32.totalorder %s13, 0
    %p75 = por %p73, %p74
    %p76 = scmp.ne.s32.totalorder %s68, %s70
    %p77 = scmp.eq.s32.totalorder %s18, 1
    %p78 = por %p76, %p77
    %p79 = scmp.ne.s32.totalorder %s70, %s71
    %p80 = scmp.eq.s32.totalorder %s18, 0
    %p81 = por %p79, %p80
    %p82 = scmp.ne.s32.totalorder %s70, %s71
    %p83 = scmp.eq.s32.totalorder %s19, 1
    %p84 = por %p82, %p83
    %p86 = scmp.ne.s32.totalorder %s71, %s85
    %p87 = scmp.eq.s32.totalorder %s19, 0
    %p88 = por %p86, %p87
    %s90 = sadd.s32 %s89, 1
    %p93 = scmp.eq.s32.totalorder %s13, 1
    %p94 = scmp.ne.s32.totalorder %s89, %s91
    %p95 = scmp.eq.s32.totalorder %s13, 0
    %p96 = por %p94, %p95
    %p97 = scmp.ne.s32.totalorder %s89, %s91
    %p98 = scmp.eq.s32.totalorder %s18, 1
    %p99 = por %p97, %p98
    %p100 = scmp.ne.s32.totalorder %s91, %s92
    %p101 = scmp.eq.s32.totalorder %s18, 0
    %p102 = por %p100, %p101
    %p103 = scmp.ne.s32.totalorder %s91, %s92
    %p104 = scmp.eq.s32.totalorder %s19, 1
    %p105 = por %p103, %p104
    %p107 = scmp.ne.s32.totalorder %s92, %s106
    %p108 = scmp.eq.s32.totalorder %s19, 0
    %p109 = por %p107, %p108
    %s111 = sadd.s32 %s110, 1
    %p114 = scmp.eq.s32.totalorder %s13, 1
    %p115 = scmp.ne.s32.totalorder %s110, %s112
    %p116 = scmp.eq.s32.totalorder %s13, 0
    %p117 = por %p115, %p116
    %p118 = scmp.ne.s32.totalorder %s110, %s112
    %p119 = scmp.eq.s32.totalorder %s18, 1
    %p120 = por %p118, %p119
    %p121 = scmp.ne.s32.totalorder %s112, %s113
    %p122 = scmp.eq.s32.totalorder %s18, 0
    %p123 = por %p121, %p122
    %p124 = scmp.ne.s32.totalorder %s112, %s113
    %p125 = scmp.eq.s32.totalorder %s19, 1
    %p126 = por %p124, %p125
    %p128 = scmp.ne.s32.totalorder %s113, %s127
    %p129 = scmp.eq.s32.totalorder %s19, 0
    %p130 = por %p128, %p129
    %s132 = sadd.s32 %s131, 1
    %p135 = scmp.eq.s32.totalorder %s13, 1
    %p136 = scmp.ne.s32.totalorder %s131, %s133
    %p137 = scmp.eq.s32.totalorder %s13, 0
    %p138 = por %p136, %p137
    %p139 = scmp.ne.s32.totalorder %s131, %s133
    %p140 = scmp.eq.s32.totalorder %s18, 1
    %p141 = por %p139, %p140
    %p142 = scmp.ne.s32.totalorder %s133, %s134
    %p143 = scmp.eq.s32.totalorder %s18, 0
    %p144 = por %p142, %p143
    %p145 = scmp.ne.s32.totalorder %s133, %s134
    %p146 = scmp.eq.s32.totalorder %s19, 1
    %p147 = por %p145, %p146
    %p149 = scmp.ne.s32.totalorder %s134, %s148
    %p150 = scmp.eq.s32.totalorder %s19, 0
    %p151 = por %p149, %p150
    %s153 = sadd.s32 %s152, 1
    %p156 = scmp.eq.s32.totalorder %s13, 1
    %p157 = scmp.ne.s32.totalorder %s152, %s154
    %p158 = scmp.eq.s32.totalorder %s13, 0
    %p159 = por %p157, %p158
    %p160 = scmp.ne.s32.totalorder %s152, %s154
    %p161 = scmp.eq.s32.totalorder %s18, 1
    %p162 = por %p160, %p161
    %p163 = scmp.ne.s32.totalorder %s154, %s155
    %p164 = scmp.eq.s32.totalorder %s18, 0
    %p165 = por %p163, %p164
    %p166 = scmp.ne.s32.totalorder %s154, %s155
    %p167 = scmp.eq.s32.totalorder %s19, 1
    %p168 = por %p166, %p167
    %p170 = scmp.ne.s32.totalorder %s155, %s169
    %p171 = scmp.eq.s32.totalorder %s19, 0
    %p172 = por %p170, %p171
    %s173 = ssub.s32 %s13, %s20
    %p174 = scmp.eq.s32.totalorder %s173, 0
    %s176 = sadd.s32 %s175, 1
    %s177 = scalar_select %p174, %s175, %s176
    %p180 = pneg %p174
    %p181 = scmp.eq.s32.totalorder %s13, 1
    %p182 = por %p180, %p181
    %p183 = scmp.ne.s32.totalorder %s175, %s178
    %p184 = scmp.eq.s32.totalorder %s13, 0
    %p185 = por %p183, %p184
    %p186 = scmp.ne.s32.totalorder %s175, %s178
    %p187 = scmp.eq.s32.totalorder %s18, 1
    %p188 = por %p186, %p187
    %p189 = scmp.ne.s32.totalorder %s178, %s179
    %p190 = scmp.eq.s32.totalorder %s18, 0
    %p191 = por %p189, %p190
    %p192 = scmp.ne.s32.totalorder %s178, %s179
    %p193 = scmp.eq.s32.totalorder %s19, 1
    %p194 = por %p192, %p193
    %p196 = scmp.ne.s32.totalorder %s179, %s195
    %p197 = scmp.eq.s32.totalorder %s19, 0
    %p198 = por %p196, %p197
    %p199 = scmp.le.s32.totalorder 1, %s13
    %p200 = scmp.lt.s32.totalorder %s13, 3
    %p201 = pnand %p199, %p200
    %p202 = pneg %p201
    // Predicated region
    $region9: #{cnn_forward.1} parent=5 // pred_check
      _
    $region10: #{cnn_forward.1} parent=5 // pred_check_branch
      %204 = sbr.rel (%p201) target = $region12
    $region11: #{cnn_forward.1} parent=5 // pred_region
      %s205 = ssub.s32 %s13, 1
      // Predicated region
      $region13: #{cnn_forward.1} parent=11 // pred_check
        %p206 = pneg %p60
      $region14: #{cnn_forward.1} parent=11 // pred_check_branch
        %208 = sbr.rel (%p206) target = $region16
      $region15: #{cnn_forward.1} parent=11 // pred_region
        _
      $region16: #{cnn_forward.1} parent=11 // pred_fallthru
        _
      // Predicated region
      $region17: #{cnn_forward.1} parent=11 // pred_check
        %p209 = pneg %p81
      $region18: #{cnn_forward.1} parent=11 // pred_check_branch
        %211 = sbr.rel (%p209) target = $region20
      $region19: #{cnn_forward.1} parent=11 // pred_region
        _
      $region20: #{cnn_forward.1} parent=11 // pred_fallthru
        _
      // Predicated region
      $region21: #{cnn_forward.1} parent=11 // pred_check
        %p212 = pneg %p102
      $region22: #{cnn_forward.1} parent=11 // pred_check_branch
        %214 = sbr.rel (%p212) target = $region24
      $region23: #{cnn_forward.1} parent=11 // pred_region
        _
      $region24: #{cnn_forward.1} parent=11 // pred_fallthru
        _
      // Predicated region
      $region25: #{cnn_forward.1} parent=11 // pred_check
        %p215 = pneg %p123
      $region26: #{cnn_forward.1} parent=11 // pred_check_branch
        %217 = sbr.rel (%p215) target = $region28
      $region27: #{cnn_forward.1} parent=11 // pred_region
        _
      $region28: #{cnn_forward.1} parent=11 // pred_fallthru
        _
      // Predicated region
      $region29: #{cnn_forward.1} parent=11 // pred_check
        %p218 = pneg %p144
      $region30: #{cnn_forward.1} parent=11 // pred_check_branch
        %220 = sbr.rel (%p218) target = $region32
      $region31: #{cnn_forward.1} parent=11 // pred_region
        _
      $region32: #{cnn_forward.1} parent=11 // pred_fallthru
        _
      // Predicated region
      $region33: #{cnn_forward.1} parent=11 // pred_check
        %p221 = pneg %p165
      $region34: #{cnn_forward.1} parent=11 // pred_check_branch
        %223 = sbr.rel (%p221) target = $region36
      $region35: #{cnn_forward.1} parent=11 // pred_region
        _
      $region36: #{cnn_forward.1} parent=11 // pred_fallthru
        _
    $region12: #{cnn_forward.1} parent=5 // pred_fallthru
      _
    %p224 = scmp.lt.s32.totalorder %s13, 2
    // Predicated region
    $region37: #{cnn_forward.1} parent=5 // pred_check
      %p225 = pneg %p224
    $region38: #{cnn_forward.1} parent=5 // pred_check_branch
      %227 = sbr.rel (%p225) target = $region40
    $region39: #{cnn_forward.1} parent=5 // pred_region
      // Predicated region
      $region41: #{cnn_forward.1} parent=39 // pred_check
        %p228 = pneg %p33
      $region42: #{cnn_forward.1} parent=39 // pred_check_branch
        %230 = sbr.rel (%p228) target = $region44
      $region43: #{cnn_forward.1} parent=39 // pred_region
        %p231 = scmp.lt.s32.totalorder %s13, 1
        %s232 = scalar_select %p231, %s13, 1
        %s233 = smul.addr %s232, 28
        %s234 = smul.addr %s233, 8
        %s235 = scalar_lea.vmem %s0, %s234
      $region44: #{cnn_forward.1} parent=39 // pred_fallthru
        _
    $region40: #{cnn_forward.1} parent=5 // pred_fallthru
      _
    %p236 = scmp.le.s32.totalorder 1, %s13
    %p237 = scmp.lt.s32.totalorder %s13, 3
    %p238 = pnand %p236, %p237
    %p239 = pneg %p238
    // Predicated region
    $region45: #{cnn_forward.1} parent=5 // pred_check
      _
    $region46: #{cnn_forward.1} parent=5 // pred_check_branch
      %241 = sbr.rel (%p238) target = $region48
    $region47: #{cnn_forward.1} parent=5 // pred_region
      %s242 = ssub.s32 %s13, 1
      %p243 = scmp.lt.s32.totalorder %s18, 1
      %s244 = scalar_select %p243, %s18, 1
      %s245 = smul.addr %s244, 28
      %s246 = smul.addr %s245, 8
      %s247 = scalar_lea.vmem %s0, %s246
      %p248 = pneg %p39
      %p249 = pneg %p36
      %p250 = pneg %p60
      %p251 = pneg %p57
      %p252 = pneg %p81
      %p253 = pneg %p78
      %p254 = pneg %p102
      %p255 = pneg %p99
      %p256 = pneg %p123
      %p257 = pneg %p120
      %p258 = pneg %p144
      %p259 = pneg %p141
      %p260 = pneg %p165
      %p261 = pneg %p162
      %p262 = pneg %p191
      %p263 = pneg %p188
      %p264 = scmp.lt.s32.totalorder %s18, 1
      %s265 = scalar_select %p264, %s18, 1
      %s266 = smul.addr %s265, 2
      %s267 = scalar_lea.vmem %s7, %s266
      %p268 = scmp.lt.s32.totalorder %s18, 1
      %s269 = scalar_select %p268, %s18, 1
      %s270 = smul.addr %s269, 28
      %s271 = smul.addr %s270, 8
      %s272 = scalar_lea.vmem %s0, %s271
      %p273 = scmp.lt.s32.totalorder %s18, 1
      %s274 = scalar_select %p273, %s18, 1
      %s275 = smul.addr %s274, 2
      %s276 = scalar_lea.vmem %s7, %s275
      %v277 = vld [vmem:[%s272] sm:$0xff]
      %v278 = vld [vmem:[%s272 + $0x8] sm:$0xff]
      %v279 = vld [vmem:[%s272 + $0x10] sm:$0xff]
      %v280 = vld [vmem:[%s272 + $0x18] sm:$0xff]
      %v281 = vld [vmem:[%s272 + $0x20] sm:$0xff]
      %v282 = vld [vmem:[%s272 + $0x28] sm:$0xff]
      %v283 = vld [vmem:[%s272 + $0x30] sm:$0x1]
      %v284 = vld [vmem:[%s1] sm:$0xff]
      %v285 = vld [vmem:[%s1 + $0x8] sm:$0x1]
      %vm286 = vcmask 72704
      %v288 = vsel %vm286, %v277, 0
      %v291 = vsel %vm286, %v278, 0
      %v294 = vsel %vm286, %v279, 0
      %v297 = vsel %vm286, %v280, 0
      %v300 = vsel %vm286, %v281, 0
      %v303 = vsel %vm286, %v282, 0
      %v306 = vsel %vm286, %v283, 0
      %vm308 = vcmask 1040384
      %v310 = vsel %vm308, %v285, 0
      %312 = vmatprep.subr.mxu0 0.0
      %313 = vmatpush1.msra.mxu0 %v284
      %314 = vmatprep.subr.mxu0 0.0
      %315 = vmatpush1.msra.mxu0 %v310
      %316 = vmatprep.subr.mxu0 0.0
      %317 = vmatpush1.msra.mxu0 0.0
      %318 = vmatprep.subr.mxu0 0.0
      %319 = vmatpush1.msra.mxu0 0.0
      %320 = vmatprep.subr.mxu0 0.0
      %321 = vmatpush1.msra.mxu0 0.0
      %322 = vmatprep.subr.mxu0 0.0
      %323 = vmatpush1.msra.mxu0 0.0
      %324 = vmatprep.subr.mxu0 0.0
      %325 = vmatpush1.msra.mxu0 0.0
      %326 = vmatprep.subr.mxu0 0.0
      %327 = vmatpush1.msra.mxu0 0.0
      %328 = vmatprep.subr.mxu0 0.0
      %329 = vmatpush1.msra.mxu0 0.0
      %330 = vmatprep.subr.mxu0 0.0
      %331 = vmatpush1.msra.mxu0 0.0
      %332 = vmatprep.subr.mxu0 0.0
      %333 = vmatpush1.msra.mxu0 0.0
      %334 = vmatprep.subr.mxu0 0.0
      %335 = vmatpush1.msra.mxu0 0.0
      %336 = vmatprep.subr.mxu0 0.0
      %337 = vmatpush1.msra.mxu0 0.0
      %338 = vmatprep.subr.mxu0 0.0
      %339 = vmatpush1.msra.mxu0 0.0
      %340 = vmatprep.subr.mxu0 0.0
      %341 = vmatpush1.msra.mxu0 0.0
      %342 = vmatprep.subr.mxu0 0.0
      %343 = vmatpush1.msra.mxu0 0.0
      %344 = vmatprep.subr.mxu0 0.0
      %345 = vmatpush1.msra.mxu0 0.0
      %346 = vmatprep.subr.mxu0 0.0
      %347 = vmatpush1.msra.mxu0 0.0
      %348 = vmatprep.subr.mxu0 0.0
      %349 = vmatpush1.msra.mxu0 0.0
      %350 = vmatprep.subr.mxu0 0.0
      %351 = vmatpush1.msra.mxu0 0.0
      %352 = vmatprep.subr.mxu0 0.0
      %353 = vmatpush1.msra.mxu0 0.0
      %354 = vmatprep.subr.mxu0 0.0
      %355 = vmatpush1.msra.mxu0 0.0
      %356 = vmatprep.subr.mxu0 0.0
      %357 = vmatpush1.msra.mxu0 0.0
      %358 = vmatprep.subr.mxu0 0.0
      %359 = vmatpush1.msra.mxu0 0.0
      %360 = vmatprep.subr.mxu0 0.0
      %361 = vmatpush1.msra.mxu0 0.0
      %362 = vmatprep.subr.mxu0 0.0
      %363 = vmatpush1.msra.mxu0 0.0
      %364 = vmatprep.subr.mxu0 0.0
      %365 = vmatpush1.msra.mxu0 0.0
      %366 = vmatprep.subr.mxu0 0.0
      %367 = vmatpush1.msra.mxu0 0.0
      %368 = vmatprep.subr.mxu0 0.0
      %369 = vmatpush1.msra.mxu0 0.0
      %370 = vmatprep.subr.mxu0 0.0
      %371 = vmatpush1.msra.mxu0 0.0
      %372 = vmatprep.subr.mxu0 0.0
      %373 = vmatpush1.msra.mxu0 0.0
      %374 = vmatprep.subr.mxu0 0.0
      %375 = vmatpush1.msra.mxu0 0.0
      %376 = vmatprep.mubr.f32.mxu0 0.0
      %377 = vmatmul.mubr.f32.gmra.mrb[0].mxu0 %v288
      %v378 = vpop.f32.mrb[0].mxu0
      %v379 = vadd.f32 0.0, %v378
      %v380 = vpop.f32.mrb[0].mxu0
      %381 = vmatprep.mubr.f32.mxu0 0.0
      %382 = vmatmul.mubr.f32.gmra.mrb[0].mxu0 %v291
      %v383 = vpop.f32.mrb[0].mxu0
      %v384 = vadd.f32 0.0, %v383
      %v385 = vpop.f32.mrb[0].mxu0
      %386 = vmatprep.mubr.f32.mxu0 0.0
      %387 = vmatmul.mubr.f32.gmra.mrb[0].mxu0 %v294
      %v388 = vpop.f32.mrb[0].mxu0
      %v389 = vadd.f32 0.0, %v388
      %v390 = vpop.f32.mrb[0].mxu0
      %391 = vmatprep.mubr.f32.mxu0 0.0
      %392 = vmatmul.mubr.f32.gmra.mrb[0].mxu0 %v297
      %v393 = vpop.f32.mrb[0].mxu0
      %v394 = vadd.f32 0.0, %v393
      %v395 = vpop.f32.mrb[0].mxu0
      %396 = vmatprep.mubr.f32.mxu0 0.0
      %397 = vmatmul.mubr.f32.gmra.mrb[0].mxu0 %v300
      %v398 = vpop.f32.mrb[0].mxu0
      %v399 = vadd.f32 0.0, %v398
      %v400 = vpop.f32.mrb[0].mxu0
      %401 = vmatprep.mubr.f32.mxu0 0.0
      %402 = vmatmul.mubr.f32.gmra.mrb[0].mxu0 %v303
      %v403 = vpop.f32.mrb[0].mxu0
      %v404 = vadd.f32 0.0, %v403
      %v405 = vpop.f32.mrb[0].mxu0
      %406 = vmatprep.mubr.f32.mxu0 0.0
      %407 = vmatmul.mubr.f32.gmra.mrb[0].mxu0 %v306
      %v408 = vpop.f32.mrb[0].mxu0
      %v409 = vadd.f32 0.0, %v408
      %v410 = vpop.f32.mrb[0].mxu0
      %411 = vdwg.mxu0
      %s412 = scalar_lea.vmem %s272, 56
      %v413 = vld [vmem:[%s412] sm:$0xff]
      %v414 = vld [vmem:[%s412 + $0x8] sm:$0xff]
      %v415 = vld [vmem:[%s412 + $0x10] sm:$0xff]
      %v416 = vld [vmem:[%s412 + $0x18] sm:$0xff]
      %v417 = vld [vmem:[%s412 + $0x20] sm:$0xff]
      %v418 = vld [vmem:[%s412 + $0x28] sm:$0xff]
      %v419 = vld [vmem:[%s412 + $0x30] sm:$0x1]
      %v421 = vsel %vm286, %v413, 0
      %v424 = vsel %vm286, %v414, 0
      %v427 = vsel %vm286, %v415, 0
      %v430 = vsel %vm286, %v416, 0
      %v433 = vsel %vm286, %v417, 0
      %v436 = vsel %vm286, %v418, 0
      %v439 = vsel %vm286, %v419, 0
      %441 = vmatprep.subr.mxu0 0.0
      %442 = vmatpush1.msra.mxu0 %v284
      %443 = vmatprep.subr.mxu0 0.0
      %444 = vmatpush1.msra.mxu0 %v310
      %445 = vmatprep.subr.mxu0 0.0
      %446 = vmatpush1.msra.mxu0 0.0
      %447 = vmatprep.subr.mxu0 0.0
      %448 = vmatpush1.msra.mxu0 0.0
      %449 = vmatprep.subr.mxu0 0.0
      %450 = vmatpush1.msra.mxu0 0.0
      %451 = vmatprep.subr.mxu0 0.0
      %452 = vmatpush1.msra.mxu0 0.0
      %453 = vmatprep.subr.mxu0 0.0
      %454 = vmatpush1.msra.mxu0 0.0
      %455 = vmatprep.subr.mxu0 0.0
      %456 = vmatpush1.msra.mxu0 0.0
      %457 = vmatprep.subr.mxu0 0.0
      %458 = vmatpush1.msra.mxu0 0.0
      %459 = vmatprep.subr.mxu0 0.0
      %460 = vmatpush1.msra.mxu0 0.0
      %461 = vmatprep.subr.mxu0 0.0
      %462 = vmatpush1.msra.mxu0 0.0
      %463 = vmatprep.subr.mxu0 0.0
      %464 = vmatpush1.msra.mxu0 0.0
      %465 = vmatprep.subr.mxu0 0.0
      %466 = vmatpush1.msra.mxu0 0.0
      %467 = vmatprep.subr.mxu0 0.0
      %468 = vmatpush1.msra.mxu0 0.0
      %469 = vmatprep.subr.mxu0 0.0
      %470 = vmatpush1.msra.mxu0 0.0
      %471 = vmatprep.subr.mxu0 0.0
      %472 = vmatpush1.msra.mxu0 0.0
      %473 = vmatprep.subr.mxu0 0.0
      %474 = vmatpush1.msra.mxu0 0.0
      %475 = vmatprep.subr.mxu0 0.0
      %476 = vmatpush1.msra.mxu0 0.0
      %477 = vmatprep.subr.mxu0 0.0
      %478 = vmatpush1.msra.mxu0 0.0
      %479 = vmatprep.subr.mxu0 0.0
      %480 = vmatpush1.msra.mxu0 0.0
      %481 = vmatprep.subr.mxu0 0.0
      %482 = vmatpush1.msra.mxu0 0.0
      %483 = vmatprep.subr.mxu0 0.0
      %484 = vmatpush1.msra.mxu0 0.0
      %485 = vmatprep.subr.mxu0 0.0
      %486 = vmatpush1.msra.mxu0 0.0
      %487 = vmatprep.subr.mxu0 0.0
      %488 = vmatpush1.msra.mxu0 0.0
      %489 = vmatprep.subr.mxu0 0.0
      %490 = vmatpush1.msra.mxu0 0.0
      %491 = vmatprep.subr.mxu0 0.0
      %492 = vmatpush1.msra.mxu0 0.0
      %493 = vmatprep.subr.mxu0 0.0
      %494 = vmatpush1.msra.mxu0 0.0
      %495 = vmatprep.subr.mxu0 0.0
      %496 = vmatpush1.msra.mxu0 0.0
      %497 = vmatprep.subr.mxu0 0.0
      %498 = vmatpush1.msra.mxu0 0.0
      %499 = vmatprep.subr.mxu0 0.0
      %500 = vmatpush1.msra.mxu0 0.0
      %501 = vmatprep.subr.mxu0 0.0
      %502 = vmatpush1.msra.mxu0 0.0
      %503 = vmatprep.subr.mxu0 0.0
      %504 = vmatpush1.msra.mxu0 0.0
      %505 = vmatprep.mubr.f32.mxu0 0.0
      %506 = vmatmul.mubr.f32.gmra.mrb[0].mxu0 %v421
      %v507 = vpop.f32.mrb[0].mxu0
      %v508 = vadd.f32 0.0, %v507
      %v509 = vpop.f32.mrb[0].mxu0
      %510 = vmatprep.mubr.f32.mxu0 0.0
      %511 = vmatmul.mubr.f32.gmra.mrb[0].mxu0 %v424
      %v512 = vpop.f32.mrb[0].mxu0
      %v513 = vadd.f32 0.0, %v512
      %v514 = vpop.f32.mrb[0].mxu0
      %515 = vmatprep.mubr.f32.mxu0 0.0
      %516 = vmatmul.mubr.f32.gmra.mrb[0].mxu0 %v427
      %v517 = vpop.f32.mrb[0].mxu0
      %v518 = vadd.f32 0.0, %v517
      %v519 = vpop.f32.mrb[0].mxu0
      %520 = vmatprep.mubr.f32.mxu0 0.0
      %521 = vmatmul.mubr.f32.gmra.mrb[0].mxu0 %v430
      %v522 = vpop.f32.mrb[0].mxu0
      %v523 = vadd.f32 0.0, %v522
      %v524 = vpop.f32.mrb[0].mxu0
      %525 = vmatprep.mubr.f32.mxu0 0.0
      %526 = vmatmul.mubr.f32.gmra.mrb[0].mxu0 %v433
      %v527 = vpop.f32.mrb[0].mxu0
      %v528 = vadd.f32 0.0, %v527
      %v529 = vpop.f32.mrb[0].mxu0
      %530 = vmatprep.mubr.f32.mxu0 0.0
      %531 = vmatmul.mubr.f32.gmra.mrb[0].mxu0 %v436
      %v532 = vpop.f32.mrb[0].mxu0
      %v533 = vadd.f32 0.0, %v532
      %v534 = vpop.f32.mrb[0].mxu0
      %535 = vmatprep.mubr.f32.mxu0 0.0
      %536 = vmatmul.mubr.f32.gmra.mrb[0].mxu0 %v439
      %v537 = vpop.f32.mrb[0].mxu0
      %v538 = vadd.f32 0.0, %v537
      %v539 = vpop.f32.mrb[0].mxu0
      %540 = vdwg.mxu0
      %v541 = vmax.f32 %v379, %v508
      %v542 = vmax.f32 %v384, %v513
      %v543 = vmax.f32 %v389, %v518
      %v544 = vmax.f32 %v394, %v523
      %v545 = vmax.f32 %v399, %v528
      %v546 = vmax.f32 %v404, %v533
      %v547 = vmax.f32 %v409, %v538
      %s548 = scalar_lea.vmem %s272, 112
      %v549 = vld [vmem:[%s548] sm:$0xff]
      %v550 = vld [vmem:[%s548 + $0x8] sm:$0xff]
      %v551 = vld [vmem:[%s548 + $0x10] sm:$0xff]
      %v552 = vld [vmem:[%s548 + $0x18] sm:$0xff]
      %v553 = vld [vmem:[%s548 + $0x20] sm:$0xff]
      %v554 = vld [vmem:[%s548 + $0x28] sm:$0xff]
      %v555 = vld [vmem:[%s548 + $0x30] sm:$0x1]
      %v557 = vsel %vm286, %v549, 0
      %v560 = vsel %vm286, %v550, 0
      %v563 = vsel %vm286, %v551, 0
      %v566 = vsel %vm286, %v552, 0
      %v569 = vsel %vm286, %v553, 0
      %v572 = vsel %vm286, %v554, 0
      %v575 = vsel %vm286, %v555, 0
      %577 = vmatprep.subr.mxu0 0.0
      %578 = vmatpush1.msra.mxu0 %v284
      %579 = vmatprep.subr.mxu0 0.0
      %580 = vmatpush1.msra.mxu0 %v310
      %581 = vmatprep.subr.mxu0 0.0
      %582 = vmatpush1.msra.mxu0 0.0
      %583 = vmatprep.subr.mxu0 0.0
      %584 = vmatpush1.msra.mxu0 0.0
      %585 = vmatprep.subr.mxu0 0.0
      %586 = vmatpush1.msra.mxu0 0.0
      %587 = vmatprep.subr.mxu0 0.0
      %588 = vmatpush1.msra.mxu0 0.0
      %589 = vmatprep.subr.mxu0 0.0
      %590 = vmatpush1.msra.mxu0 0.0
      %591 = vmatprep.subr.mxu0 0.0
      %592 = vmatpush1.msra.mxu0 0.0
      %593 = vmatprep.subr.mxu0 0.0
      %594 = vmatpush1.msra.mxu0 0.0
      %595 = vmatprep.subr.mxu0 0.0
      %596 = vmatpush1.msra.mxu0 0.0
      %597 = vmatprep.subr.mxu0 0.0
      %598 = vmatpush1.msra.mxu0 0.0
      %599 = vmatprep.subr.mxu0 0.0
      %600 = vmatpush1.msra.mxu0 0.0
      %601 = vmatprep.subr.mxu0 0.0
      %602 = vmatpush1.msra.mxu0 0.0
      %603 = vmatprep.subr.mxu0 0.0
      %604 = vmatpush1.msra.mxu0 0.0
      %605 = vmatprep.subr.mxu0 0.0
      %606 = vmatpush1.msra.mxu0 0.0
      %607 = vmatprep.subr.mxu0 0.0
      %608 = vmatpush1.msra.mxu0 0.0
      %609 = vmatprep.subr.mxu0 0.0
      %610 = vmatpush1.msra.mxu0 0.0
      %611 = vmatprep.subr.mxu0 0.0
      %612 = vmatpush1.msra.mxu0 0.0
      %613 = vmatprep.subr.mxu0 0.0
      %614 = vmatpush1.msra.mxu0 0.0
      %615 = vmatprep.subr.mxu0 0.0
      %616 = vmatpush1.msra.mxu0 0.0
      %617 = vmatprep.subr.mxu0 0.0
      %618 = vmatpush1.msra.mxu0 0.0
      %619 = vmatprep.subr.mxu0 0.0
      %620 = vmatpush1.msra.mxu0 0.0
      %621 = vmatprep.subr.mxu0 0.0
      %622 = vmatpush1.msra.mxu0 0.0
      %623 = vmatprep.subr.mxu0 0.0
      %624 = vmatpush1.msra.mxu0 0.0
      %625 = vmatprep.subr.mxu0 0.0
      %626 = vmatpush1.msra.mxu0 0.0
      %627 = vmatprep.subr.mxu0 0.0
      %628 = vmatpush1.msra.mxu0 0.0
      %629 = vmatprep.subr.mxu0 0.0
      %630 = vmatpush1.msra.mxu0 0.0
      %631 = vmatprep.subr.mxu0 0.0
      %632 = vmatpush1.msra.mxu0 0.0
      %633 = vmatprep.subr.mxu0 0.0
      %634 = vmatpush1.msra.mxu0 0.0
      %635 = vmatprep.subr.mxu0 0.0
      %636 = vmatpush1.msra.mxu0 0.0
      %637 = vmatprep.subr.mxu0 0.0
      %638 = vmatpush1.msra.mxu0 0.0
      %639 = vmatprep.subr.mxu0 0.0
      %640 = vmatpush1.msra.mxu0 0.0
      %641 = vmatprep.mubr.f32.mxu0 0.0
      %642 = vmatmul.mubr.f32.gmra.mrb[0].mxu0 %v557
      %v643 = vpop.f32.mrb[0].mxu0
      %v644 = vadd.f32 0.0, %v643
      %v645 = vpop.f32.mrb[0].mxu0
      %646 = vmatprep.mubr.f32.mxu0 0.0
      %647 = vmatmul.mubr.f32.gmra.mrb[0].mxu0 %v560
      %v648 = vpop.f32.mrb[0].mxu0
      %v649 = vadd.f32 0.0, %v648
      %v650 = vpop.f32.mrb[0].mxu0
      %651 = vmatprep.mubr.f32.mxu0 0.0
      %652 = vmatmul.mubr.f32.gmra.mrb[0].mxu0 %v563
      %v653 = vpop.f32.mrb[0].mxu0
      %v654 = vadd.f32 0.0, %v653
      %v655 = vpop.f32.mrb[0].mxu0
      %656 = vmatprep.mubr.f32.mxu0 0.0
      %657 = vmatmul.mubr.f32.gmra.mrb[0].mxu0 %v566
      %v658 = vpop.f32.mrb[0].mxu0
      %v659 = vadd.f32 0.0, %v658
      %v660 = vpop.f32.mrb[0].mxu0
      %661 = vmatprep.mubr.f32.mxu0 0.0
      %662 = vmatmul.mubr.f32.gmra.mrb[0].mxu0 %v569
      %v663 = vpop.f32.mrb[0].mxu0
      %v664 = vadd.f32 0.0, %v663
      %v665 = vpop.f32.mrb[0].mxu0
      %666 = vmatprep.mubr.f32.mxu0 0.0
      %667 = vmatmul.mubr.f32.gmra.mrb[0].mxu0 %v572
      %v668 = vpop.f32.mrb[0].mxu0
      %v669 = vadd.f32 0.0, %v668
      %v670 = vpop.f32.mrb[0].mxu0
      %671 = vmatprep.mubr.f32.mxu0 0.0
      %672 = vmatmul.mubr.f32.gmra.mrb[0].mxu0 %v575
      %v673 = vpop.f32.mrb[0].mxu0
      %v674 = vadd.f32 0.0, %v673
      %v675 = vpop.f32.mrb[0].mxu0
      %676 = vdwg.mxu0
      %v677 = vmax.f32 %v541, %v644
      %v678 = vmax.f32 %v542, %v649
      %v679 = vmax.f32 %v543, %v654
      %v680 = vmax.f32 %v544, %v659
      %v681 = vmax.f32 %v545, %v664
      %v682 = vmax.f32 %v546, %v669
      %v683 = vmax.f32 %v547, %v674
      %s684 = scalar_lea.vmem %s272, 168
      %v685 = vld [vmem:[%s684] sm:$0xff]
      %v686 = vld [vmem:[%s684 + $0x8] sm:$0xff]
      %v687 = vld [vmem:[%s684 + $0x10] sm:$0xff]
      %v688 = vld [vmem:[%s684 + $0x18] sm:$0xff]
      %v689 = vld [vmem:[%s684 + $0x20] sm:$0xff]
      %v690 = vld [vmem:[%s684 + $0x28] sm:$0xff]
      %v691 = vld [vmem:[%s684 + $0x30] sm:$0x1]
      %v693 = vsel %vm286, %v685, 0
      %v696 = vsel %vm286, %v686, 0
      %v699 = vsel %vm286, %v687, 0
      %v702 = vsel %vm286, %v688, 0
      %v705 = vsel %vm286, %v689, 0
      %v708 = vsel %vm286, %v690, 0
      %v711 = vsel %vm286, %v691, 0
      %713 = vmatprep.subr.mxu0 0.0
      %714 = vmatpush1.msra.mxu0 %v284
      %715 = vmatprep.subr.mxu0 0.0
      %716 = vmatpush1.msra.mxu0 %v310
      %717 = vmatprep.subr.mxu0 0.0
      %718 = vmatpush1.msra.mxu0 0.0
      %719 = vmatprep.subr.mxu0 0.0
      %720 = vmatpush1.msra.mxu0 0.0
      %721 = vmatprep.subr.mxu0 0.0
      %722 = vmatpush1.msra.mxu0 0.0
      %723 = vmatprep.subr.mxu0 0.0
      %724 = vmatpush1.msra.mxu0 0.0
      %725 = vmatprep.subr.mxu0 0.0
      %726 = vmatpush1.msra.mxu0 0.0
      %727 = vmatprep.subr.mxu0 0.0
      %728 = vmatpush1.msra.mxu0 0.0
      %729 = vmatprep.subr.mxu0 0.0
      %730 = vmatpush1.msra.mxu0 0.0
      %731 = vmatprep.subr.mxu0 0.0
      %732 = vmatpush1.msra.mxu0 0.0
      %733 = vmatprep.subr.mxu0 0.0
      %734 = vmatpush1.msra.mxu0 0.0
      %735 = vmatprep.subr.mxu0 0.0
      %736 = vmatpush1.msra.mxu0 0.0
      %737 = vmatprep.subr.mxu0 0.0
      %738 = vmatpush1.msra.mxu0 0.0
      %739 = vmatprep.subr.mxu0 0.0
      %740 = vmatpush1.msra.mxu0 0.0
      %741 = vmatprep.subr.mxu0 0.0
      %742 = vmatpush1.msra.mxu0 0.0
      %743 = vmatprep.subr.mxu0 0.0
      %744 = vmatpush1.msra.mxu0 0.0
      %745 = vmatprep.subr.mxu0 0.0
      %746 = vmatpush1.msra.mxu0 0.0
      %747 = vmatprep.subr.mxu0 0.0
      %748 = vmatpush1.msra.mxu0 0.0
      %749 = vmatprep.subr.mxu0 0.0
      %750 = vmatpush1.msra.mxu0 0.0
      %751 = vmatprep.subr.mxu0 0.0
      %752 = vmatpush1.msra.mxu0 0.0
      %753 = vmatprep.subr.mxu0 0.0
      %754 = vmatpush1.msra.mxu0 0.0
      %755 = vmatprep.subr.mxu0 0.0
      %756 = vmatpush1.msra.mxu0 0.0
      %757 = vmatprep.subr.mxu0 0.0
      %758 = vmatpush1.msra.mxu0 0.0
      %759 = vmatprep.subr.mxu0 0.0
      %760 = vmatpush1.msra.mxu0 0.0
      %761 = vmatprep.subr.mxu0 0.0
      %762 = vmatpush1.msra.mxu0 0.0
      %763 = vmatprep.subr.mxu0 0.0
      %764 = vmatpush1.msra.mxu0 0.0
      %765 = vmatprep.subr.mxu0 0.0
      %766 = vmatpush1.msra.mxu0 0.0
      %767 = vmatprep.subr.mxu0 0.0
      %768 = vmatpush1.msra.mxu0 0.0
      %769 = vmatprep.subr.mxu0 0.0
      %770 = vmatpush1.msra.mxu0 0.0
      %771 = vmatprep.subr.mxu0 0.0
      %772 = vmatpush1.msra.mxu0 0.0
      %773 = vmatprep.subr.mxu0 0.0
      %774 = vmatpush1.msra.mxu0 0.0
      %775 = vmatprep.subr.mxu0 0.0
      %776 = vmatpush1.msra.mxu0 0.0
      %777 = vmatprep.mubr.f32.mxu0 0.0
      %778 = vmatmul.mubr.f32.gmra.mrb[0].mxu0 %v693
      %v779 = vpop.f32.mrb[0].mxu0
      %v780 = vadd.f32 0.0, %v779
      %v781 = vpop.f32.mrb[0].mxu0
      %782 = vmatprep.mubr.f32.mxu0 0.0
      %783 = vmatmul.mubr.f32.gmra.mrb[0].mxu0 %v696
      %v784 = vpop.f32.mrb[0].mxu0
      %v785 = vadd.f32 0.0, %v784
      %v786 = vpop.f32.mrb[0].mxu0
      %787 = vmatprep.mubr.f32.mxu0 0.0
      %788 = vmatmul.mubr.f32.gmra.mrb[0].mxu0 %v699
      %v789 = vpop.f32.mrb[0].mxu0
      %v790 = vadd.f32 0.0, %v789
      %v791 = vpop.f32.mrb[0].mxu0
      %792 = vmatprep.mubr.f32.mxu0 0.0
      %793 = vmatmul.mubr.f32.gmra.mrb[0].mxu0 %v702
      %v794 = vpop.f32.mrb[0].mxu0
      %v795 = vadd.f32 0.0, %v794
      %v796 = vpop.f32.mrb[0].mxu0
      %797 = vmatprep.mubr.f32.mxu0 0.0
      %798 = vmatmul.mubr.f32.gmra.mrb[0].mxu0 %v705
      %v799 = vpop.f32.mrb[0].mxu0
      %v800 = vadd.f32 0.0, %v799
      %v801 = vpop.f32.mrb[0].mxu0
      %802 = vmatprep.mubr.f32.mxu0 0.0
      %803 = vmatmul.mubr.f32.gmra.mrb[0].mxu0 %v708
      %v804 = vpop.f32.mrb[0].mxu0
      %v805 = vadd.f32 0.0, %v804
      %v806 = vpop.f32.mrb[0].mxu0
      %807 = vmatprep.mubr.f32.mxu0 0.0
      %808 = vmatmul.mubr.f32.gmra.mrb[0].mxu0 %v711
      %v809 = vpop.f32.mrb[0].mxu0
      %v810 = vadd.f32 0.0, %v809
      %v811 = vpop.f32.mrb[0].mxu0
      %812 = vdwg.mxu0
      %v813 = vmax.f32 %v677, %v780
      %v814 = vmax.f32 %v678, %v785
      %v815 = vmax.f32 %v679, %v790
      %v816 = vmax.f32 %v680, %v795
      %v817 = vmax.f32 %v681, %v800
      %v818 = vmax.f32 %v682, %v805
      %v819 = vmax.f32 %v683, %v810
      %v820 = vld [vmem:[%s2] sm:$0x1]
      %v822 = vlaneseq
      %v823 = vshrl.u32 %v822, 7
      %v824 = vsub.s32 0, %v823
      %v825 = vrot.slane %v820, %v824
      %v827 = vadd.f32 %v813, %v825
      %v828 = vadd.f32 %v814, %v825
      %v829 = vadd.f32 %v815, %v825
      %v830 = vadd.f32 %v816, %v825
      %v831 = vadd.f32 %v817, %v825
      %v832 = vadd.f32 %v818, %v825
      %v833 = vadd.f32 %v819, %v825
      %v834 = vmax.f32 %v827, 0.0
      %v835 = vmax.f32 %v828, 0.0
      %v836 = vmax.f32 %v829, 0.0
      %v837 = vmax.f32 %v830, 0.0
      %v838 = vmax.f32 %v831, 0.0
      %v839 = vmax.f32 %v832, 0.0
      %v840 = vmax.f32 %v833, 0.0
      %vm841 = vcmask 80896
      %842 = vst.msk [vmem:[#allocation2] sm:$0xff] %vm841, 0.0
      %843 = vst.msk [vmem:[#allocation2 + $0x8] sm:$0xff] %vm841, 0.0
      %844 = vst.msk [vmem:[#allocation2 + $0x10] sm:$0xff] %vm841, 0.0
      %845 = vst.msk [vmem:[#allocation2 + $0x18] sm:$0xff] %vm841, 0.0
      %846 = vst.msk [vmem:[#allocation2 + $0x20] sm:$0xff] %vm841, 0.0
      %847 = vst.msk [vmem:[#allocation2 + $0x28] sm:$0xff] %vm841, 0.0
      %848 = vst.msk [vmem:[#allocation2 + $0x30] sm:$0xff] %vm841, 0.0
      %849 = vst.msk [vmem:[#allocation2 + $0x38] sm:$0xff] %vm841, 0.0
      %850 = vst.msk [vmem:[#allocation2 + $0x40] sm:$0xff] %vm841, 0.0
      %851 = vst.msk [vmem:[#allocation2] sm:$0xff] %vm841, %v834
      %852 = vst.msk [vmem:[#allocation2 + $0x8] sm:$0xff] %vm841, %v835
      %853 = vst.msk [vmem:[#allocation2 + $0x10] sm:$0xff] %vm841, %v836
      %854 = vst.msk [vmem:[#allocation2 + $0x18] sm:$0xff] %vm841, %v837
      %855 = vst.msk [vmem:[#allocation2 + $0x20] sm:$0xff] %vm841, %v838
      %856 = vst.msk [vmem:[#allocation2 + $0x28] sm:$0xff] %vm841, %v839
      %vm857 = vcmask 73728
      %858 = vst.msk [vmem:[#allocation2 + $0x30] sm:$0x1] %vm857, %v840
      %v859 = vld [vmem:[#allocation2] sm:$0xff]
      %v860 = vld [vmem:[#allocation2 + $0x8] sm:$0xff]
      %v861 = vld [vmem:[#allocation2 + $0x10] sm:$0xff]
      %v862 = vld [vmem:[#allocation2 + $0x18] sm:$0xff]
      %v863 = vld [vmem:[#allocation2 + $0x20] sm:$0xff]
      %v864 = vld [vmem:[#allocation2 + $0x28] sm:$0xff]
      %v865 = vld [vmem:[#allocation2 + $0x30] sm:$0x1]
      %v866 = vld [vmem:[%s3] sm:$0xff]
      %v867 = vld [vmem:[%s3 + $0x8] sm:$0x3]
      %v868 = vld [vmem:[#allocation2 + $0x1] sm:$0xff]
      %v869 = vld [vmem:[#allocation2 + $0x9] sm:$0xff]
      %v870 = vld [vmem:[#allocation2 + $0x11] sm:$0xff]
      %v871 = vld [vmem:[#allocation2 + $0x19] sm:$0xff]
      %v872 = vld [vmem:[#allocation2 + $0x21] sm:$0xff]
      %v873 = vld [vmem:[#allocation2 + $0x29] sm:$0xff]
      %v874 = vld [vmem:[#allocation2 + $0x31] sm:$0x1]
      %s875 = scalar_lea.vmem %s3, 16
      %v876 = vld [vmem:[%s875] sm:$0xff]
      %v877 = vld [vmem:[%s875 + $0x8] sm:$0x3]
      %v879 = vsel %vm841, %v868, 0
      %v882 = vsel %vm841, %v869, 0
      %v885 = vsel %vm841, %v870, 0
      %v888 = vsel %vm841, %v871, 0
      %v891 = vsel %vm841, %v872, 0
      %v894 = vsel %vm841, %v873, 0
      %v897 = vsel %vm841, %v874, 0
      %vm899 = vcmask 1041408
      %v901 = vsel %vm899, %v877, 0
      %903 = vmatprep.subr.mxu0 0.0
      %904 = vmatpush1.msra.mxu0 %v876
      %905 = vmatprep.subr.mxu0 0.0
      %906 = vmatpush1.msra.mxu0 %v901
      %907 = vmatprep.subr.mxu0 0.0
      %908 = vmatpush1.msra.mxu0 0.0
      %909 = vmatprep.subr.mxu0 0.0
      %910 = vmatpush1.msra.mxu0 0.0
      %911 = vmatprep.subr.mxu0 0.0
      %912 = vmatpush1.msra.mxu0 0.0
      %913 = vmatprep.subr.mxu0 0.0
      %914 = vmatpush1.msra.mxu0 0.0
      %915 = vmatprep.subr.mxu0 0.0
      %916 = vmatpush1.msra.mxu0 0.0
      %917 = vmatprep.subr.mxu0 0.0
      %918 = vmatpush1.msra.mxu0 0.0
      %919 = vmatprep.subr.mxu0 0.0
      %920 = vmatpush1.msra.mxu0 0.0
      %921 = vmatprep.subr.mxu0 0.0
      %922 = vmatpush1.msra.mxu0 0.0
      %923 = vmatprep.subr.mxu0 0.0
      %924 = vmatpush1.msra.mxu0 0.0
      %925 = vmatprep.subr.mxu0 0.0
      %926 = vmatpush1.msra.mxu0 0.0
      %927 = vmatprep.subr.mxu0 0.0
      %928 = vmatpush1.msra.mxu0 0.0
      %929 = vmatprep.subr.mxu0 0.0
      %930 = vmatpush1.msra.mxu0 0.0
      %931 = vmatprep.subr.mxu0 0.0
      %932 = vmatpush1.msra.mxu0 0.0
      %933 = vmatprep.subr.mxu0 0.0
      %934 = vmatpush1.msra.mxu0 0.0
      %935 = vmatprep.subr.mxu0 0.0
      %936 = vmatpush1.msra.mxu0 0.0
      %937 = vmatprep.subr.mxu0 0.0
      %938 = vmatpush1.msra.mxu0 0.0
      %939 = vmatprep.subr.mxu0 0.0
      %940 = vmatpush1.msra.mxu0 0.0
      %941 = vmatprep.subr.mxu0 0.0
      %942 = vmatpush1.msra.mxu0 0.0
      %943 = vmatprep.subr.mxu0 0.0
      %944 = vmatpush1.msra.mxu0 0.0
      %945 = vmatprep.subr.mxu0 0.0
      %946 = vmatpush1.msra.mxu0 0.0
      %947 = vmatprep.subr.mxu0 0.0
      %948 = vmatpush1.msra.mxu0 0.0
      %949 = vmatprep.subr.mxu0 0.0
      %950 = vmatpush1.msra.mxu0 0.0
      %951 = vmatprep.subr.mxu0 0.0
      %952 = vmatpush1.msra.mxu0 0.0
      %953 = vmatprep.subr.mxu0 0.0
      %954 = vmatpush1.msra.mxu0 0.0
      %955 = vmatprep.subr.mxu0 0.0
      %956 = vmatpush1.msra.mxu0 0.0
      %957 = vmatprep.subr.mxu0 0.0
      %958 = vmatpush1.msra.mxu0 0.0
      %959 = vmatprep.subr.mxu0 0.0
      %960 = vmatpush1.msra.mxu0 0.0
      %961 = vmatprep.subr.mxu0 0.0
      %962 = vmatpush1.msra.mxu0 0.0
      %963 = vmatprep.subr.mxu0 0.0
      %964 = vmatpush1.msra.mxu0 0.0
      %965 = vmatprep.subr.mxu0 0.0
      %966 = vmatpush1.msra.mxu0 0.0
      %967 = vmatprep.mubr.f32.mxu0 0.0
      %968 = vmatmul.mubr.f32.gmra.mrb[0].mxu0 %v879
      %v969 = vpop.f32.mrb[0].mxu0
      %v970 = vadd.f32 0.0, %v969
      %v971 = vpop.f32.mrb[0].mxu0
      %972 = vmatprep.mubr.f32.mxu0 0.0
      %973 = vmatmul.mubr.f32.gmra.mrb[0].mxu0 %v882
      %v974 = vpop.f32.mrb[0].mxu0
      %v975 = vadd.f32 0.0, %v974
      %v976 = vpop.f32.mrb[0].mxu0
      %977 = vmatprep.mubr.f32.mxu0 0.0
      %978 = vmatmul.mubr.f32.gmra.mrb[0].mxu0 %v885
      %v979 = vpop.f32.mrb[0].mxu0
      %v980 = vadd.f32 0.0, %v979
      %v981 = vpop.f32.mrb[0].mxu0
      %982 = vmatprep.mubr.f32.mxu0 0.0
      %983 = vmatmul.mubr.f32.gmra.mrb[0].mxu0 %v888
      %v984 = vpop.f32.mrb[0].mxu0
      %v985 = vadd.f32 0.0, %v984
      %v986 = vpop.f32.mrb[0].mxu0
      %987 = vmatprep.mubr.f32.mxu0 0.0
      %988 = vmatmul.mubr.f32.gmra.mrb[0].mxu0 %v891
      %v989 = vpop.f32.mrb[0].mxu0
      %v990 = vadd.f32 0.0, %v989
      %v991 = vpop.f32.mrb[0].mxu0
      %992 = vmatprep.mubr.f32.mxu0 0.0
      %993 = vmatmul.mubr.f32.gmra.mrb[0].mxu0 %v894
      %v994 = vpop.f32.mrb[0].mxu0
      %v995 = vpop.f32.mrb[0].mxu0
      %996 = vmatprep.mubr.f32.mxu0 0.0
      %997 = vmatmul.mubr.f32.gmra.mrb[0].mxu0 %v897
      %v998 = vpop.f32.mrb[0].mxu0
      %v999 = vpop.f32.mrb[0].mxu0
      %1000 = vdwg.mxu0
      %v1002 = vsel %vm841, %v859, 0
      %v1005 = vsel %vm841, %v860, 0
      %v1008 = vsel %vm841, %v861, 0
      %v1011 = vsel %vm841, %v862, 0
      %v1014 = vsel %vm841, %v863, 0
      %v1017 = vsel %vm841, %v864, 0
      %v1020 = vsel %vm841, %v865, 0
      %v1023 = vsel %vm899, %v867, 0
      %1025 = vmatprep.subr.mxu0 0.0
      %1026 = vmatpush1.msra.mxu0 %v866
      %1027 = vmatprep.subr.mxu0 0.0
      %1028 = vmatpush1.msra.mxu0 %v1023
      %1029 = vmatprep.subr.mxu0 0.0
      %1030 = vmatpush1.msra.mxu0 0.0
      %1031 = vmatprep.subr.mxu0 0.0
      %1032 = vmatpush1.msra.mxu0 0.0
      %1033 = vmatprep.subr.mxu0 0.0
      %1034 = vmatpush1.msra.mxu0 0.0
      %1035 = vmatprep.subr.mxu0 0.0
      %1036 = vmatpush1.msra.mxu0 0.0
      %1037 = vmatprep.subr.mxu0 0.0
      %1038 = vmatpush1.msra.mxu0 0.0
      %1039 = vmatprep.subr.mxu0 0.0
      %1040 = vmatpush1.msra.mxu0 0.0
      %1041 = vmatprep.subr.mxu0 0.0
      %1042 = vmatpush1.msra.mxu0 0.0
      %1043 = vmatprep.subr.mxu0 0.0
      %1044 = vmatpush1.msra.mxu0 0.0
      %1045 = vmatprep.subr.mxu0 0.0
      %1046 = vmatpush1.msra.mxu0 0.0
      %1047 = vmatprep.subr.mxu0 0.0
      %1048 = vmatpush1.msra.mxu0 0.0
      %1049 = vmatprep.subr.mxu0 0.0
      %1050 = vmatpush1.msra.mxu0 0.0
      %1051 = vmatprep.subr.mxu0 0.0
      %1052 = vmatpush1.msra.mxu0 0.0
      %1053 = vmatprep.subr.mxu0 0.0
      %1054 = vmatpush1.msra.mxu0 0.0
      %1055 = vmatprep.subr.mxu0 0.0
      %1056 = vmatpush1.msra.mxu0 0.0
      %1057 = vmatprep.subr.mxu0 0.0
      %1058 = vmatpush1.msra.mxu0 0.0
      %1059 = vmatprep.subr.mxu0 0.0
      %1060 = vmatpush1.msra.mxu0 0.0
      %1061 = vmatprep.subr.mxu0 0.0
      %1062 = vmatpush1.msra.mxu0 0.0
      %1063 = vmatprep.subr.mxu0 0.0
      %1064 = vmatpush1.msra.mxu0 0.0
      %1065 = vmatprep.subr.mxu0 0.0
      %1066 = vmatpush1.msra.mxu0 0.0
      %1067 = vmatprep.subr.mxu0 0.0
      %1068 = vmatpush1.msra.mxu0 0.0
      %1069 = vmatprep.subr.mxu0 0.0
      %1070 = vmatpush1.msra.mxu0 0.0
      %1071 = vmatprep.subr.mxu0 0.0
      %1072 = vmatpush1.msra.mxu0 0.0
      %1073 = vmatprep.subr.mxu0 0.0
      %1074 = vmatpush1.msra.mxu0 0.0
      %1075 = vmatprep.subr.mxu0 0.0
      %1076 = vmatpush1.msra.mxu0 0.0
      %1077 = vmatprep.subr.mxu0 0.0
      %1078 = vmatpush1.msra.mxu0 0.0
      %1079 = vmatprep.subr.mxu0 0.0
      %1080 = vmatpush1.msra.mxu0 0.0
      %1081 = vmatprep.subr.mxu0 0.0
      %1082 = vmatpush1.msra.mxu0 0.0
      %1083 = vmatprep.subr.mxu0 0.0
      %1084 = vmatpush1.msra.mxu0 0.0
      %1085 = vmatprep.subr.mxu0 0.0
      %1086 = vmatpush1.msra.mxu0 0.0
      %1087 = vmatprep.subr.mxu0 0.0
      %1088 = vmatpush1.msra.mxu0 0.0
      %1089 = vmatprep.mubr.f32.mxu0 0.0
      %1090 = vmatmul.mubr.f32.gmra.mrb[0].mxu0 %v1002
      %v1091 = vpop.f32.mrb[0].mxu0
      %v1092 = vadd.f32 %v970, %v1091
      %v1093 = vpop.f32.mrb[0].mxu0
      %1094 = vmatprep.mubr.f32.mxu0 0.0
      %1095 = vmatmul.mubr.f32.gmra.mrb[0].mxu0 %v1005
      %v1096 = vpop.f32.mrb[0].mxu0
      %v1097 = vadd.f32 %v975, %v1096
      %v1098 = vpop.f32.mrb[0].mxu0
      %1099 = vmatprep.mubr.f32.mxu0 0.0
      %1100 = vmatmul.mubr.f32.gmra.mrb[0].mxu0 %v1008
      %v1101 = vpop.f32.mrb[0].mxu0
      %v1102 = vadd.f32 %v980, %v1101
      %v1103 = vpop.f32.mrb[0].mxu0
      %1104 = vmatprep.mubr.f32.mxu0 0.0
      %1105 = vmatmul.mubr.f32.gmra.mrb[0].mxu0 %v1011
      %v1106 = vpop.f32.mrb[0].mxu0
      %v1107 = vadd.f32 %v985, %v1106
      %v1108 = vpop.f32.mrb[0].mxu0
      %1109 = vmatprep.mubr.f32.mxu0 0.0
      %1110 = vmatmul.mubr.f32.gmra.mrb[0].mxu0 %v1014
      %v1111 = vpop.f32.mrb[0].mxu0
      %v1112 = vadd.f32 %v990, %v1111
      %v1113 = vpop.f32.mrb[0].mxu0
      %1114 = vmatprep.mubr.f32.mxu0 0.0
      %1115 = vmatmul.mubr.f32.gmra.mrb[0].mxu0 %v1017
      %v1116 = vpop.f32.mrb[0].mxu0
      %v1117 = vpop.f32.mrb[0].mxu0
      %1118 = vmatprep.mubr.f32.mxu0 0.0
      %1119 = vmatmul.mubr.f32.gmra.mrb[0].mxu0 %v1020
      %v1120 = vpop.f32.mrb[0].mxu0
      %v1121 = vpop.f32.mrb[0].mxu0
      %1122 = vdwg.mxu0
      %v1123 = vld [vmem:[#allocation2 + $0x2] sm:$0xff]
      %v1124 = vld [vmem:[#allocation2 + $0xa] sm:$0xff]
      %v1125 = vld [vmem:[#allocation2 + $0x12] sm:$0xff]
      %v1126 = vld [vmem:[#allocation2 + $0x1a] sm:$0xff]
      %v1127 = vld [vmem:[#allocation2 + $0x22] sm:$0xff]
      %v1128 = vld [vmem:[#allocation2 + $0x2a] sm:$0xff]
      %v1129 = vld [vmem:[#allocation2 + $0x32] sm:$0x1]
      %s1130 = scalar_lea.vmem %s3, 32
      %v1131 = vld [vmem:[%s1130] sm:$0xff]
      %v1132 = vld [vmem:[%s1130 + $0x8] sm:$0x3]
      %v1134 = vsel %vm841, %v1123, 0
      %v1137 = vsel %vm841, %v1124, 0
      %v1140 = vsel %vm841, %v1125, 0
      %v1143 = vsel %vm841, %v1126, 0
      %v1146 = vsel %vm841, %v1127, 0
      %v1149 = vsel %vm841, %v1128, 0
      %v1152 = vsel %vm841, %v1129, 0
      %v1155 = vsel %vm899, %v1132, 0
      %1157 = vmatprep.subr.mxu0 0.0
      %1158 = vmatpush1.msra.mxu0 %v1131
      %1159 = vmatprep.subr.mxu0 0.0
      %1160 = vmatpush1.msra.mxu0 %v1155
      %1161 = vmatprep.subr.mxu0 0.0
      %1162 = vmatpush1.msra.mxu0 0.0
      %1163 = vmatprep.subr.mxu0 0.0
      %1164 = vmatpush1.msra.mxu0 0.0
      %1165 = vmatprep.subr.mxu0 0.0
      %1166 = vmatpush1.msra.mxu0 0.0
      %1167 = vmatprep.subr.mxu0 0.0
      %1168 = vmatpush1.msra.mxu0 0.0
      %1169 = vmatprep.subr.mxu0 0.0
      %1170 = vmatpush1.msra.mxu0 0.0
      %1171 = vmatprep.subr.mxu0 0.0
      %1172 = vmatpush1.msra.mxu0 0.0
      %1173 = vmatprep.subr.mxu0 0.0
      %1174 = vmatpush1.msra.mxu0 0.0
      %1175 = vmatprep.subr.mxu0 0.0
      %1176 = vmatpush1.msra.mxu0 0.0
      %1177 = vmatprep.subr.mxu0 0.0
      %1178 = vmatpush1.msra.mxu0 0.0
      %1179 = vmatprep.subr.mxu0 0.0
      %1180 = vmatpush1.msra.mxu0 0.0
      %1181 = vmatprep.subr.mxu0 0.0
      %1182 = vmatpush1.msra.mxu0 0.0
      %1183 = vmatprep.subr.mxu0 0.0
      %1184 = vmatpush1.msra.mxu0 0.0
      %1185 = vmatprep.subr.mxu0 0.0
      %1186 = vmatpush1.msra.mxu0 0.0
      %1187 = vmatprep.subr.mxu0 0.0
      %1188 = vmatpush1.msra.mxu0 0.0
      %1189 = vmatprep.subr.mxu0 0.0
      %1190 = vmatpush1.msra.mxu0 0.0
      %1191 = vmatprep.subr.mxu0 0.0
      %1192 = vmatpush1.msra.mxu0 0.0
      %1193 = vmatprep.subr.mxu0 0.0
      %1194 = vmatpush1.msra.mxu0 0.0
      %1195 = vmatprep.subr.mxu0 0.0
      %1196 = vmatpush1.msra.mxu0 0.0
      %1197 = vmatprep.subr.mxu0 0.0
      %1198 = vmatpush1.msra.mxu0 0.0
      %1199 = vmatprep.subr.mxu0 0.0
      %1200 = vmatpush1.msra.mxu0 0.0
      %1201 = vmatprep.subr.mxu0 0.0
      %1202 = vmatpush1.msra.mxu0 0.0
      %1203 = vmatprep.subr.mxu0 0.0
      %1204 = vmatpush1.msra.mxu0 0.0
      %1205 = vmatprep.subr.mxu0 0.0
      %1206 = vmatpush1.msra.mxu0 0.0
      %1207 = vmatprep.subr.mxu0 0.0
      %1208 = vmatpush1.msra.mxu0 0.0
      %1209 = vmatprep.subr.mxu0 0.0
      %1210 = vmatpush1.msra.mxu0 0.0
      %1211 = vmatprep.subr.mxu0 0.0
      %1212 = vmatpush1.msra.mxu0 0.0
      %1213 = vmatprep.subr.mxu0 0.0
      %1214 = vmatpush1.msra.mxu0 0.0
      %1215 = vmatprep.subr.mxu0 0.0
      %1216 = vmatpush1.msra.mxu0 0.0
      %1217 = vmatprep.subr.mxu0 0.0
      %1218 = vmatpush1.msra.mxu0 0.0
      %1219 = vmatprep.subr.mxu0 0.0
      %1220 = vmatpush1.msra.mxu0 0.0
      %1221 = vmatprep.mubr.f32.mxu0 0.0
      %1222 = vmatmul.mubr.f32.gmra.mrb[0].mxu0 %v1134
      %v1223 = vpop.f32.mrb[0].mxu0
      %v1224 = vadd.f32 0.0, %v1223
      %v1225 = vpop.f32.mrb[0].mxu0
      %1226 = vmatprep.mubr.f32.mxu0 0.0
      %1227 = vmatmul.mubr.f32.gmra.mrb[0].mxu0 %v1137
      %v1228 = vpop.f32.mrb[0].mxu0
      %v1229 = vadd.f32 0.0, %v1228
      %v1230 = vpop.f32.mrb[0].mxu0
      %1231 = vmatprep.mubr.f32.mxu0 0.0
      %1232 = vmatmul.mubr.f32.gmra.mrb[0].mxu0 %v1140
      %v1233 = vpop.f32.mrb[0].mxu0
      %v1234 = vadd.f32 0.0, %v1233
      %v1235 = vpop.f32.mrb[0].mxu0
      %1236 = vmatprep.mubr.f32.mxu0 0.0
      %1237 = vmatmul.mubr.f32.gmra.mrb[0].mxu0 %v1143
      %v1238 = vpop.f32.mrb[0].mxu0
      %v1239 = vadd.f32 0.0, %v1238
      %v1240 = vpop.f32.mrb[0].mxu0
      %1241 = vmatprep.mubr.f32.mxu0 0.0
      %1242 = vmatmul.mubr.f32.gmra.mrb[0].mxu0 %v1146
      %v1243 = vpop.f32.mrb[0].mxu0
      %v1244 = vadd.f32 0.0, %v1243
      %v1245 = vpop.f32.mrb[0].mxu0
      %1246 = vmatprep.mubr.f32.mxu0 0.0
      %1247 = vmatmul.mubr.f32.gmra.mrb[0].mxu0 %v1149
      %v1248 = vpop.f32.mrb[0].mxu0
      %v1249 = vpop.f32.mrb[0].mxu0
      %1250 = vmatprep.mubr.f32.mxu0 0.0
      %1251 = vmatmul.mubr.f32.gmra.mrb[0].mxu0 %v1152
      %v1252 = vpop.f32.mrb[0].mxu0
      %v1253 = vpop.f32.mrb[0].mxu0
      %1254 = vdwg.mxu0
      %v1255 = vadd.f32 %v1092, %v1224
      %v1256 = vadd.f32 %v1097, %v1229
      %v1257 = vadd.f32 %v1102, %v1234
      %v1258 = vadd.f32 %v1107, %v1239
      %v1259 = vadd.f32 %v1112, %v1244
      %v1260 = vld [vmem:[#allocation2 + $0x7] sm:$0xff]
      %v1261 = vld [vmem:[#allocation2 + $0xf] sm:$0xff]
      %v1262 = vld [vmem:[#allocation2 + $0x17] sm:$0xff]
      %v1263 = vld [vmem:[#allocation2 + $0x1f] sm:$0xff]
      %v1264 = vld [vmem:[#allocation2 + $0x27] sm:$0xff]
      %v1265 = vld [vmem:[#allocation2 + $0x2f] sm:$0xff]
      %v1266 = vld [vmem:[#allocation2 + $0x37] sm:$0x1]
      %s1267 = scalar_lea.vmem %s3, 48
      %v1268 = vld [vmem:[%s1267] sm:$0xff]
      %v1269 = vld [vmem:[%s1267 + $0x8] sm:$0x3]
      %v1271 = vsel %vm841, %v1260, 0
      %v1274 = vsel %vm841, %v1261, 0
      %v1277 = vsel %vm841, %v1262, 0
      %v1280 = vsel %vm841, %v1263, 0
      %v1283 = vsel %vm841, %v1264, 0
      %v1286 = vsel %vm841, %v1265, 0
      %v1289 = vsel %vm841, %v1266, 0
      %v1292 = vsel %vm899, %v1269, 0
      %1294 = vmatprep.subr.mxu0 0.0
      %1295 = vmatpush1.msra.mxu0 %v1268
      %1296 = vmatprep.subr.mxu0 0.0
      %1297 = vmatpush1.msra.mxu0 %v1292
      %1298 = vmatprep.subr.mxu0 0.0
      %1299 = vmatpush1.msra.mxu0 0.0
      %1300 = vmatprep.subr.mxu0 0.0
      %1301 = vmatpush1.msra.mxu0 0.0
      %1302 = vmatprep.subr.mxu0 0.0
      %1303 = vmatpush1.msra.mxu0 0.0
      %1304 = vmatprep.subr.mxu0 0.0
      %1305 = vmatpush1.msra.mxu0 0.0
      %1306 = vmatprep.subr.mxu0 0.0
      %1307 = vmatpush1.msra.mxu0 0.0
      %1308 = vmatprep.subr.mxu0 0.0
      %1309 = vmatpush1.msra.mxu0 0.0
      %1310 = vmatprep.subr.mxu0 0.0
      %1311 = vmatpush1.msra.mxu0 0.0
      %1312 = vmatprep.subr.mxu0 0.0
      %1313 = vmatpush1.msra.mxu0 0.0
      %1314 = vmatprep.subr.mxu0 0.0
      %1315 = vmatpush1.msra.mxu0 0.0
      %1316 = vmatprep.subr.mxu0 0.0
      %1317 = vmatpush1.msra.mxu0 0.0
      %1318 = vmatprep.subr.mxu0 0.0
      %1319 = vmatpush1.msra.mxu0 0.0
      %1320 = vmatprep.subr.mxu0 0.0
      %1321 = vmatpush1.msra.mxu0 0.0
      %1322 = vmatprep.subr.mxu0 0.0
      %1323 = vmatpush1.msra.mxu0 0.0
      %1324 = vmatprep.subr.mxu0 0.0
      %1325 = vmatpush1.msra.mxu0 0.0
      %1326 = vmatprep.subr.mxu0 0.0
      %1327 = vmatpush1.msra.mxu0 0.0
      %1328 = vmatprep.subr.mxu0 0.0
      %1329 = vmatpush1.msra.mxu0 0.0
      %1330 = vmatprep.subr.mxu0 0.0
      %1331 = vmatpush1.msra.mxu0 0.0
      %1332 = vmatprep.subr.mxu0 0.0
      %1333 = vmatpush1.msra.mxu0 0.0
      %1334 = vmatprep.subr.mxu0 0.0
      %1335 = vmatpush1.msra.mxu0 0.0
      %1336 = vmatprep.subr.mxu0 0.0
      %1337 = vmatpush1.msra.mxu0 0.0
      %1338 = vmatprep.subr.mxu0 0.0
      %1339 = vmatpush1.msra.mxu0 0.0
      %1340 = vmatprep.subr.mxu0 0.0
      %1341 = vmatpush1.msra.mxu0 0.0
      %1342 = vmatprep.subr.mxu0 0.0
      %1343 = vmatpush1.msra.mxu0 0.0
      %1344 = vmatprep.subr.mxu0 0.0
      %1345 = vmatpush1.msra.mxu0 0.0
      %1346 = vmatprep.subr.mxu0 0.0
      %1347 = vmatpush1.msra.mxu0 0.0
      %1348 = vmatprep.subr.mxu0 0.0
      %1349 = vmatpush1.msra.mxu0 0.0
      %1350 = vmatprep.subr.mxu0 0.0
      %1351 = vmatpush1.msra.mxu0 0.0
      %1352 = vmatprep.subr.mxu0 0.0
      %1353 = vmatpush1.msra.mxu0 0.0
      %1354 = vmatprep.subr.mxu0 0.0
      %1355 = vmatpush1.msra.mxu0 0.0
      %1356 = vmatprep.subr.mxu0 0.0
      %1357 = vmatpush1.msra.mxu0 0.0
      %1358 = vmatprep.mubr.f32.mxu0 0.0
      %1359 = vmatmul.mubr.f32.gmra.mrb[0].mxu0 %v1271
      %v1360 = vpop.f32.mrb[0].mxu0
      %v1361 = vadd.f32 0.0, %v1360
      %v1362 = vpop.f32.mrb[0].mxu0
      %1363 = vmatprep.mubr.f32.mxu0 0.0
      %1364 = vmatmul.mubr.f32.gmra.mrb[0].mxu0 %v1274
      %v1365 = vpop.f32.mrb[0].mxu0
      %v1366 = vadd.f32 0.0, %v1365
      %v1367 = vpop.f32.mrb[0].mxu0
      %1368 = vmatprep.mubr.f32.mxu0 0.0
      %1369 = vmatmul.mubr.f32.gmra.mrb[0].mxu0 %v1277
      %v1370 = vpop.f32.mrb[0].mxu0
      %v1371 = vadd.f32 0.0, %v1370
      %v1372 = vpop.f32.mrb[0].mxu0
      %1373 = vmatprep.mubr.f32.mxu0 0.0
      %1374 = vmatmul.mubr.f32.gmra.mrb[0].mxu0 %v1280
      %v1375 = vpop.f32.mrb[0].mxu0
      %v1376 = vadd.f32 0.0, %v1375
      %v1377 = vpop.f32.mrb[0].mxu0
      %1378 = vmatprep.mubr.f32.mxu0 0.0
      %1379 = vmatmul.mubr.f32.gmra.mrb[0].mxu0 %v1283
      %v1380 = vpop.f32.mrb[0].mxu0
      %v1381 = vadd.f32 0.0, %v1380
      %v1382 = vpop.f32.mrb[0].mxu0
      %1383 = vmatprep.mubr.f32.mxu0 0.0
      %1384 = vmatmul.mubr.f32.gmra.mrb[0].mxu0 %v1286
      %v1385 = vpop.f32.mrb[0].mxu0
      %v1386 = vpop.f32.mrb[0].mxu0
      %1387 = vmatprep.mubr.f32.mxu0 0.0
      %1388 = vmatmul.mubr.f32.gmra.mrb[0].mxu0 %v1289
      %v1389 = vpop.f32.mrb[0].mxu0
      %v1390 = vpop.f32.mrb[0].mxu0
      %1391 = vdwg.mxu0
      %v1392 = vadd.f32 %v1255, %v1361
      %v1393 = vadd.f32 %v1256, %v1366
      %v1394 = vadd.f32 %v1257, %v1371
      %v1395 = vadd.f32 %v1258, %v1376
      %v1396 = vadd.f32 %v1259, %v1381
      %v1397 = vld [vmem:[#allocation2 + $0x8] sm:$0xff]
      %v1398 = vld [vmem:[#allocation2 + $0x10] sm:$0xff]
      %v1399 = vld [vmem:[#allocation2 + $0x18] sm:$0xff]
      %v1400 = vld [vmem:[#allocation2 + $0x20] sm:$0xff]
      %v1401 = vld [vmem:[#allocation2 + $0x28] sm:$0xff]
      %v1402 = vld [vmem:[#allocation2 + $0x30] sm:$0xff]
      %v1403 = vld [vmem:[#allocation2 + $0x38] sm:$0x1]
      %s1404 = scalar_lea.vmem %s3, 64
      %v1405 = vld [vmem:[%s1404] sm:$0xff]
      %v1406 = vld [vmem:[%s1404 + $0x8] sm:$0x3]
      %v1408 = vsel %vm841, %v1397, 0
      %v1411 = vsel %vm841, %v1398, 0
      %v1414 = vsel %vm841, %v1399, 0
      %v1417 = vsel %vm841, %v1400, 0
      %v1420 = vsel %vm841, %v1401, 0
      %v1423 = vsel %vm841, %v1402, 0
      %v1426 = vsel %vm841, %v1403, 0
      %v1429 = vsel %vm899, %v1406, 0
      %1431 = vmatprep.subr.mxu0 0.0
      %1432 = vmatpush1.msra.mxu0 %v1405
      %1433 = vmatprep.subr.mxu0 0.0
      %1434 = vmatpush1.msra.mxu0 %v1429
      %1435 = vmatprep.subr.mxu0 0.0
      %1436 = vmatpush1.msra.mxu0 0.0
      %1437 = vmatprep.subr.mxu0 0.0
      %1438 = vmatpush1.msra.mxu0 0.0
      %1439 = vmatprep.subr.mxu0 0.0
      %1440 = vmatpush1.msra.mxu0 0.0
      %1441 = vmatprep.subr.mxu0 0.0
      %1442 = vmatpush1.msra.mxu0 0.0
      %1443 = vmatprep.subr.mxu0 0.0
      %1444 = vmatpush1.msra.mxu0 0.0
      %1445 = vmatprep.subr.mxu0 0.0
      %1446 = vmatpush1.msra.mxu0 0.0
      %1447 = vmatprep.subr.mxu0 0.0
      %1448 = vmatpush1.msra.mxu0 0.0
      %1449 = vmatprep.subr.mxu0 0.0
      %1450 = vmatpush1.msra.mxu0 0.0
      %1451 = vmatprep.subr.mxu0 0.0
      %1452 = vmatpush1.msra.mxu0 0.0
      %1453 = vmatprep.subr.mxu0 0.0
      %1454 = vmatpush1.msra.mxu0 0.0
      %1455 = vmatprep.subr.mxu0 0.0
      %1456 = vmatpush1.msra.mxu0 0.0
      %1457 = vmatprep.subr.mxu0 0.0
      %1458 = vmatpush1.msra.mxu0 0.0
      %1459 = vmatprep.subr.mxu0 0.0
      %1460 = vmatpush1.msra.mxu0 0.0
      %1461 = vmatprep.subr.mxu0 0.0
      %1462 = vmatpush1.msra.mxu0 0.0
      %1463 = vmatprep.subr.mxu0 0.0
      %1464 = vmatpush1.msra.mxu0 0.0
      %1465 = vmatprep.subr.mxu0 0.0
      %1466 = vmatpush1.msra.mxu0 0.0
      %1467 = vmatprep.subr.mxu0 0.0
      %1468 = vmatpush1.msra.mxu0 0.0
      %1469 = vmatprep.subr.mxu0 0.0
      %1470 = vmatpush1.msra.mxu0 0.0
      %1471 = vmatprep.subr.mxu0 0.0
      %1472 = vmatpush1.msra.mxu0 0.0
      %1473 = vmatprep.subr.mxu0 0.0
      %1474 = vmatpush1.msra.mxu0 0.0
      %1475 = vmatprep.subr.mxu0 0.0
      %1476 = vmatpush1.msra.mxu0 0.0
      %1477 = vmatprep.subr.mxu0 0.0
      %1478 = vmatpush1.msra.mxu0 0.0
      %1479 = vmatprep.subr.mxu0 0.0
      %1480 = vmatpush1.msra.mxu0 0.0
      %1481 = vmatprep.subr.mxu0 0.0
      %1482 = vmatpush1.msra.mxu0 0.0
      %1483 = vmatprep.subr.mxu0 0.0
      %1484 = vmatpush1.msra.mxu0 0.0
      %1485 = vmatprep.subr.mxu0 0.0
      %1486 = vmatpush1.msra.mxu0 0.0
      %1487 = vmatprep.subr.mxu0 0.0
      %1488 = vmatpush1.msra.mxu0 0.0
      %1489 = vmatprep.subr.mxu0 0.0
      %1490 = vmatpush1.msra.mxu0 0.0
      %1491 = vmatprep.subr.mxu0 0.0
      %1492 = vmatpush1.msra.mxu0 0.0
      %1493 = vmatprep.subr.mxu0 0.0
      %1494 = vmatpush1.msra.mxu0 0.0
      %1495 = vmatprep.mubr.f32.mxu0 0.0
      %1496 = vmatmul.mubr.f32.gmra.mrb[0].mxu0 %v1408
      %v1497 = vpop.f32.mrb[0].mxu0
      %v1498 = vadd.f32 0.0, %v1497
      %v1499 = vpop.f32.mrb[0].mxu0
      %1500 = vmatprep.mubr.f32.mxu0 0.0
      %1501 = vmatmul.mubr.f32.gmra.mrb[0].mxu0 %v1411
      %v1502 = vpop.f32.mrb[0].mxu0
      %v1503 = vadd.f32 0.0, %v1502
      %v1504 = vpop.f32.mrb[0].mxu0
      %1505 = vmatprep.mubr.f32.mxu0 0.0
      %1506 = vmatmul.mubr.f32.gmra.mrb[0].mxu0 %v1414
      %v1507 = vpop.f32.mrb[0].mxu0
      %v1508 = vadd.f32 0.0, %v1507
      %v1509 = vpop.f32.mrb[0].mxu0
      %1510 = vmatprep.mubr.f32.mxu0 0.0
      %1511 = vmatmul.mubr.f32.gmra.mrb[0].mxu0 %v1417
      %v1512 = vpop.f32.mrb[0].mxu0
      %v1513 = vadd.f32 0.0, %v1512
      %v1514 = vpop.f32.mrb[0].mxu0
      %1515 = vmatprep.mubr.f32.mxu0 0.0
      %1516 = vmatmul.mubr.f32.gmra.mrb[0].mxu0 %v1420
      %v1517 = vpop.f32.mrb[0].mxu0
      %v1518 = vadd.f32 0.0, %v1517
      %v1519 = vpop.f32.mrb[0].mxu0
      %1520 = vmatprep.mubr.f32.mxu0 0.0
      %1521 = vmatmul.mubr.f32.gmra.mrb[0].mxu0 %v1423
      %v1522 = vpop.f32.mrb[0].mxu0
      %v1523 = vpop.f32.mrb[0].mxu0
      %1524 = vmatprep.mubr.f32.mxu0 0.0
      %1525 = vmatmul.mubr.f32.gmra.mrb[0].mxu0 %v1426
      %v1526 = vpop.f32.mrb[0].mxu0
      %v1527 = vpop.f32.mrb[0].mxu0
      %1528 = vdwg.mxu0
      %v1529 = vadd.f32 %v1392, %v1498
      %v1530 = vadd.f32 %v1393, %v1503
      %v1531 = vadd.f32 %v1394, %v1508
      %v1532 = vadd.f32 %v1395, %v1513
      %v1533 = vadd.f32 %v1396, %v1518
      %v1534 = vld [vmem:[#allocation2 + $0x9] sm:$0xff]
      %v1535 = vld [vmem:[#allocation2 + $0x11] sm:$0xff]
      %v1536 = vld [vmem:[#allocation2 + $0x19] sm:$0xff]
      %v1537 = vld [vmem:[#allocation2 + $0x21] sm:$0xff]
      %v1538 = vld [vmem:[#allocation2 + $0x29] sm:$0xff]
      %v1539 = vld [vmem:[#allocation2 + $0x31] sm:$0xff]
      %v1540 = vld [vmem:[#allocation2 + $0x39] sm:$0x1]
      %s1541 = scalar_lea.vmem %s3, 80
      %v1542 = vld [vmem:[%s1541] sm:$0xff]
      %v1543 = vld [vmem:[%s1541 + $0x8] sm:$0x3]
      %v1545 = vsel %vm841, %v1534, 0
      %v1548 = vsel %vm841, %v1535, 0
      %v1551 = vsel %vm841, %v1536, 0
      %v1554 = vsel %vm841, %v1537, 0
      %v1557 = vsel %vm841, %v1538, 0
      %v1560 = vsel %vm841, %v1539, 0
      %v1563 = vsel %vm841, %v1540, 0
      %v1566 = vsel %vm899, %v1543, 0
      %1568 = vmatprep.subr.mxu0 0.0
      %1569 = vmatpush1.msra.mxu0 %v1542
      %1570 = vmatprep.subr.mxu0 0.0
      %1571 = vmatpush1.msra.mxu0 %v1566
      %1572 = vmatprep.subr.mxu0 0.0
      %1573 = vmatpush1.msra.mxu0 0.0
      %1574 = vmatprep.subr.mxu0 0.0
      %1575 = vmatpush1.msra.mxu0 0.0
      %1576 = vmatprep.subr.mxu0 0.0
      %1577 = vmatpush1.msra.mxu0 0.0
      %1578 = vmatprep.subr.mxu0 0.0
      %1579 = vmatpush1.msra.mxu0 0.0
      %1580 = vmatprep.subr.mxu0 0.0
      %1581 = vmatpush1.msra.mxu0 0.0
      %1582 = vmatprep.subr.mxu0 0.0
      %1583 = vmatpush1.msra.mxu0 0.0
      %1584 = vmatprep.subr.mxu0 0.0
      %1585 = vmatpush1.msra.mxu0 0.0
      %1586 = vmatprep.subr.mxu0 0.0
      %1587 = vmatpush1.msra.mxu0 0.0
      %1588 = vmatprep.subr.mxu0 0.0
      %1589 = vmatpush1.msra.mxu0 0.0
      %1590 = vmatprep.subr.mxu0 0.0
      %1591 = vmatpush1.msra.mxu0 0.0
      %1592 = vmatprep.subr.mxu0 0.0
      %1593 = vmatpush1.msra.mxu0 0.0
      %1594 = vmatprep.subr.mxu0 0.0
      %1595 = vmatpush1.msra.mxu0 0.0
      %1596 = vmatprep.subr.mxu0 0.0
      %1597 = vmatpush1.msra.mxu0 0.0
      %1598 = vmatprep.subr.mxu0 0.0
      %1599 = vmatpush1.msra.mxu0 0.0
      %1600 = vmatprep.subr.mxu0 0.0
      %1601 = vmatpush1.msra.mxu0 0.0
      %1602 = vmatprep.subr.mxu0 0.0
      %1603 = vmatpush1.msra.mxu0 0.0
      %1604 = vmatprep.subr.mxu0 0.0
      %1605 = vmatpush1.msra.mxu0 0.0
      %1606 = vmatprep.subr.mxu0 0.0
      %1607 = vmatpush1.msra.mxu0 0.0
      %1608 = vmatprep.subr.mxu0 0.0
      %1609 = vmatpush1.msra.mxu0 0.0
      %1610 = vmatprep.subr.mxu0 0.0
      %1611 = vmatpush1.msra.mxu0 0.0
      %1612 = vmatprep.subr.mxu0 0.0
      %1613 = vmatpush1.msra.mxu0 0.0
      %1614 = vmatprep.subr.mxu0 0.0
      %1615 = vmatpush1.msra.mxu0 0.0
      %1616 = vmatprep.subr.mxu0 0.0
      %1617 = vmatpush1.msra.mxu0 0.0
      %1618 = vmatprep.subr.mxu0 0.0
      %1619 = vmatpush1.msra.mxu0 0.0
      %1620 = vmatprep.subr.mxu0 0.0
      %1621 = vmatpush1.msra.mxu0 0.0
      %1622 = vmatprep.subr.mxu0 0.0
      %1623 = vmatpush1.msra.mxu0 0.0
      %1624 = vmatprep.subr.mxu0 0.0
      %1625 = vmatpush1.msra.mxu0 0.0
      %1626 = vmatprep.subr.mxu0 0.0
      %1627 = vmatpush1.msra.mxu0 0.0
      %1628 = vmatprep.subr.mxu0 0.0
      %1629 = vmatpush1.msra.mxu0 0.0
      %1630 = vmatprep.subr.mxu0 0.0
      %1631 = vmatpush1.msra.mxu0 0.0
      %1632 = vmatprep.mubr.f32.mxu0 0.0
      %1633 = vmatmul.mubr.f32.gmra.mrb[0].mxu0 %v1545
      %v1634 = vpop.f32.mrb[0].mxu0
      %v1635 = vadd.f32 0.0, %v1634
      %v1636 = vpop.f32.mrb[0].mxu0
      %1637 = vmatprep.mubr.f32.mxu0 0.0
      %1638 = vmatmul.mubr.f32.gmra.mrb[0].mxu0 %v1548
      %v1639 = vpop.f32.mrb[0].mxu0
      %v1640 = vadd.f32 0.0, %v1639
      %v1641 = vpop.f32.mrb[0].mxu0
      %1642 = vmatprep.mubr.f32.mxu0 0.0
      %1643 = vmatmul.mubr.f32.gmra.mrb[0].mxu0 %v1551
      %v1644 = vpop.f32.mrb[0].mxu0
      %v1645 = vadd.f32 0.0, %v1644
      %v1646 = vpop.f32.mrb[0].mxu0
      %1647 = vmatprep.mubr.f32.mxu0 0.0
      %1648 = vmatmul.mubr.f32.gmra.mrb[0].mxu0 %v1554
      %v1649 = vpop.f32.mrb[0].mxu0
      %v1650 = vadd.f32 0.0, %v1649
      %v1651 = vpop.f32.mrb[0].mxu0
      %1652 = vmatprep.mubr.f32.mxu0 0.0
      %1653 = vmatmul.mubr.f32.gmra.mrb[0].mxu0 %v1557
      %v1654 = vpop.f32.mrb[0].mxu0
      %v1655 = vadd.f32 0.0, %v1654
      %v1656 = vpop.f32.mrb[0].mxu0
      %1657 = vmatprep.mubr.f32.mxu0 0.0
      %1658 = vmatmul.mubr.f32.gmra.mrb[0].mxu0 %v1560
      %v1659 = vpop.f32.mrb[0].mxu0
      %v1660 = vpop.f32.mrb[0].mxu0
      %1661 = vmatprep.mubr.f32.mxu0 0.0
      %1662 = vmatmul.mubr.f32.gmra.mrb[0].mxu0 %v1563
      %v1663 = vpop.f32.mrb[0].mxu0
      %v1664 = vpop.f32.mrb[0].mxu0
      %1665 = vdwg.mxu0
      %v1666 = vadd.f32 %v1529, %v1635
      %v1667 = vadd.f32 %v1530, %v1640
      %v1668 = vadd.f32 %v1531, %v1645
      %v1669 = vadd.f32 %v1532, %v1650
      %v1670 = vadd.f32 %v1533, %v1655
      %v1671 = vld [vmem:[#allocation2 + $0xe] sm:$0xff]
      %v1672 = vld [vmem:[#allocation2 + $0x16] sm:$0xff]
      %v1673 = vld [vmem:[#allocation2 + $0x1e] sm:$0xff]
      %v1674 = vld [vmem:[#allocation2 + $0x26] sm:$0xff]
      %v1675 = vld [vmem:[#allocation2 + $0x2e] sm:$0xff]
      %v1676 = vld [vmem:[#allocation2 + $0x36] sm:$0xff]
      %v1677 = vld [vmem:[#allocation2 + $0x3e] sm:$0x1]
      %s1678 = scalar_lea.vmem %s3, 96
      %v1679 = vld [vmem:[%s1678] sm:$0xff]
      %v1680 = vld [vmem:[%s1678 + $0x8] sm:$0x3]
      %v1682 = vsel %vm841, %v1671, 0
      %v1685 = vsel %vm841, %v1672, 0
      %v1688 = vsel %vm841, %v1673, 0
      %v1691 = vsel %vm841, %v1674, 0
      %v1694 = vsel %vm841, %v1675, 0
      %v1697 = vsel %vm841, %v1676, 0
      %v1700 = vsel %vm841, %v1677, 0
      %v1703 = vsel %vm899, %v1680, 0
      %1705 = vmatprep.subr.mxu0 0.0
      %1706 = vmatpush1.msra.mxu0 %v1679
      %1707 = vmatprep.subr.mxu0 0.0
      %1708 = vmatpush1.msra.mxu0 %v1703
      %1709 = vmatprep.subr.mxu0 0.0
      %1710 = vmatpush1.msra.mxu0 0.0
      %1711 = vmatprep.subr.mxu0 0.0
      %1712 = vmatpush1.msra.mxu0 0.0
      %1713 = vmatprep.subr.mxu0 0.0
      %1714 = vmatpush1.msra.mxu0 0.0
      %1715 = vmatprep.subr.mxu0 0.0
      %1716 = vmatpush1.msra.mxu0 0.0
      %1717 = vmatprep.subr.mxu0 0.0
      %1718 = vmatpush1.msra.mxu0 0.0
      %1719 = vmatprep.subr.mxu0 0.0
      %1720 = vmatpush1.msra.mxu0 0.0
      %1721 = vmatprep.subr.mxu0 0.0
      %1722 = vmatpush1.msra.mxu0 0.0
      %1723 = vmatprep.subr.mxu0 0.0
      %1724 = vmatpush1.msra.mxu0 0.0
      %1725 = vmatprep.subr.mxu0 0.0
      %1726 = vmatpush1.msra.mxu0 0.0
      %1727 = vmatprep.subr.mxu0 0.0
      %1728 = vmatpush1.msra.mxu0 0.0
      %1729 = vmatprep.subr.mxu0 0.0
      %1730 = vmatpush1.msra.mxu0 0.0
      %1731 = vmatprep.subr.mxu0 0.0
      %1732 = vmatpush1.msra.mxu0 0.0
      %1733 = vmatprep.subr.mxu0 0.0
      %1734 = vmatpush1.msra.mxu0 0.0
      %1735 = vmatprep.subr.mxu0 0.0
      %1736 = vmatpush1.msra.mxu0 0.0
      %1737 = vmatprep.subr.mxu0 0.0
      %1738 = vmatpush1.msra.mxu0 0.0
      %1739 = vmatprep.subr.mxu0 0.0
      %1740 = vmatpush1.msra.mxu0 0.0
      %1741 = vmatprep.subr.mxu0 0.0
      %1742 = vmatpush1.msra.mxu0 0.0
      %1743 = vmatprep.subr.mxu0 0.0
      %1744 = vmatpush1.msra.mxu0 0.0
      %1745 = vmatprep.subr.mxu0 0.0
      %1746 = vmatpush1.msra.mxu0 0.0
      %1747 = vmatprep.subr.mxu0 0.0
      %1748 = vmatpush1.msra.mxu0 0.0
      %1749 = vmatprep.subr.mxu0 0.0
      %1750 = vmatpush1.msra.mxu0 0.0
      %1751 = vmatprep.subr.mxu0 0.0
      %1752 = vmatpush1.msra.mxu0 0.0
      %1753 = vmatprep.subr.mxu0 0.0
      %1754 = vmatpush1.msra.mxu0 0.0
      %1755 = vmatprep.subr.mxu0 0.0
      %1756 = vmatpush1.msra.mxu0 0.0
      %1757 = vmatprep.subr.mxu0 0.0
      %1758 = vmatpush1.msra.mxu0 0.0
      %1759 = vmatprep.subr.mxu0 0.0
      %1760 = vmatpush1.msra.mxu0 0.0
      %1761 = vmatprep.subr.mxu0 0.0
      %1762 = vmatpush1.msra.mxu0 0.0
      %1763 = vmatprep.subr.mxu0 0.0
      %1764 = vmatpush1.msra.mxu0 0.0
      %1765 = vmatprep.subr.mxu0 0.0
      %1766 = vmatpush1.msra.mxu0 0.0
      %1767 = vmatprep.subr.mxu0 0.0
      %1768 = vmatpush1.msra.mxu0 0.0
      %1769 = vmatprep.mubr.f32.mxu0 0.0
      %1770 = vmatmul.mubr.f32.gmra.mrb[0].mxu0 %v1682
      %v1771 = vpop.f32.mrb[0].mxu0
      %v1772 = vadd.f32 0.0, %v1771
      %v1773 = vpop.f32.mrb[0].mxu0
      %1774 = vmatprep.mubr.f32.mxu0 0.0
      %1775 = vmatmul.mubr.f32.gmra.mrb[0].mxu0 %v1685
      %v1776 = vpop.f32.mrb[0].mxu0
      %v1777 = vadd.f32 0.0, %v1776
      %v1778 = vpop.f32.mrb[0].mxu0
      %1779 = vmatprep.mubr.f32.mxu0 0.0
      %1780 = vmatmul.mubr.f32.gmra.mrb[0].mxu0 %v1688
      %v1781 = vpop.f32.mrb[0].mxu0
      %v1782 = vadd.f32 0.0, %v1781
      %v1783 = vpop.f32.mrb[0].mxu0
      %1784 = vmatprep.mubr.f32.mxu0 0.0
      %1785 = vmatmul.mubr.f32.gmra.mrb[0].mxu0 %v1691
      %v1786 = vpop.f32.mrb[0].mxu0
      %v1787 = vadd.f32 0.0, %v1786
      %v1788 = vpop.f32.mrb[0].mxu0
      %1789 = vmatprep.mubr.f32.mxu0 0.0
      %1790 = vmatmul.mubr.f32.gmra.mrb[0].mxu0 %v1694
      %v1791 = vpop.f32.mrb[0].mxu0
      %v1792 = vadd.f32 0.0, %v1791
      %v1793 = vpop.f32.mrb[0].mxu0
      %1794 = vmatprep.mubr.f32.mxu0 0.0
      %1795 = vmatmul.mubr.f32.gmra.mrb[0].mxu0 %v1697
      %v1796 = vpop.f32.mrb[0].mxu0
      %v1797 = vpop.f32.mrb[0].mxu0
      %1798 = vmatprep.mubr.f32.mxu0 0.0
      %1799 = vmatmul.mubr.f32.gmra.mrb[0].mxu0 %v1700
      %v1800 = vpop.f32.mrb[0].mxu0
      %v1801 = vpop.f32.mrb[0].mxu0
      %1802 = vdwg.mxu0
      %v1803 = vadd.f32 %v1666, %v1772
      %v1804 = vadd.f32 %v1667, %v1777
      %v1805 = vadd.f32 %v1668, %v1782
      %v1806 = vadd.f32 %v1669, %v1787
      %v1807 = vadd.f32 %v1670, %v1792
      %v1808 = vld [vmem:[#allocation2 + $0xf] sm:$0xff]
      %v1809 = vld [vmem:[#allocation2 + $0x17] sm:$0xff]
      %v1810 = vld [vmem:[#allocation2 + $0x1f] sm:$0xff]
      %v1811 = vld [vmem:[#allocation2 + $0x27] sm:$0xff]
      %v1812 = vld [vmem:[#allocation2 + $0x2f] sm:$0xff]
      %v1813 = vld [vmem:[#allocation2 + $0x37] sm:$0xff]
      %v1814 = vld [vmem:[#allocation2 + $0x3f] sm:$0x1]
      %s1815 = scalar_lea.vmem %s3, 112
      %v1816 = vld [vmem:[%s1815] sm:$0xff]
      %v1817 = vld [vmem:[%s1815 + $0x8] sm:$0x3]
      %v1819 = vsel %vm841, %v1808, 0
      %v1822 = vsel %vm841, %v1809, 0
      %v1825 = vsel %vm841, %v1810, 0
      %v1828 = vsel %vm841, %v1811, 0
      %v1831 = vsel %vm841, %v1812, 0
      %v1834 = vsel %vm841, %v1813, 0
      %v1837 = vsel %vm841, %v1814, 0
      %v1840 = vsel %vm899, %v1817, 0
      %1842 = vmatprep.subr.mxu0 0.0
      %1843 = vmatpush1.msra.mxu0 %v1816
      %1844 = vmatprep.subr.mxu0 0.0
      %1845 = vmatpush1.msra.mxu0 %v1840
      %1846 = vmatprep.subr.mxu0 0.0
      %1847 = vmatpush1.msra.mxu0 0.0
      %1848 = vmatprep.subr.mxu0 0.0
      %1849 = vmatpush1.msra.mxu0 0.0
      %1850 = vmatprep.subr.mxu0 0.0
      %1851 = vmatpush1.msra.mxu0 0.0
      %1852 = vmatprep.subr.mxu0 0.0
      %1853 = vmatpush1.msra.mxu0 0.0
      %1854 = vmatprep.subr.mxu0 0.0
      %1855 = vmatpush1.msra.mxu0 0.0
      %1856 = vmatprep.subr.mxu0 0.0
      %1857 = vmatpush1.msra.mxu0 0.0
      %1858 = vmatprep.subr.mxu0 0.0
      %1859 = vmatpush1.msra.mxu0 0.0
      %1860 = vmatprep.subr.mxu0 0.0
      %1861 = vmatpush1.msra.mxu0 0.0
      %1862 = vmatprep.subr.mxu0 0.0
      %1863 = vmatpush1.msra.mxu0 0.0
      %1864 = vmatprep.subr.mxu0 0.0
      %1865 = vmatpush1.msra.mxu0 0.0
      %1866 = vmatprep.subr.mxu0 0.0
      %1867 = vmatpush1.msra.mxu0 0.0
      %1868 = vmatprep.subr.mxu0 0.0
      %1869 = vmatpush1.msra.mxu0 0.0
      %1870 = vmatprep.subr.mxu0 0.0
      %1871 = vmatpush1.msra.mxu0 0.0
      %1872 = vmatprep.subr.mxu0 0.0
      %1873 = vmatpush1.msra.mxu0 0.0
      %1874 = vmatprep.subr.mxu0 0.0
      %1875 = vmatpush1.msra.mxu0 0.0
      %1876 = vmatprep.subr.mxu0 0.0
      %1877 = vmatpush1.msra.mxu0 0.0
      %1878 = vmatprep.subr.mxu0 0.0
      %1879 = vmatpush1.msra.mxu0 0.0
      %1880 = vmatprep.subr.mxu0 0.0
      %1881 = vmatpush1.msra.mxu0 0.0
      %1882 = vmatprep.subr.mxu0 0.0
      %1883 = vmatpush1.msra.mxu0 0.0
      %1884 = vmatprep.subr.mxu0 0.0
      %1885 = vmatpush1.msra.mxu0 0.0
      %1886 = vmatprep.subr.mxu0 0.0
      %1887 = vmatpush1.msra.mxu0 0.0
      %1888 = vmatprep.subr.mxu0 0.0
      %1889 = vmatpush1.msra.mxu0 0.0
      %1890 = vmatprep.subr.mxu0 0.0
      %1891 = vmatpush1.msra.mxu0 0.0
      %1892 = vmatprep.subr.mxu0 0.0
      %1893 = vmatpush1.msra.mxu0 0.0
      %1894 = vmatprep.subr.mxu0 0.0
      %1895 = vmatpush1.msra.mxu0 0.0
      %1896 = vmatprep.subr.mxu0 0.0
      %1897 = vmatpush1.msra.mxu0 0.0
      %1898 = vmatprep.subr.mxu0 0.0
      %1899 = vmatpush1.msra.mxu0 0.0
      %1900 = vmatprep.subr.mxu0 0.0
      %1901 = vmatpush1.msra.mxu0 0.0
      %1902 = vmatprep.subr.mxu0 0.0
      %1903 = vmatpush1.msra.mxu0 0.0
      %1904 = vmatprep.subr.mxu0 0.0
      %1905 = vmatpush1.msra.mxu0 0.0
      %1906 = vmatprep.mubr.f32.mxu0 0.0
      %1907 = vmatmul.mubr.f32.gmra.mrb[0].mxu0 %v1819
      %v1908 = vpop.f32.mrb[0].mxu0
      %v1909 = vadd.f32 0.0, %v1908
      %v1910 = vpop.f32.mrb[0].mxu0
      %1911 = vmatprep.mubr.f32.mxu0 0.0
      %1912 = vmatmul.mubr.f32.gmra.mrb[0].mxu0 %v1822
      %v1913 = vpop.f32.mrb[0].mxu0
      %v1914 = vadd.f32 0.0, %v1913
      %v1915 = vpop.f32.mrb[0].mxu0
      %1916 = vmatprep.mubr.f32.mxu0 0.0
      %1917 = vmatmul.mubr.f32.gmra.mrb[0].mxu0 %v1825
      %v1918 = vpop.f32.mrb[0].mxu0
      %v1919 = vadd.f32 0.0, %v1918
      %v1920 = vpop.f32.mrb[0].mxu0
      %1921 = vmatprep.mubr.f32.mxu0 0.0
      %1922 = vmatmul.mubr.f32.gmra.mrb[0].mxu0 %v1828
      %v1923 = vpop.f32.mrb[0].mxu0
      %v1924 = vadd.f32 0.0, %v1923
      %v1925 = vpop.f32.mrb[0].mxu0
      %1926 = vmatprep.mubr.f32.mxu0 0.0
      %1927 = vmatmul.mubr.f32.gmra.mrb[0].mxu0 %v1831
      %v1928 = vpop.f32.mrb[0].mxu0
      %v1929 = vadd.f32 0.0, %v1928
      %v1930 = vpop.f32.mrb[0].mxu0
      %1931 = vmatprep.mubr.f32.mxu0 0.0
      %1932 = vmatmul.mubr.f32.gmra.mrb[0].mxu0 %v1834
      %v1933 = vpop.f32.mrb[0].mxu0
      %v1934 = vpop.f32.mrb[0].mxu0
      %1935 = vmatprep.mubr.f32.mxu0 0.0
      %1936 = vmatmul.mubr.f32.gmra.mrb[0].mxu0 %v1837
      %v1937 = vpop.f32.mrb[0].mxu0
      %v1938 = vpop.f32.mrb[0].mxu0
      %1939 = vdwg.mxu0
      %v1940 = vadd.f32 %v1803, %v1909
      %v1941 = vadd.f32 %v1804, %v1914
      %v1942 = vadd.f32 %v1805, %v1919
      %v1943 = vadd.f32 %v1806, %v1924
      %v1944 = vadd.f32 %v1807, %v1929
      %v1945 = vld [vmem:[#allocation2 + $0x10] sm:$0xff]
      %v1946 = vld [vmem:[#allocation2 + $0x18] sm:$0xff]
      %v1947 = vld [vmem:[#allocation2 + $0x20] sm:$0xff]
      %v1948 = vld [vmem:[#allocation2 + $0x28] sm:$0xff]
      %v1949 = vld [vmem:[#allocation2 + $0x30] sm:$0xff]
      %v1950 = vld [vmem:[#allocation2 + $0x38] sm:$0xff]
      %v1951 = vld [vmem:[#allocation2 + $0x40] sm:$0x1]
      %s1952 = scalar_lea.vmem %s3, 128
      %v1953 = vld [vmem:[%s1952] sm:$0xff]
      %v1954 = vld [vmem:[%s1952 + $0x8] sm:$0x3]
      %v1956 = vsel %vm841, %v1945, 0
      %v1959 = vsel %vm841, %v1946, 0
      %v1962 = vsel %vm841, %v1947, 0
      %v1965 = vsel %vm841, %v1948, 0
      %v1968 = vsel %vm841, %v1949, 0
      %v1971 = vsel %vm841, %v1950, 0
      %v1974 = vsel %vm841, %v1951, 0
      %v1977 = vsel %vm899, %v1954, 0
      %1979 = vmatprep.subr.mxu0 0.0
      %1980 = vmatpush1.msra.mxu0 %v1953
      %1981 = vmatprep.subr.mxu0 0.0
      %1982 = vmatpush1.msra.mxu0 %v1977
      %1983 = vmatprep.subr.mxu0 0.0
      %1984 = vmatpush1.msra.mxu0 0.0
      %1985 = vmatprep.subr.mxu0 0.0
      %1986 = vmatpush1.msra.mxu0 0.0
      %1987 = vmatprep.subr.mxu0 0.0
      %1988 = vmatpush1.msra.mxu0 0.0
      %1989 = vmatprep.subr.mxu0 0.0
      %1990 = vmatpush1.msra.mxu0 0.0
      %1991 = vmatprep.subr.mxu0 0.0
      %1992 = vmatpush1.msra.mxu0 0.0
      %1993 = vmatprep.subr.mxu0 0.0
      %1994 = vmatpush1.msra.mxu0 0.0
      %1995 = vmatprep.subr.mxu0 0.0
      %1996 = vmatpush1.msra.mxu0 0.0
      %1997 = vmatprep.subr.mxu0 0.0
      %1998 = vmatpush1.msra.mxu0 0.0
      %1999 = vmatprep.subr.mxu0 0.0
      %2000 = vmatpush1.msra.mxu0 0.0
      %2001 = vmatprep.subr.mxu0 0.0
      %2002 = vmatpush1.msra.mxu0 0.0
      %2003 = vmatprep.subr.mxu0 0.0
      %2004 = vmatpush1.msra.mxu0 0.0
      %2005 = vmatprep.subr.mxu0 0.0
      %2006 = vmatpush1.msra.mxu0 0.0
      %2007 = vmatprep.subr.mxu0 0.0
      %2008 = vmatpush1.msra.mxu0 0.0
      %2009 = vmatprep.subr.mxu0 0.0
      %2010 = vmatpush1.msra.mxu0 0.0
      %2011 = vmatprep.subr.mxu0 0.0
      %2012 = vmatpush1.msra.mxu0 0.0
      %2013 = vmatprep.subr.mxu0 0.0
      %2014 = vmatpush1.msra.mxu0 0.0
      %2015 = vmatprep.subr.mxu0 0.0
      %2016 = vmatpush1.msra.mxu0 0.0
      %2017 = vmatprep.subr.mxu0 0.0
      %2018 = vmatpush1.msra.mxu0 0.0
      %2019 = vmatprep.subr.mxu0 0.0
      %2020 = vmatpush1.msra.mxu0 0.0
      %2021 = vmatprep.subr.mxu0 0.0
      %2022 = vmatpush1.msra.mxu0 0.0
      %2023 = vmatprep.subr.mxu0 0.0
      %2024 = vmatpush1.msra.mxu0 0.0
      %2025 = vmatprep.subr.mxu0 0.0
      %2026 = vmatpush1.msra.mxu0 0.0
      %2027 = vmatprep.subr.mxu0 0.0
      %2028 = vmatpush1.msra.mxu0 0.0
      %2029 = vmatprep.subr.mxu0 0.0
      %2030 = vmatpush1.msra.mxu0 0.0
      %2031 = vmatprep.subr.mxu0 0.0
      %2032 = vmatpush1.msra.mxu0 0.0
      %2033 = vmatprep.subr.mxu0 0.0
      %2034 = vmatpush1.msra.mxu0 0.0
      %2035 = vmatprep.subr.mxu0 0.0
      %2036 = vmatpush1.msra.mxu0 0.0
      %2037 = vmatprep.subr.mxu0 0.0
      %2038 = vmatpush1.msra.mxu0 0.0
      %2039 = vmatprep.subr.mxu0 0.0
      %2040 = vmatpush1.msra.mxu0 0.0
      %2041 = vmatprep.subr.mxu0 0.0
      %2042 = vmatpush1.msra.mxu0 0.0
      %2043 = vmatprep.mubr.f32.mxu0 0.0
      %2044 = vmatmul.mubr.f32.gmra.mrb[0].mxu0 %v1956
      %v2045 = vpop.f32.mrb[0].mxu0
      %v2046 = vadd.f32 0.0, %v2045
      %v2047 = vpop.f32.mrb[0].mxu0
      %2048 = vmatprep.mubr.f32.mxu0 0.0
      %2049 = vmatmul.mubr.f32.gmra.mrb[0].mxu0 %v1959
      %v2050 = vpop.f32.mrb[0].mxu0
      %v2051 = vadd.f32 0.0, %v2050
      %v2052 = vpop.f32.mrb[0].mxu0
      %2053 = vmatprep.mubr.f32.mxu0 0.0
      %2054 = vmatmul.mubr.f32.gmra.mrb[0].mxu0 %v1962
      %v2055 = vpop.f32.mrb[0].mxu0
      %v2056 = vadd.f32 0.0, %v2055
      %v2057 = vpop.f32.mrb[0].mxu0
      %2058 = vmatprep.mubr.f32.mxu0 0.0
      %2059 = vmatmul.mubr.f32.gmra.mrb[0].mxu0 %v1965
      %v2060 = vpop.f32.mrb[0].mxu0
      %v2061 = vadd.f32 0.0, %v2060
      %v2062 = vpop.f32.mrb[0].mxu0
      %2063 = vmatprep.mubr.f32.mxu0 0.0
      %2064 = vmatmul.mubr.f32.gmra.mrb[0].mxu0 %v1968
      %v2065 = vpop.f32.mrb[0].mxu0
      %v2066 = vadd.f32 0.0, %v2065
      %v2067 = vpop.f32.mrb[0].mxu0
      %2068 = vmatprep.mubr.f32.mxu0 0.0
      %2069 = vmatmul.mubr.f32.gmra.mrb[0].mxu0 %v1971
      %v2070 = vpop.f32.mrb[0].mxu0
      %v2071 = vpop.f32.mrb[0].mxu0
      %2072 = vmatprep.mubr.f32.mxu0 0.0
      %2073 = vmatmul.mubr.f32.gmra.mrb[0].mxu0 %v1974
      %v2074 = vpop.f32.mrb[0].mxu0
      %v2075 = vpop.f32.mrb[0].mxu0
      %2076 = vdwg.mxu0
      %v2077 = vadd.f32 %v1940, %v2046
      %v2078 = vadd.f32 %v1941, %v2051
      %v2079 = vadd.f32 %v1942, %v2056
      %v2080 = vadd.f32 %v1943, %v2061
      %v2081 = vadd.f32 %v1944, %v2066
      %v2082 = vld [vmem:[%s4] sm:$0x1]
      %v2084 = vlaneseq
      %v2085 = vshrl.u32 %v2084, 7
      %v2086 = vsub.s32 0, %v2085
      %v2087 = vrot.slane %v2082, %v2086
      %v2089 = vadd.f32 %v2077, %v2087
      %v2090 = vadd.f32 %v2078, %v2087
      %v2091 = vadd.f32 %v2079, %v2087
      %v2092 = vadd.f32 %v2080, %v2087
      %v2093 = vadd.f32 %v2081, %v2087
      %v2094 = vmax.f32 %v2089, 0.0
      %v2095 = vmax.f32 %v2090, 0.0
      %v2096 = vmax.f32 %v2091, 0.0
      %v2097 = vmax.f32 %v2092, 0.0
      %v2098 = vmax.f32 %v2093, 0.0
      %v2099 = vld [vmem:[%s6] sm:$0x3]
      %v2100 = vld [vmem:[%s5] sm:$0xff]
      %v2101 = vld [vmem:[%s5 + $0x8] sm:$0xff]
      %v2102 = vld [vmem:[%s5 + $0x10] sm:$0x3]
      %v2103 = vld [vmem:[%s5 + $0x18] sm:$0x3]
      %v2105 = vsel %vm841, %v2094, 0
      %v2108 = vsel %vm899, %v2102, 0
      %v2111 = vsel %vm899, %v2103, 0
      %2113 = vmatprep.subr.mxu0 %v2101
      %2114 = vmatpush1.msra.mxu0 %v2100
      %2115 = vmatprep.subr.mxu0 %v2111
      %2116 = vmatpush1.msra.mxu0 %v2108
      %2117 = vmatprep.subr.mxu0 0.0
      %2118 = vmatpush1.msra.mxu0 0.0
      %2119 = vmatprep.subr.mxu0 0.0
      %2120 = vmatpush1.msra.mxu0 0.0
      %2121 = vmatprep.subr.mxu0 0.0
      %2122 = vmatpush1.msra.mxu0 0.0
      %2123 = vmatprep.subr.mxu0 0.0
      %2124 = vmatpush1.msra.mxu0 0.0
      %2125 = vmatprep.subr.mxu0 0.0
      %2126 = vmatpush1.msra.mxu0 0.0
      %2127 = vmatprep.subr.mxu0 0.0
      %2128 = vmatpush1.msra.mxu0 0.0
      %2129 = vmatprep.subr.mxu0 0.0
      %2130 = vmatpush1.msra.mxu0 0.0
      %2131 = vmatprep.subr.mxu0 0.0
      %2132 = vmatpush1.msra.mxu0 0.0
      %2133 = vmatprep.subr.mxu0 0.0
      %2134 = vmatpush1.msra.mxu0 0.0
      %2135 = vmatprep.subr.mxu0 0.0
      %2136 = vmatpush1.msra.mxu0 0.0
      %2137 = vmatprep.subr.mxu0 0.0
      %2138 = vmatpush1.msra.mxu0 0.0
      %2139 = vmatprep.subr.mxu0 0.0
      %2140 = vmatpush1.msra.mxu0 0.0
      %2141 = vmatprep.subr.mxu0 0.0
      %2142 = vmatpush1.msra.mxu0 0.0
      %2143 = vmatprep.subr.mxu0 0.0
      %2144 = vmatpush1.msra.mxu0 0.0
      %2145 = vmatprep.subr.mxu0 0.0
      %2146 = vmatpush1.msra.mxu0 0.0
      %2147 = vmatprep.subr.mxu0 0.0
      %2148 = vmatpush1.msra.mxu0 0.0
      %2149 = vmatprep.subr.mxu0 0.0
      %2150 = vmatpush1.msra.mxu0 0.0
      %2151 = vmatprep.subr.mxu0 0.0
      %2152 = vmatpush1.msra.mxu0 0.0
      %2153 = vmatprep.subr.mxu0 0.0
      %2154 = vmatpush1.msra.mxu0 0.0
      %2155 = vmatprep.subr.mxu0 0.0
      %2156 = vmatpush1.msra.mxu0 0.0
      %2157 = vmatprep.subr.mxu0 0.0
      %2158 = vmatpush1.msra.mxu0 0.0
      %2159 = vmatprep.subr.mxu0 0.0
      %2160 = vmatpush1.msra.mxu0 0.0
      %2161 = vmatprep.subr.mxu0 0.0
      %2162 = vmatpush1.msra.mxu0 0.0
      %2163 = vmatprep.subr.mxu0 0.0
      %2164 = vmatpush1.msra.mxu0 0.0
      %2165 = vmatprep.subr.mxu0 0.0
      %2166 = vmatpush1.msra.mxu0 0.0
      %2167 = vmatprep.subr.mxu0 0.0
      %2168 = vmatpush1.msra.mxu0 0.0
      %2169 = vmatprep.subr.mxu0 0.0
      %2170 = vmatpush1.msra.mxu0 0.0
      %2171 = vmatprep.subr.mxu0 0.0
      %2172 = vmatpush1.msra.mxu0 0.0
      %2173 = vmatprep.subr.mxu0 0.0
      %2174 = vmatpush1.msra.mxu0 0.0
      %2175 = vmatprep.subr.mxu0 0.0
      %2176 = vmatpush1.msra.mxu0 0.0
      %2177 = vmatprep.mubr.f32.mxu0 0.0
      %2178 = vmatmul.mubr.f32.gmra.mrb[0].mxu0 %v2105
      %v2179 = vpop.f32.mrb[0].mxu0
      %v2180 = vadd.f32 0.0, %v2179
      %v2181 = vpop.f32.mrb[0].mxu0
      %v2182 = vadd.f32 0.0, %v2181
      %2183 = vdwg.mxu0
      %v2186 = vcombine.low %v2180, %v2182
      %v2188 = vunpack.c.l.s4 1966171168
      %v2189 = vunpack.c.0.s8 %v2188
      %v2190 = vlaneseq
      %v2191 = vshrl.u32 %v2190, 7
      %v2192 = vsub.s32 %v2189, %v2191
      %v2193 = vrot.slane %v2186, %v2192
      %v2195 = vunpack.c.l.s4 1966171168
      %v2196 = vunpack.c.0.s8 %v2195
      %v2197 = vlaneseq
      %v2198 = vshrl.u32 %v2197, 7
      %v2199 = vsub.s32 %v2196, %v2198
      %v2200 = vrot.slane %v2193, %v2199
      %v2202 = vadd.f32 %v2099, %v2200
      %s2203 = scalar_lea.vmem %s5, 32
      %v2204 = vld [vmem:[%s2203] sm:$0xff]
      %v2205 = vld [vmem:[%s2203 + $0x8] sm:$0xff]
      %v2206 = vld [vmem:[%s2203 + $0x10] sm:$0x3]
      %v2207 = vld [vmem:[%s2203 + $0x18] sm:$0x3]
      %v2208 = vrot.slane %v2094, 1
      %v2209 = vsel %vm841, %v2208, 0
      %v2212 = vsel %vm899, %v2206, 0
      %v2215 = vsel %vm899, %v2207, 0
      %2217 = vmatprep.subr.mxu0 %v2205
      %2218 = vmatpush1.msra.mxu0 %v2204
      %2219 = vmatprep.subr.mxu0 %v2215
      %2220 = vmatpush1.msra.mxu0 %v2212
      %2221 = vmatprep.subr.mxu0 0.0
      %2222 = vmatpush1.msra.mxu0 0.0
      %2223 = vmatprep.subr.mxu0 0.0
      %2224 = vmatpush1.msra.mxu0 0.0
      %2225 = vmatprep.subr.mxu0 0.0
      %2226 = vmatpush1.msra.mxu0 0.0
      %2227 = vmatprep.subr.mxu0 0.0
      %2228 = vmatpush1.msra.mxu0 0.0
      %2229 = vmatprep.subr.mxu0 0.0
      %2230 = vmatpush1.msra.mxu0 0.0
      %2231 = vmatprep.subr.mxu0 0.0
      %2232 = vmatpush1.msra.mxu0 0.0
      %2233 = vmatprep.subr.mxu0 0.0
      %2234 = vmatpush1.msra.mxu0 0.0
      %2235 = vmatprep.subr.mxu0 0.0
      %2236 = vmatpush1.msra.mxu0 0.0
      %2237 = vmatprep.subr.mxu0 0.0
      %2238 = vmatpush1.msra.mxu0 0.0
      %2239 = vmatprep.subr.mxu0 0.0
      %2240 = vmatpush1.msra.mxu0 0.0
      %2241 = vmatprep.subr.mxu0 0.0
      %2242 = vmatpush1.msra.mxu0 0.0
      %2243 = vmatprep.subr.mxu0 0.0
      %2244 = vmatpush1.msra.mxu0 0.0
      %2245 = vmatprep.subr.mxu0 0.0
      %2246 = vmatpush1.msra.mxu0 0.0
      %2247 = vmatprep.subr.mxu0 0.0
      %2248 = vmatpush1.msra.mxu0 0.0
      %2249 = vmatprep.subr.mxu0 0.0
      %2250 = vmatpush1.msra.mxu0 0.0
      %2251 = vmatprep.subr.mxu0 0.0
      %2252 = vmatpush1.msra.mxu0 0.0
      %2253 = vmatprep.subr.mxu0 0.0
      %2254 = vmatpush1.msra.mxu0 0.0
      %2255 = vmatprep.subr.mxu0 0.0
      %2256 = vmatpush1.msra.mxu0 0.0
      %2257 = vmatprep.subr.mxu0 0.0
      %2258 = vmatpush1.msra.mxu0 0.0
      %2259 = vmatprep.subr.mxu0 0.0
      %2260 = vmatpush1.msra.mxu0 0.0
      %2261 = vmatprep.subr.mxu0 0.0
      %2262 = vmatpush1.msra.mxu0 0.0
      %2263 = vmatprep.subr.mxu0 0.0
      %2264 = vmatpush1.msra.mxu0 0.0
      %2265 = vmatprep.subr.mxu0 0.0
      %2266 = vmatpush1.msra.mxu0 0.0
      %2267 = vmatprep.subr.mxu0 0.0
      %2268 = vmatpush1.msra.mxu0 0.0
      %2269 = vmatprep.subr.mxu0 0.0
      %2270 = vmatpush1.msra.mxu0 0.0
      %2271 = vmatprep.subr.mxu0 0.0
      %2272 = vmatpush1.msra.mxu0 0.0
      %2273 = vmatprep.subr.mxu0 0.0
      %2274 = vmatpush1.msra.mxu0 0.0
      %2275 = vmatprep.subr.mxu0 0.0
      %2276 = vmatpush1.msra.mxu0 0.0
      %2277 = vmatprep.subr.mxu0 0.0
      %2278 = vmatpush1.msra.mxu0 0.0
      %2279 = vmatprep.subr.mxu0 0.0
      %2280 = vmatpush1.msra.mxu0 0.0
      %2281 = vmatprep.mubr.f32.mxu0 0.0
      %2282 = vmatmul.mubr.f32.gmra.mrb[0].mxu0 %v2209
      %v2283 = vpop.f32.mrb[0].mxu0
      %v2284 = vadd.f32 0.0, %v2283
      %v2285 = vpop.f32.mrb[0].mxu0
      %v2286 = vadd.f32 0.0, %v2285
      %2287 = vdwg.mxu0
      %v2290 = vcombine.low %v2284, %v2286
      %v2292 = vunpack.c.l.s4 1966171168
      %v2293 = vunpack.c.0.s8 %v2292
      %v2294 = vlaneseq
      %v2295 = vshrl.u32 %v2294, 7
      %v2296 = vsub.s32 %v2293, %v2295
      %v2297 = vrot.slane %v2290, %v2296
      %v2299 = vunpack.c.l.s4 1966171168
      %v2300 = vunpack.c.0.s8 %v2299
      %v2301 = vlaneseq
      %v2302 = vshrl.u32 %v2301, 7
      %v2303 = vsub.s32 %v2300, %v2302
      %v2304 = vrot.slane %v2297, %v2303
      %v2306 = vadd.f32 %v2202, %v2304
      %s2307 = scalar_lea.vmem %s5, 64
      %v2308 = vld [vmem:[%s2307] sm:$0xff]
      %v2309 = vld [vmem:[%s2307 + $0x8] sm:$0xff]
      %v2310 = vld [vmem:[%s2307 + $0x10] sm:$0x3]
      %v2311 = vld [vmem:[%s2307 + $0x18] sm:$0x3]
      %v2312 = vrot.slane %v2094, 2
      %v2313 = vsel %vm841, %v2312, 0
      %v2316 = vsel %vm899, %v2310, 0
      %v2319 = vsel %vm899, %v2311, 0
      %2321 = vmatprep.subr.mxu0 %v2309
      %2322 = vmatpush1.msra.mxu0 %v2308
      %2323 = vmatprep.subr.mxu0 %v2319
      %2324 = vmatpush1.msra.mxu0 %v2316
      %2325 = vmatprep.subr.mxu0 0.0
      %2326 = vmatpush1.msra.mxu0 0.0
      %2327 = vmatprep.subr.mxu0 0.0
      %2328 = vmatpush1.msra.mxu0 0.0
      %2329 = vmatprep.subr.mxu0 0.0
      %2330 = vmatpush1.msra.mxu0 0.0
      %2331 = vmatprep.subr.mxu0 0.0
      %2332 = vmatpush1.msra.mxu0 0.0
      %2333 = vmatprep.subr.mxu0 0.0
      %2334 = vmatpush1.msra.mxu0 0.0
      %2335 = vmatprep.subr.mxu0 0.0
      %2336 = vmatpush1.msra.mxu0 0.0
      %2337 = vmatprep.subr.mxu0 0.0
      %2338 = vmatpush1.msra.mxu0 0.0
      %2339 = vmatprep.subr.mxu0 0.0
      %2340 = vmatpush1.msra.mxu0 0.0
      %2341 = vmatprep.subr.mxu0 0.0
      %2342 = vmatpush1.msra.mxu0 0.0
      %2343 = vmatprep.subr.mxu0 0.0
      %2344 = vmatpush1.msra.mxu0 0.0
      %2345 = vmatprep.subr.mxu0 0.0
      %2346 = vmatpush1.msra.mxu0 0.0
      %2347 = vmatprep.subr.mxu0 0.0
      %2348 = vmatpush1.msra.mxu0 0.0
      %2349 = vmatprep.subr.mxu0 0.0
      %2350 = vmatpush1.msra.mxu0 0.0
      %2351 = vmatprep.subr.mxu0 0.0
      %2352 = vmatpush1.msra.mxu0 0.0
      %2353 = vmatprep.subr.mxu0 0.0
      %2354 = vmatpush1.msra.mxu0 0.0
      %2355 = vmatprep.subr.mxu0 0.0
      %2356 = vmatpush1.msra.mxu0 0.0
      %2357 = vmatprep.subr.mxu0 0.0
      %2358 = vmatpush1.msra.mxu0 0.0
      %2359 = vmatprep.subr.mxu0 0.0
      %2360 = vmatpush1.msra.mxu0 0.0
      %2361 = vmatprep.subr.mxu0 0.0
      %2362 = vmatpush1.msra.mxu0 0.0
      %2363 = vmatprep.subr.mxu0 0.0
      %2364 = vmatpush1.msra.mxu0 0.0
      %2365 = vmatprep.subr.mxu0 0.0
      %2366 = vmatpush1.msra.mxu0 0.0
      %2367 = vmatprep.subr.mxu0 0.0
      %2368 = vmatpush1.msra.mxu0 0.0
      %2369 = vmatprep.subr.mxu0 0.0
      %2370 = vmatpush1.msra.mxu0 0.0
      %2371 = vmatprep.subr.mxu0 0.0
      %2372 = vmatpush1.msra.mxu0 0.0
      %2373 = vmatprep.subr.mxu0 0.0
      %2374 = vmatpush1.msra.mxu0 0.0
      %2375 = vmatprep.subr.mxu0 0.0
      %2376 = vmatpush1.msra.mxu0 0.0
      %2377 = vmatprep.subr.mxu0 0.0
      %2378 = vmatpush1.msra.mxu0 0.0
      %2379 = vmatprep.subr.mxu0 0.0
      %2380 = vmatpush1.msra.mxu0 0.0
      %2381 = vmatprep.subr.mxu0 0.0
      %2382 = vmatpush1.msra.mxu0 0.0
      %2383 = vmatprep.subr.mxu0 0.0
      %2384 = vmatpush1.msra.mxu0 0.0
      %2385 = vmatprep.mubr.f32.mxu0 0.0
      %2386 = vmatmul.mubr.f32.gmra.mrb[0].mxu0 %v2313
      %v2387 = vpop.f32.mrb[0].mxu0
      %v2388 = vadd.f32 0.0, %v2387
      %v2389 = vpop.f32.mrb[0].mxu0
      %v2390 = vadd.f32 0.0, %v2389
      %2391 = vdwg.mxu0
      %v2394 = vcombine.low %v2388, %v2390
      %v2396 = vunpack.c.l.s4 1966171168
      %v2397 = vunpack.c.0.s8 %v2396
      %v2398 = vlaneseq
      %v2399 = vshrl.u32 %v2398, 7
      %v2400 = vsub.s32 %v2397, %v2399
      %v2401 = vrot.slane %v2394, %v2400
      %v2403 = vunpack.c.l.s4 1966171168
      %v2404 = vunpack.c.0.s8 %v2403
      %v2405 = vlaneseq
      %v2406 = vshrl.u32 %v2405, 7
      %v2407 = vsub.s32 %v2404, %v2406
      %v2408 = vrot.slane %v2401, %v2407
      %v2410 = vadd.f32 %v2306, %v2408
      %s2411 = scalar_lea.vmem %s5, 96
      %v2412 = vld [vmem:[%s2411] sm:$0xff]
      %v2413 = vld [vmem:[%s2411 + $0x8] sm:$0xff]
      %v2414 = vld [vmem:[%s2411 + $0x10] sm:$0x3]
      %v2415 = vld [vmem:[%s2411 + $0x18] sm:$0x3]
      %v2416 = vrot.slane %v2094, 3
      %v2417 = vsel %vm841, %v2416, 0
      %v2420 = vsel %vm899, %v2414, 0
      %v2423 = vsel %vm899, %v2415, 0
      %2425 = vmatprep.subr.mxu0 %v2413
      %2426 = vmatpush1.msra.mxu0 %v2412
      %2427 = vmatprep.subr.mxu0 %v2423
      %2428 = vmatpush1.msra.mxu0 %v2420
      %2429 = vmatprep.subr.mxu0 0.0
      %2430 = vmatpush1.msra.mxu0 0.0
      %2431 = vmatprep.subr.mxu0 0.0
      %2432 = vmatpush1.msra.mxu0 0.0
      %2433 = vmatprep.subr.mxu0 0.0
      %2434 = vmatpush1.msra.mxu0 0.0
      %2435 = vmatprep.subr.mxu0 0.0
      %2436 = vmatpush1.msra.mxu0 0.0
      %2437 = vmatprep.subr.mxu0 0.0
      %2438 = vmatpush1.msra.mxu0 0.0
      %2439 = vmatprep.subr.mxu0 0.0
      %2440 = vmatpush1.msra.mxu0 0.0
      %2441 = vmatprep.subr.mxu0 0.0
      %2442 = vmatpush1.msra.mxu0 0.0
      %2443 = vmatprep.subr.mxu0 0.0
      %2444 = vmatpush1.msra.mxu0 0.0
      %2445 = vmatprep.subr.mxu0 0.0
      %2446 = vmatpush1.msra.mxu0 0.0
      %2447 = vmatprep.subr.mxu0 0.0
      %2448 = vmatpush1.msra.mxu0 0.0
      %2449 = vmatprep.subr.mxu0 0.0
      %2450 = vmatpush1.msra.mxu0 0.0
      %2451 = vmatprep.subr.mxu0 0.0
      %2452 = vmatpush1.msra.mxu0 0.0
      %2453 = vmatprep.subr.mxu0 0.0
      %2454 = vmatpush1.msra.mxu0 0.0
      %2455 = vmatprep.subr.mxu0 0.0
      %2456 = vmatpush1.msra.mxu0 0.0
      %2457 = vmatprep.subr.mxu0 0.0
      %2458 = vmatpush1.msra.mxu0 0.0
      %2459 = vmatprep.subr.mxu0 0.0
      %2460 = vmatpush1.msra.mxu0 0.0
      %2461 = vmatprep.subr.mxu0 0.0
      %2462 = vmatpush1.msra.mxu0 0.0
      %2463 = vmatprep.subr.mxu0 0.0
      %2464 = vmatpush1.msra.mxu0 0.0
      %2465 = vmatprep.subr.mxu0 0.0
      %2466 = vmatpush1.msra.mxu0 0.0
      %2467 = vmatprep.subr.mxu0 0.0
      %2468 = vmatpush1.msra.mxu0 0.0
      %2469 = vmatprep.subr.mxu0 0.0
      %2470 = vmatpush1.msra.mxu0 0.0
      %2471 = vmatprep.subr.mxu0 0.0
      %2472 = vmatpush1.msra.mxu0 0.0
      %2473 = vmatprep.subr.mxu0 0.0
      %2474 = vmatpush1.msra.mxu0 0.0
      %2475 = vmatprep.subr.mxu0 0.0
      %2476 = vmatpush1.msra.mxu0 0.0
      %2477 = vmatprep.subr.mxu0 0.0
      %2478 = vmatpush1.msra.mxu0 0.0
      %2479 = vmatprep.subr.mxu0 0.0
      %2480 = vmatpush1.msra.mxu0 0.0
      %2481 = vmatprep.subr.mxu0 0.0
      %2482 = vmatpush1.msra.mxu0 0.0
      %2483 = vmatprep.subr.mxu0 0.0
      %2484 = vmatpush1.msra.mxu0 0.0
      %2485 = vmatprep.subr.mxu0 0.0
      %2486 = vmatpush1.msra.mxu0 0.0
      %2487 = vmatprep.subr.mxu0 0.0
      %2488 = vmatpush1.msra.mxu0 0.0
      %2489 = vmatprep.mubr.f32.mxu0 0.0
      %2490 = vmatmul.mubr.f32.gmra.mrb[0].mxu0 %v2417
      %v2491 = vpop.f32.mrb[0].mxu0
      %v2492 = vadd.f32 0.0, %v2491
      %v2493 = vpop.f32.mrb[0].mxu0
      %v2494 = vadd.f32 0.0, %v2493
      %2495 = vdwg.mxu0
      %v2498 = vcombine.low %v2492, %v2494
      %v2500 = vunpack.c.l.s4 1966171168
      %v2501 = vunpack.c.0.s8 %v2500
      %v2502 = vlaneseq
      %v2503 = vshrl.u32 %v2502, 7
      %v2504 = vsub.s32 %v2501, %v2503
      %v2505 = vrot.slane %v2498, %v2504
      %v2507 = vunpack.c.l.s4 1966171168
      %v2508 = vunpack.c.0.s8 %v2507
      %v2509 = vlaneseq
      %v2510 = vshrl.u32 %v2509, 7
      %v2511 = vsub.s32 %v2508, %v2510
      %v2512 = vrot.slane %v2505, %v2511
      %v2514 = vadd.f32 %v2410, %v2512
      %s2515 = scalar_lea.vmem %s5, 128
      %v2516 = vld [vmem:[%s2515] sm:$0xff]
      %v2517 = vld [vmem:[%s2515 + $0x8] sm:$0xff]
      %v2518 = vld [vmem:[%s2515 + $0x10] sm:$0x3]
      %v2519 = vld [vmem:[%s2515 + $0x18] sm:$0x3]
      %v2520 = vrot.slane %v2094, 4
      %v2521 = vsel %vm841, %v2520, 0
      %v2524 = vsel %vm899, %v2518, 0
      %v2527 = vsel %vm899, %v2519, 0
      %2529 = vmatprep.subr.mxu0 %v2517
      %2530 = vmatpush1.msra.mxu0 %v2516
      %2531 = vmatprep.subr.mxu0 %v2527
      %2532 = vmatpush1.msra.mxu0 %v2524
      %2533 = vmatprep.subr.mxu0 0.0
      %2534 = vmatpush1.msra.mxu0 0.0
      %2535 = vmatprep.subr.mxu0 0.0
      %2536 = vmatpush1.msra.mxu0 0.0
      %2537 = vmatprep.subr.mxu0 0.0
      %2538 = vmatpush1.msra.mxu0 0.0
      %2539 = vmatprep.subr.mxu0 0.0
      %2540 = vmatpush1.msra.mxu0 0.0
      %2541 = vmatprep.subr.mxu0 0.0
      %2542 = vmatpush1.msra.mxu0 0.0
      %2543 = vmatprep.subr.mxu0 0.0
      %2544 = vmatpush1.msra.mxu0 0.0
      %2545 = vmatprep.subr.mxu0 0.0
      %2546 = vmatpush1.msra.mxu0 0.0
      %2547 = vmatprep.subr.mxu0 0.0
      %2548 = vmatpush1.msra.mxu0 0.0
      %2549 = vmatprep.subr.mxu0 0.0
      %2550 = vmatpush1.msra.mxu0 0.0
      %2551 = vmatprep.subr.mxu0 0.0
      %2552 = vmatpush1.msra.mxu0 0.0
      %2553 = vmatprep.subr.mxu0 0.0
      %2554 = vmatpush1.msra.mxu0 0.0
      %2555 = vmatprep.subr.mxu0 0.0
      %2556 = vmatpush1.msra.mxu0 0.0
      %2557 = vmatprep.subr.mxu0 0.0
      %2558 = vmatpush1.msra.mxu0 0.0
      %2559 = vmatprep.subr.mxu0 0.0
      %2560 = vmatpush1.msra.mxu0 0.0
      %2561 = vmatprep.subr.mxu0 0.0
      %2562 = vmatpush1.msra.mxu0 0.0
      %2563 = vmatprep.subr.mxu0 0.0
      %2564 = vmatpush1.msra.mxu0 0.0
      %2565 = vmatprep.subr.mxu0 0.0
      %2566 = vmatpush1.msra.mxu0 0.0
      %2567 = vmatprep.subr.mxu0 0.0
      %2568 = vmatpush1.msra.mxu0 0.0
      %2569 = vmatprep.subr.mxu0 0.0
      %2570 = vmatpush1.msra.mxu0 0.0
      %2571 = vmatprep.subr.mxu0 0.0
      %2572 = vmatpush1.msra.mxu0 0.0
      %2573 = vmatprep.subr.mxu0 0.0
      %2574 = vmatpush1.msra.mxu0 0.0
      %2575 = vmatprep.subr.mxu0 0.0
      %2576 = vmatpush1.msra.mxu0 0.0
      %2577 = vmatprep.subr.mxu0 0.0
      %2578 = vmatpush1.msra.mxu0 0.0
      %2579 = vmatprep.subr.mxu0 0.0
      %2580 = vmatpush1.msra.mxu0 0.0
      %2581 = vmatprep.subr.mxu0 0.0
      %2582 = vmatpush1.msra.mxu0 0.0
      %2583 = vmatprep.subr.mxu0 0.0
      %2584 = vmatpush1.msra.mxu0 0.0
      %2585 = vmatprep.subr.mxu0 0.0
      %2586 = vmatpush1.msra.mxu0 0.0
      %2587 = vmatprep.subr.mxu0 0.0
      %2588 = vmatpush1.msra.mxu0 0.0
      %2589 = vmatprep.subr.mxu0 0.0
      %2590 = vmatpush1.msra.mxu0 0.0
      %2591 = vmatprep.subr.mxu0 0.0
      %2592 = vmatpush1.msra.mxu0 0.0
      %2593 = vmatprep.mubr.f32.mxu0 0.0
      %2594 = vmatmul.mubr.f32.gmra.mrb[0].mxu0 %v2521
      %v2595 = vpop.f32.mrb[0].mxu0
      %v2596 = vadd.f32 0.0, %v2595
      %v2597 = vpop.f32.mrb[0].mxu0
      %v2598 = vadd.f32 0.0, %v2597
      %2599 = vdwg.mxu0
      %v2602 = vcombine.low %v2596, %v2598
      %v2604 = vunpack.c.l.s4 1966171168
      %v2605 = vunpack.c.0.s8 %v2604
      %v2606 = vlaneseq
      %v2607 = vshrl.u32 %v2606, 7
      %v2608 = vsub.s32 %v2605, %v2607
      %v2609 = vrot.slane %v2602, %v2608
      %v2611 = vunpack.c.l.s4 1966171168
      %v2612 = vunpack.c.0.s8 %v2611
      %v2613 = vlaneseq
      %v2614 = vshrl.u32 %v2613, 7
      %v2615 = vsub.s32 %v2612, %v2614
      %v2616 = vrot.slane %v2609, %v2615
      %v2618 = vadd.f32 %v2514, %v2616
      %s2619 = scalar_lea.vmem %s5, 160
      %v2620 = vld [vmem:[%s2619] sm:$0xff]
      %v2621 = vld [vmem:[%s2619 + $0x8] sm:$0xff]
      %v2622 = vld [vmem:[%s2619 + $0x10] sm:$0x3]
      %v2623 = vld [vmem:[%s2619 + $0x18] sm:$0x3]
      %v2624 = vrot.slane %v2094, 7
      %v2625 = vsel %vm841, %v2624, 0
      %v2628 = vsel %vm899, %v2622, 0
      %v2631 = vsel %vm899, %v2623, 0
      %2633 = vmatprep.subr.mxu0 %v2621
      %2634 = vmatpush1.msra.mxu0 %v2620
      %2635 = vmatprep.subr.mxu0 %v2631
      %2636 = vmatpush1.msra.mxu0 %v2628
      %2637 = vmatprep.subr.mxu0 0.0
      %2638 = vmatpush1.msra.mxu0 0.0
      %2639 = vmatprep.subr.mxu0 0.0
      %2640 = vmatpush1.msra.mxu0 0.0
      %2641 = vmatprep.subr.mxu0 0.0
      %2642 = vmatpush1.msra.mxu0 0.0
      %2643 = vmatprep.subr.mxu0 0.0
      %2644 = vmatpush1.msra.mxu0 0.0
      %2645 = vmatprep.subr.mxu0 0.0
      %2646 = vmatpush1.msra.mxu0 0.0
      %2647 = vmatprep.subr.mxu0 0.0
      %2648 = vmatpush1.msra.mxu0 0.0
      %2649 = vmatprep.subr.mxu0 0.0
      %2650 = vmatpush1.msra.mxu0 0.0
      %2651 = vmatprep.subr.mxu0 0.0
      %2652 = vmatpush1.msra.mxu0 0.0
      %2653 = vmatprep.subr.mxu0 0.0
      %2654 = vmatpush1.msra.mxu0 0.0
      %2655 = vmatprep.subr.mxu0 0.0
      %2656 = vmatpush1.msra.mxu0 0.0
      %2657 = vmatprep.subr.mxu0 0.0
      %2658 = vmatpush1.msra.mxu0 0.0
      %2659 = vmatprep.subr.mxu0 0.0
      %2660 = vmatpush1.msra.mxu0 0.0
      %2661 = vmatprep.subr.mxu0 0.0
      %2662 = vmatpush1.msra.mxu0 0.0
      %2663 = vmatprep.subr.mxu0 0.0
      %2664 = vmatpush1.msra.mxu0 0.0
      %2665 = vmatprep.subr.mxu0 0.0
      %2666 = vmatpush1.msra.mxu0 0.0
      %2667 = vmatprep.subr.mxu0 0.0
      %2668 = vmatpush1.msra.mxu0 0.0
      %2669 = vmatprep.subr.mxu0 0.0
      %2670 = vmatpush1.msra.mxu0 0.0
      %2671 = vmatprep.subr.mxu0 0.0
      %2672 = vmatpush1.msra.mxu0 0.0
      %2673 = vmatprep.subr.mxu0 0.0
      %2674 = vmatpush1.msra.mxu0 0.0
      %2675 = vmatprep.subr.mxu0 0.0
      %2676 = vmatpush1.msra.mxu0 0.0
      %2677 = vmatprep.subr.mxu0 0.0
      %2678 = vmatpush1.msra.mxu0 0.0
      %2679 = vmatprep.subr.mxu0 0.0
      %2680 = vmatpush1.msra.mxu0 0.0
      %2681 = vmatprep.subr.mxu0 0.0
      %2682 = vmatpush1.msra.mxu0 0.0
      %2683 = vmatprep.subr.mxu0 0.0
      %2684 = vmatpush1.msra.mxu0 0.0
      %2685 = vmatprep.subr.mxu0 0.0
      %2686 = vmatpush1.msra.mxu0 0.0
      %2687 = vmatprep.subr.mxu0 0.0
      %2688 = vmatpush1.msra.mxu0 0.0
      %2689 = vmatprep.subr.mxu0 0.0
      %2690 = vmatpush1.msra.mxu0 0.0
      %2691 = vmatprep.subr.mxu0 0.0
      %2692 = vmatpush1.msra.mxu0 0.0
      %2693 = vmatprep.subr.mxu0 0.0
      %2694 = vmatpush1.msra.mxu0 0.0
      %2695 = vmatprep.subr.mxu0 0.0
      %2696 = vmatpush1.msra.mxu0 0.0
      %2697 = vmatprep.mubr.f32.mxu0 0.0
      %2698 = vmatmul.mubr.f32.gmra.mrb[0].mxu0 %v2625
      %v2699 = vpop.f32.mrb[0].mxu0
      %v2700 = vadd.f32 0.0, %v2699
      %v2701 = vpop.f32.mrb[0].mxu0
      %v2702 = vadd.f32 0.0, %v2701
      %2703 = vdwg.mxu0
      %v2706 = vcombine.low %v2700, %v2702
      %v2708 = vunpack.c.l.s4 1966171168
      %v2709 = vunpack.c.0.s8 %v2708
      %v2710 = vlaneseq
      %v2711 = vshrl.u32 %v2710, 7
      %v2712 = vsub.s32 %v2709, %v2711
      %v2713 = vrot.slane %v2706, %v2712
      %v2715 = vunpack.c.l.s4 1966171168
      %v2716 = vunpack.c.0.s8 %v2715
      %v2717 = vlaneseq
      %v2718 = vshrl.u32 %v2717, 7
      %v2719 = vsub.s32 %v2716, %v2718
      %v2720 = vrot.slane %v2713, %v2719
      %v2722 = vadd.f32 %v2618, %v2720
      %s2723 = scalar_lea.vmem %s5, 192
      %v2724 = vld [vmem:[%s2723] sm:$0xff]
      %v2725 = vld [vmem:[%s2723 + $0x8] sm:$0xff]
      %v2726 = vld [vmem:[%s2723 + $0x10] sm:$0x3]
      %v2727 = vld [vmem:[%s2723 + $0x18] sm:$0x3]
      %v2729 = vsel %vm841, %v2095, 0
      %v2732 = vsel %vm899, %v2726, 0
      %v2735 = vsel %vm899, %v2727, 0
      %2737 = vmatprep.subr.mxu0 %v2725
      %2738 = vmatpush1.msra.mxu0 %v2724
      %2739 = vmatprep.subr.mxu0 %v2735
      %2740 = vmatpush1.msra.mxu0 %v2732
      %2741 = vmatprep.subr.mxu0 0.0
      %2742 = vmatpush1.msra.mxu0 0.0
      %2743 = vmatprep.subr.mxu0 0.0
      %2744 = vmatpush1.msra.mxu0 0.0
      %2745 = vmatprep.subr.mxu0 0.0
      %2746 = vmatpush1.msra.mxu0 0.0
      %2747 = vmatprep.subr.mxu0 0.0
      %2748 = vmatpush1.msra.mxu0 0.0
      %2749 = vmatprep.subr.mxu0 0.0
      %2750 = vmatpush1.msra.mxu0 0.0
      %2751 = vmatprep.subr.mxu0 0.0
      %2752 = vmatpush1.msra.mxu0 0.0
      %2753 = vmatprep.subr.mxu0 0.0
      %2754 = vmatpush1.msra.mxu0 0.0
      %2755 = vmatprep.subr.mxu0 0.0
      %2756 = vmatpush1.msra.mxu0 0.0
      %2757 = vmatprep.subr.mxu0 0.0
      %2758 = vmatpush1.msra.mxu0 0.0
      %2759 = vmatprep.subr.mxu0 0.0
      %2760 = vmatpush1.msra.mxu0 0.0
      %2761 = vmatprep.subr.mxu0 0.0
      %2762 = vmatpush1.msra.mxu0 0.0
      %2763 = vmatprep.subr.mxu0 0.0
      %2764 = vmatpush1.msra.mxu0 0.0
      %2765 = vmatprep.subr.mxu0 0.0
      %2766 = vmatpush1.msra.mxu0 0.0
      %2767 = vmatprep.subr.mxu0 0.0
      %2768 = vmatpush1.msra.mxu0 0.0
      %2769 = vmatprep.subr.mxu0 0.0
      %2770 = vmatpush1.msra.mxu0 0.0
      %2771 = vmatprep.subr.mxu0 0.0
      %2772 = vmatpush1.msra.mxu0 0.0
      %2773 = vmatprep.subr.mxu0 0.0
      %2774 = vmatpush1.msra.mxu0 0.0
      %2775 = vmatprep.subr.mxu0 0.0
      %2776 = vmatpush1.msra.mxu0 0.0
      %2777 = vmatprep.subr.mxu0 0.0
      %2778 = vmatpush1.msra.mxu0 0.0
      %2779 = vmatprep.subr.mxu0 0.0
      %2780 = vmatpush1.msra.mxu0 0.0
      %2781 = vmatprep.subr.mxu0 0.0
      %2782 = vmatpush1.msra.mxu0 0.0
      %2783 = vmatprep.subr.mxu0 0.0
      %2784 = vmatpush1.msra.mxu0 0.0
      %2785 = vmatprep.subr.mxu0 0.0
      %2786 = vmatpush1.msra.mxu0 0.0
      %2787 = vmatprep.subr.mxu0 0.0
      %2788 = vmatpush1.msra.mxu0 0.0
      %2789 = vmatprep.subr.mxu0 0.0
      %2790 = vmatpush1.msra.mxu0 0.0
      %2791 = vmatprep.subr.mxu0 0.0
      %2792 = vmatpush1.msra.mxu0 0.0
      %2793 = vmatprep.subr.mxu0 0.0
      %2794 = vmatpush1.msra.mxu0 0.0
      %2795 = vmatprep.subr.mxu0 0.0
      %2796 = vmatpush1.msra.mxu0 0.0
      %2797 = vmatprep.subr.mxu0 0.0
      %2798 = vmatpush1.msra.mxu0 0.0
      %2799 = vmatprep.subr.mxu0 0.0
      %2800 = vmatpush1.msra.mxu0 0.0
      %2801 = vmatprep.mubr.f32.mxu0 0.0
      %2802 = vmatmul.mubr.f32.gmra.mrb[0].mxu0 %v2729
      %v2803 = vpop.f32.mrb[0].mxu0
      %v2804 = vadd.f32 0.0, %v2803
      %v2805 = vpop.f32.mrb[0].mxu0
      %v2806 = vadd.f32 0.0, %v2805
      %2807 = vdwg.mxu0
      %v2810 = vcombine.low %v2804, %v2806
      %v2812 = vunpack.c.l.s4 1966171168
      %v2813 = vunpack.c.0.s8 %v2812
      %v2814 = vlaneseq
      %v2815 = vshrl.u32 %v2814, 7
      %v2816 = vsub.s32 %v2813, %v2815
      %v2817 = vrot.slane %v2810, %v2816
      %v2819 = vunpack.c.l.s4 1966171168
      %v2820 = vunpack.c.0.s8 %v2819
      %v2821 = vlaneseq
      %v2822 = vshrl.u32 %v2821, 7
      %v2823 = vsub.s32 %v2820, %v2822
      %v2824 = vrot.slane %v2817, %v2823
      %v2826 = vadd.f32 %v2722, %v2824
      %s2827 = scalar_lea.vmem %s5, 224
      %v2828 = vld [vmem:[%s2827] sm:$0xff]
      %v2829 = vld [vmem:[%s2827 + $0x8] sm:$0xff]
      %v2830 = vld [vmem:[%s2827 + $0x10] sm:$0x3]
      %v2831 = vld [vmem:[%s2827 + $0x18] sm:$0x3]
      %v2832 = vrot.slane %v2095, 1
      %v2833 = vsel %vm841, %v2832, 0
      %v2836 = vsel %vm899, %v2830, 0
      %v2839 = vsel %vm899, %v2831, 0
      %2841 = vmatprep.subr.mxu0 %v2829
      %2842 = vmatpush1.msra.mxu0 %v2828
      %2843 = vmatprep.subr.mxu0 %v2839
      %2844 = vmatpush1.msra.mxu0 %v2836
      %2845 = vmatprep.subr.mxu0 0.0
      %2846 = vmatpush1.msra.mxu0 0.0
      %2847 = vmatprep.subr.mxu0 0.0
      %2848 = vmatpush1.msra.mxu0 0.0
      %2849 = vmatprep.subr.mxu0 0.0
      %2850 = vmatpush1.msra.mxu0 0.0
      %2851 = vmatprep.subr.mxu0 0.0
      %2852 = vmatpush1.msra.mxu0 0.0
      %2853 = vmatprep.subr.mxu0 0.0
      %2854 = vmatpush1.msra.mxu0 0.0
      %2855 = vmatprep.subr.mxu0 0.0
      %2856 = vmatpush1.msra.mxu0 0.0
      %2857 = vmatprep.subr.mxu0 0.0
      %2858 = vmatpush1.msra.mxu0 0.0
      %2859 = vmatprep.subr.mxu0 0.0
      %2860 = vmatpush1.msra.mxu0 0.0
      %2861 = vmatprep.subr.mxu0 0.0
      %2862 = vmatpush1.msra.mxu0 0.0
      %2863 = vmatprep.subr.mxu0 0.0
      %2864 = vmatpush1.msra.mxu0 0.0
      %2865 = vmatprep.subr.mxu0 0.0
      %2866 = vmatpush1.msra.mxu0 0.0
      %2867 = vmatprep.subr.mxu0 0.0
      %2868 = vmatpush1.msra.mxu0 0.0
      %2869 = vmatprep.subr.mxu0 0.0
      %2870 = vmatpush1.msra.mxu0 0.0
      %2871 = vmatprep.subr.mxu0 0.0
      %2872 = vmatpush1.msra.mxu0 0.0
      %2873 = vmatprep.subr.mxu0 0.0
      %2874 = vmatpush1.msra.mxu0 0.0
      %2875 = vmatprep.subr.mxu0 0.0
      %2876 = vmatpush1.msra.mxu0 0.0
      %2877 = vmatprep.subr.mxu0 0.0
      %2878 = vmatpush1.msra.mxu0 0.0
      %2879 = vmatprep.subr.mxu0 0.0
      %2880 = vmatpush1.msra.mxu0 0.0
      %2881 = vmatprep.subr.mxu0 0.0
      %2882 = vmatpush1.msra.mxu0 0.0
      %2883 = vmatprep.subr.mxu0 0.0
      %2884 = vmatpush1.msra.mxu0 0.0
      %2885 = vmatprep.subr.mxu0 0.0
      %2886 = vmatpush1.msra.mxu0 0.0
      %2887 = vmatprep.subr.mxu0 0.0
      %2888 = vmatpush1.msra.mxu0 0.0
      %2889 = vmatprep.subr.mxu0 0.0
      %2890 = vmatpush1.msra.mxu0 0.0
      %2891 = vmatprep.subr.mxu0 0.0
      %2892 = vmatpush1.msra.mxu0 0.0
      %2893 = vmatprep.subr.mxu0 0.0
      %2894 = vmatpush1.msra.mxu0 0.0
      %2895 = vmatprep.subr.mxu0 0.0
      %2896 = vmatpush1.msra.mxu0 0.0
      %2897 = vmatprep.subr.mxu0 0.0
      %2898 = vmatpush1.msra.mxu0 0.0
      %2899 = vmatprep.subr.mxu0 0.0
      %2900 = vmatpush1.msra.mxu0 0.0
      %2901 = vmatprep.subr.mxu0 0.0
      %2902 = vmatpush1.msra.mxu0 0.0
      %2903 = vmatprep.subr.mxu0 0.0
      %2904 = vmatpush1.msra.mxu0 0.0
      %2905 = vmatprep.mubr.f32.mxu0 0.0
      %2906 = vmatmul.mubr.f32.gmra.mrb[0].mxu0 %v2833
      %v2907 = vpop.f32.mrb[0].mxu0
      %v2908 = vadd.f32 0.0, %v2907
      %v2909 = vpop.f32.mrb[0].mxu0
      %v2910 = vadd.f32 0.0, %v2909
      %2911 = vdwg.mxu0
      %v2914 = vcombine.low %v2908, %v2910
      %v2916 = vunpack.c.l.s4 1966171168
      %v2917 = vunpack.c.0.s8 %v2916
      %v2918 = vlaneseq
      %v2919 = vshrl.u32 %v2918, 7
      %v2920 = vsub.s32 %v2917, %v2919
      %v2921 = vrot.slane %v2914, %v2920
      %v2923 = vunpack.c.l.s4 1966171168
      %v2924 = vunpack.c.0.s8 %v2923
      %v2925 = vlaneseq
      %v2926 = vshrl.u32 %v2925, 7
      %v2927 = vsub.s32 %v2924, %v2926
      %v2928 = vrot.slane %v2921, %v2927
      %v2930 = vadd.f32 %v2826, %v2928
      %s2931 = scalar_lea.vmem %s5, 256
      %v2932 = vld [vmem:[%s2931] sm:$0xff]
      %v2933 = vld [vmem:[%s2931 + $0x8] sm:$0xff]
      %v2934 = vld [vmem:[%s2931 + $0x10] sm:$0x3]
      %v2935 = vld [vmem:[%s2931 + $0x18] sm:$0x3]
      %v2936 = vrot.slane %v2095, 2
      %v2937 = vsel %vm841, %v2936, 0
      %v2940 = vsel %vm899, %v2934, 0
      %v2943 = vsel %vm899, %v2935, 0
      %2945 = vmatprep.subr.mxu0 %v2933
      %2946 = vmatpush1.msra.mxu0 %v2932
      %2947 = vmatprep.subr.mxu0 %v2943
      %2948 = vmatpush1.msra.mxu0 %v2940
      %2949 = vmatprep.subr.mxu0 0.0
      %2950 = vmatpush1.msra.mxu0 0.0
      %2951 = vmatprep.subr.mxu0 0.0
      %2952 = vmatpush1.msra.mxu0 0.0
      %2953 = vmatprep.subr.mxu0 0.0
      %2954 = vmatpush1.msra.mxu0 0.0
      %2955 = vmatprep.subr.mxu0 0.0
      %2956 = vmatpush1.msra.mxu0 0.0
      %2957 = vmatprep.subr.mxu0 0.0
      %2958 = vmatpush1.msra.mxu0 0.0
      %2959 = vmatprep.subr.mxu0 0.0
      %2960 = vmatpush1.msra.mxu0 0.0
      %2961 = vmatprep.subr.mxu0 0.0
      %2962 = vmatpush1.msra.mxu0 0.0
      %2963 = vmatprep.subr.mxu0 0.0
      %2964 = vmatpush1.msra.mxu0 0.0
      %2965 = vmatprep.subr.mxu0 0.0
      %2966 = vmatpush1.msra.mxu0 0.0
      %2967 = vmatprep.subr.mxu0 0.0
      %2968 = vmatpush1.msra.mxu0 0.0
      %2969 = vmatprep.subr.mxu0 0.0
      %2970 = vmatpush1.msra.mxu0 0.0
      %2971 = vmatprep.subr.mxu0 0.0
      %2972 = vmatpush1.msra.mxu0 0.0
      %2973 = vmatprep.subr.mxu0 0.0
      %2974 = vmatpush1.msra.mxu0 0.0
      %2975 = vmatprep.subr.mxu0 0.0
      %2976 = vmatpush1.msra.mxu0 0.0
      %2977 = vmatprep.subr.mxu0 0.0
      %2978 = vmatpush1.msra.mxu0 0.0
      %2979 = vmatprep.subr.mxu0 0.0
      %2980 = vmatpush1.msra.mxu0 0.0
      %2981 = vmatprep.subr.mxu0 0.0
      %2982 = vmatpush1.msra.mxu0 0.0
      %2983 = vmatprep.subr.mxu0 0.0
      %2984 = vmatpush1.msra.mxu0 0.0
      %2985 = vmatprep.subr.mxu0 0.0
      %2986 = vmatpush1.msra.mxu0 0.0
      %2987 = vmatprep.subr.mxu0 0.0
      %2988 = vmatpush1.msra.mxu0 0.0
      %2989 = vmatprep.subr.mxu0 0.0
      %2990 = vmatpush1.msra.mxu0 0.0
      %2991 = vmatprep.subr.mxu0 0.0
      %2992 = vmatpush1.msra.mxu0 0.0
      %2993 = vmatprep.subr.mxu0 0.0
      %2994 = vmatpush1.msra.mxu0 0.0
      %2995 = vmatprep.subr.mxu0 0.0
      %2996 = vmatpush1.msra.mxu0 0.0
      %2997 = vmatprep.subr.mxu0 0.0
      %2998 = vmatpush1.msra.mxu0 0.0
      %2999 = vmatprep.subr.mxu0 0.0
      %3000 = vmatpush1.msra.mxu0 0.0
      %3001 = vmatprep.subr.mxu0 0.0
      %3002 = vmatpush1.msra.mxu0 0.0
      %3003 = vmatprep.subr.mxu0 0.0
      %3004 = vmatpush1.msra.mxu0 0.0
      %3005 = vmatprep.subr.mxu0 0.0
      %3006 = vmatpush1.msra.mxu0 0.0
      %3007 = vmatprep.subr.mxu0 0.0
      %3008 = vmatpush1.msra.mxu0 0.0
      %3009 = vmatprep.mubr.f32.mxu0 0.0
      %3010 = vmatmul.mubr.f32.gmra.mrb[0].mxu0 %v2937
      %v3011 = vpop.f32.mrb[0].mxu0
      %v3012 = vadd.f32 0.0, %v3011
      %v3013 = vpop.f32.mrb[0].mxu0
      %v3014 = vadd.f32 0.0, %v3013
      %3015 = vdwg.mxu0
      %v3018 = vcombine.low %v3012, %v3014
      %v3020 = vunpack.c.l.s4 1966171168
      %v3021 = vunpack.c.0.s8 %v3020
      %v3022 = vlaneseq
      %v3023 = vshrl.u32 %v3022, 7
      %v3024 = vsub.s32 %v3021, %v3023
      %v3025 = vrot.slane %v3018, %v3024
      %v3027 = vunpack.c.l.s4 1966171168
      %v3028 = vunpack.c.0.s8 %v3027
      %v3029 = vlaneseq
      %v3030 = vshrl.u32 %v3029, 7
      %v3031 = vsub.s32 %v3028, %v3030
      %v3032 = vrot.slane %v3025, %v3031
      %v3034 = vadd.f32 %v2930, %v3032
      %s3035 = scalar_lea.vmem %s5, 288
      %v3036 = vld [vmem:[%s3035] sm:$0xff]
      %v3037 = vld [vmem:[%s3035 + $0x8] sm:$0xff]
      %v3038 = vld [vmem:[%s3035 + $0x10] sm:$0x3]
      %v3039 = vld [vmem:[%s3035 + $0x18] sm:$0x3]
      %v3040 = vrot.slane %v2095, 3
      %v3041 = vsel %vm841, %v3040, 0
      %v3044 = vsel %vm899, %v3038, 0
      %v3047 = vsel %vm899, %v3039, 0
      %3049 = vmatprep.subr.mxu0 %v3037
      %3050 = vmatpush1.msra.mxu0 %v3036
      %3051 = vmatprep.subr.mxu0 %v3047
      %3052 = vmatpush1.msra.mxu0 %v3044
      %3053 = vmatprep.subr.mxu0 0.0
      %3054 = vmatpush1.msra.mxu0 0.0
      %3055 = vmatprep.subr.mxu0 0.0
      %3056 = vmatpush1.msra.mxu0 0.0
      %3057 = vmatprep.subr.mxu0 0.0
      %3058 = vmatpush1.msra.mxu0 0.0
      %3059 = vmatprep.subr.mxu0 0.0
      %3060 = vmatpush1.msra.mxu0 0.0
      %3061 = vmatprep.subr.mxu0 0.0
      %3062 = vmatpush1.msra.mxu0 0.0
      %3063 = vmatprep.subr.mxu0 0.0
      %3064 = vmatpush1.msra.mxu0 0.0
      %3065 = vmatprep.subr.mxu0 0.0
      %3066 = vmatpush1.msra.mxu0 0.0
      %3067 = vmatprep.subr.mxu0 0.0
      %3068 = vmatpush1.msra.mxu0 0.0
      %3069 = vmatprep.subr.mxu0 0.0
      %3070 = vmatpush1.msra.mxu0 0.0
      %3071 = vmatprep.subr.mxu0 0.0
      %3072 = vmatpush1.msra.mxu0 0.0
      %3073 = vmatprep.subr.mxu0 0.0
      %3074 = vmatpush1.msra.mxu0 0.0
      %3075 = vmatprep.subr.mxu0 0.0
      %3076 = vmatpush1.msra.mxu0 0.0
      %3077 = vmatprep.subr.mxu0 0.0
      %3078 = vmatpush1.msra.mxu0 0.0
      %3079 = vmatprep.subr.mxu0 0.0
      %3080 = vmatpush1.msra.mxu0 0.0
      %3081 = vmatprep.subr.mxu0 0.0
      %3082 = vmatpush1.msra.mxu0 0.0
      %3083 = vmatprep.subr.mxu0 0.0
      %3084 = vmatpush1.msra.mxu0 0.0
      %3085 = vmatprep.subr.mxu0 0.0
      %3086 = vmatpush1.msra.mxu0 0.0
      %3087 = vmatprep.subr.mxu0 0.0
      %3088 = vmatpush1.msra.mxu0 0.0
      %3089 = vmatprep.subr.mxu0 0.0
      %3090 = vmatpush1.msra.mxu0 0.0
      %3091 = vmatprep.subr.mxu0 0.0
      %3092 = vmatpush1.msra.mxu0 0.0
      %3093 = vmatprep.subr.mxu0 0.0
      %3094 = vmatpush1.msra.mxu0 0.0
      %3095 = vmatprep.subr.mxu0 0.0
      %3096 = vmatpush1.msra.mxu0 0.0
      %3097 = vmatprep.subr.mxu0 0.0
      %3098 = vmatpush1.msra.mxu0 0.0
      %3099 = vmatprep.subr.mxu0 0.0
      %3100 = vmatpush1.msra.mxu0 0.0
      %3101 = vmatprep.subr.mxu0 0.0
      %3102 = vmatpush1.msra.mxu0 0.0
      %3103 = vmatprep.subr.mxu0 0.0
      %3104 = vmatpush1.msra.mxu0 0.0
      %3105 = vmatprep.subr.mxu0 0.0
      %3106 = vmatpush1.msra.mxu0 0.0
      %3107 = vmatprep.subr.mxu0 0.0
      %3108 = vmatpush1.msra.mxu0 0.0
      %3109 = vmatprep.subr.mxu0 0.0
      %3110 = vmatpush1.msra.mxu0 0.0
      %3111 = vmatprep.subr.mxu0 0.0
      %3112 = vmatpush1.msra.mxu0 0.0
      %3113 = vmatprep.mubr.f32.mxu0 0.0
      %3114 = vmatmul.mubr.f32.gmra.mrb[0].mxu0 %v3041
      %v3115 = vpop.f32.mrb[0].mxu0
      %v3116 = vadd.f32 0.0, %v3115
      %v3117 = vpop.f32.mrb[0].mxu0
      %v3118 = vadd.f32 0.0, %v3117
      %3119 = vdwg.mxu0
      %v3122 = vcombine.low %v3116, %v3118
      %v3124 = vunpack.c.l.s4 1966171168
      %v3125 = vunpack.c.0.s8 %v3124
      %v3126 = vlaneseq
      %v3127 = vshrl.u32 %v3126, 7
      %v3128 = vsub.s32 %v3125, %v3127
      %v3129 = vrot.slane %v3122, %v3128
      %v3131 = vunpack.c.l.s4 1966171168
      %v3132 = vunpack.c.0.s8 %v3131
      %v3133 = vlaneseq
      %v3134 = vshrl.u32 %v3133, 7
      %v3135 = vsub.s32 %v3132, %v3134
      %v3136 = vrot.slane %v3129, %v3135
      %v3138 = vadd.f32 %v3034, %v3136
      %s3139 = scalar_lea.vmem %s5, 320
      %v3140 = vld [vmem:[%s3139] sm:$0xff]
      %v3141 = vld [vmem:[%s3139 + $0x8] sm:$0xff]
      %v3142 = vld [vmem:[%s3139 + $0x10] sm:$0x3]
      %v3143 = vld [vmem:[%s3139 + $0x18] sm:$0x3]
      %v3144 = vrot.slane %v2095, 6
      %v3145 = vsel %vm841, %v3144, 0
      %v3148 = vsel %vm899, %v3142, 0
      %v3151 = vsel %vm899, %v3143, 0
      %3153 = vmatprep.subr.mxu0 %v3141
      %3154 = vmatpush1.msra.mxu0 %v3140
      %3155 = vmatprep.subr.mxu0 %v3151
      %3156 = vmatpush1.msra.mxu0 %v3148
      %3157 = vmatprep.subr.mxu0 0.0
      %3158 = vmatpush1.msra.mxu0 0.0
      %3159 = vmatprep.subr.mxu0 0.0
      %3160 = vmatpush1.msra.mxu0 0.0
      %3161 = vmatprep.subr.mxu0 0.0
      %3162 = vmatpush1.msra.mxu0 0.0
      %3163 = vmatprep.subr.mxu0 0.0
      %3164 = vmatpush1.msra.mxu0 0.0
      %3165 = vmatprep.subr.mxu0 0.0
      %3166 = vmatpush1.msra.mxu0 0.0
      %3167 = vmatprep.subr.mxu0 0.0
      %3168 = vmatpush1.msra.mxu0 0.0
      %3169 = vmatprep.subr.mxu0 0.0
      %3170 = vmatpush1.msra.mxu0 0.0
      %3171 = vmatprep.subr.mxu0 0.0
      %3172 = vmatpush1.msra.mxu0 0.0
      %3173 = vmatprep.subr.mxu0 0.0
      %3174 = vmatpush1.msra.mxu0 0.0
      %3175 = vmatprep.subr.mxu0 0.0
      %3176 = vmatpush1.msra.mxu0 0.0
      %3177 = vmatprep.subr.mxu0 0.0
      %3178 = vmatpush1.msra.mxu0 0.0
      %3179 = vmatprep.subr.mxu0 0.0
      %3180 = vmatpush1.msra.mxu0 0.0
      %3181 = vmatprep.subr.mxu0 0.0
      %3182 = vmatpush1.msra.mxu0 0.0
      %3183 = vmatprep.subr.mxu0 0.0
      %3184 = vmatpush1.msra.mxu0 0.0
      %3185 = vmatprep.subr.mxu0 0.0
      %3186 = vmatpush1.msra.mxu0 0.0
      %3187 = vmatprep.subr.mxu0 0.0
      %3188 = vmatpush1.msra.mxu0 0.0
      %3189 = vmatprep.subr.mxu0 0.0
      %3190 = vmatpush1.msra.mxu0 0.0
      %3191 = vmatprep.subr.mxu0 0.0
      %3192 = vmatpush1.msra.mxu0 0.0
      %3193 = vmatprep.subr.mxu0 0.0
      %3194 = vmatpush1.msra.mxu0 0.0
      %3195 = vmatprep.subr.mxu0 0.0
      %3196 = vmatpush1.msra.mxu0 0.0
      %3197 = vmatprep.subr.mxu0 0.0
      %3198 = vmatpush1.msra.mxu0 0.0
      %3199 = vmatprep.subr.mxu0 0.0
      %3200 = vmatpush1.msra.mxu0 0.0
      %3201 = vmatprep.subr.mxu0 0.0
      %3202 = vmatpush1.msra.mxu0 0.0
      %3203 = vmatprep.subr.mxu0 0.0
      %3204 = vmatpush1.msra.mxu0 0.0
      %3205 = vmatprep.subr.mxu0 0.0
      %3206 = vmatpush1.msra.mxu0 0.0
      %3207 = vmatprep.subr.mxu0 0.0
      %3208 = vmatpush1.msra.mxu0 0.0
      %3209 = vmatprep.subr.mxu0 0.0
      %3210 = vmatpush1.msra.mxu0 0.0
      %3211 = vmatprep.subr.mxu0 0.0
      %3212 = vmatpush1.msra.mxu0 0.0
      %3213 = vmatprep.subr.mxu0 0.0
      %3214 = vmatpush1.msra.mxu0 0.0
      %3215 = vmatprep.subr.mxu0 0.0
      %3216 = vmatpush1.msra.mxu0 0.0
      %3217 = vmatprep.mubr.f32.mxu0 0.0
      %3218 = vmatmul.mubr.f32.gmra.mrb[0].mxu0 %v3145
      %v3219 = vpop.f32.mrb[0].mxu0
      %v3220 = vadd.f32 0.0, %v3219
      %v3221 = vpop.f32.mrb[0].mxu0
      %v3222 = vadd.f32 0.0, %v3221
      %3223 = vdwg.mxu0
      %v3226 = vcombine.low %v3220, %v3222
      %v3228 = vunpack.c.l.s4 1966171168
      %v3229 = vunpack.c.0.s8 %v3228
      %v3230 = vlaneseq
      %v3231 = vshrl.u32 %v3230, 7
      %v3232 = vsub.s32 %v3229, %v3231
      %v3233 = vrot.slane %v3226, %v3232
      %v3235 = vunpack.c.l.s4 1966171168
      %v3236 = vunpack.c.0.s8 %v3235
      %v3237 = vlaneseq
      %v3238 = vshrl.u32 %v3237, 7
      %v3239 = vsub.s32 %v3236, %v3238
      %v3240 = vrot.slane %v3233, %v3239
      %v3242 = vadd.f32 %v3138, %v3240
      %s3243 = scalar_lea.vmem %s5, 352
      %v3244 = vld [vmem:[%s3243] sm:$0xff]
      %v3245 = vld [vmem:[%s3243 + $0x8] sm:$0xff]
      %v3246 = vld [vmem:[%s3243 + $0x10] sm:$0x3]
      %v3247 = vld [vmem:[%s3243 + $0x18] sm:$0x3]
      %v3248 = vrot.slane %v2095, 7
      %v3249 = vsel %vm841, %v3248, 0
      %v3252 = vsel %vm899, %v3246, 0
      %v3255 = vsel %vm899, %v3247, 0
      %3257 = vmatprep.subr.mxu0 %v3245
      %3258 = vmatpush1.msra.mxu0 %v3244
      %3259 = vmatprep.subr.mxu0 %v3255
      %3260 = vmatpush1.msra.mxu0 %v3252
      %3261 = vmatprep.subr.mxu0 0.0
      %3262 = vmatpush1.msra.mxu0 0.0
      %3263 = vmatprep.subr.mxu0 0.0
      %3264 = vmatpush1.msra.mxu0 0.0
      %3265 = vmatprep.subr.mxu0 0.0
      %3266 = vmatpush1.msra.mxu0 0.0
      %3267 = vmatprep.subr.mxu0 0.0
      %3268 = vmatpush1.msra.mxu0 0.0
      %3269 = vmatprep.subr.mxu0 0.0
      %3270 = vmatpush1.msra.mxu0 0.0
      %3271 = vmatprep.subr.mxu0 0.0
      %3272 = vmatpush1.msra.mxu0 0.0
      %3273 = vmatprep.subr.mxu0 0.0
      %3274 = vmatpush1.msra.mxu0 0.0
      %3275 = vmatprep.subr.mxu0 0.0
      %3276 = vmatpush1.msra.mxu0 0.0
      %3277 = vmatprep.subr.mxu0 0.0
      %3278 = vmatpush1.msra.mxu0 0.0
      %3279 = vmatprep.subr.mxu0 0.0
      %3280 = vmatpush1.msra.mxu0 0.0
      %3281 = vmatprep.subr.mxu0 0.0
      %3282 = vmatpush1.msra.mxu0 0.0
      %3283 = vmatprep.subr.mxu0 0.0
      %3284 = vmatpush1.msra.mxu0 0.0
      %3285 = vmatprep.subr.mxu0 0.0
      %3286 = vmatpush1.msra.mxu0 0.0
      %3287 = vmatprep.subr.mxu0 0.0
      %3288 = vmatpush1.msra.mxu0 0.0
      %3289 = vmatprep.subr.mxu0 0.0
      %3290 = vmatpush1.msra.mxu0 0.0
      %3291 = vmatprep.subr.mxu0 0.0
      %3292 = vmatpush1.msra.mxu0 0.0
      %3293 = vmatprep.subr.mxu0 0.0
      %3294 = vmatpush1.msra.mxu0 0.0
      %3295 = vmatprep.subr.mxu0 0.0
      %3296 = vmatpush1.msra.mxu0 0.0
      %3297 = vmatprep.subr.mxu0 0.0
      %3298 = vmatpush1.msra.mxu0 0.0
      %3299 = vmatprep.subr.mxu0 0.0
      %3300 = vmatpush1.msra.mxu0 0.0
      %3301 = vmatprep.subr.mxu0 0.0
      %3302 = vmatpush1.msra.mxu0 0.0
      %3303 = vmatprep.subr.mxu0 0.0
      %3304 = vmatpush1.msra.mxu0 0.0
      %3305 = vmatprep.subr.mxu0 0.0
      %3306 = vmatpush1.msra.mxu0 0.0
      %3307 = vmatprep.subr.mxu0 0.0
      %3308 = vmatpush1.msra.mxu0 0.0
      %3309 = vmatprep.subr.mxu0 0.0
      %3310 = vmatpush1.msra.mxu0 0.0
      %3311 = vmatprep.subr.mxu0 0.0
      %3312 = vmatpush1.msra.mxu0 0.0
      %3313 = vmatprep.subr.mxu0 0.0
      %3314 = vmatpush1.msra.mxu0 0.0
      %3315 = vmatprep.subr.mxu0 0.0
      %3316 = vmatpush1.msra.mxu0 0.0
      %3317 = vmatprep.subr.mxu0 0.0
      %3318 = vmatpush1.msra.mxu0 0.0
      %3319 = vmatprep.subr.mxu0 0.0
      %3320 = vmatpush1.msra.mxu0 0.0
      %3321 = vmatprep.mubr.f32.mxu0 0.0
      %3322 = vmatmul.mubr.f32.gmra.mrb[0].mxu0 %v3249
      %v3323 = vpop.f32.mrb[0].mxu0
      %v3324 = vadd.f32 0.0, %v3323
      %v3325 = vpop.f32.mrb[0].mxu0
      %v3326 = vadd.f32 0.0, %v3325
      %3327 = vdwg.mxu0
      %v3330 = vcombine.low %v3324, %v3326
      %v3332 = vunpack.c.l.s4 1966171168
      %v3333 = vunpack.c.0.s8 %v3332
      %v3334 = vlaneseq
      %v3335 = vshrl.u32 %v3334, 7
      %v3336 = vsub.s32 %v3333, %v3335
      %v3337 = vrot.slane %v3330, %v3336
      %v3339 = vunpack.c.l.s4 1966171168
      %v3340 = vunpack.c.0.s8 %v3339
      %v3341 = vlaneseq
      %v3342 = vshrl.u32 %v3341, 7
      %v3343 = vsub.s32 %v3340, %v3342
      %v3344 = vrot.slane %v3337, %v3343
      %v3346 = vadd.f32 %v3242, %v3344
      %s3347 = scalar_lea.vmem %s5, 384
      %v3348 = vld [vmem:[%s3347] sm:$0xff]
      %v3349 = vld [vmem:[%s3347 + $0x8] sm:$0xff]
      %v3350 = vld [vmem:[%s3347 + $0x10] sm:$0x3]
      %v3351 = vld [vmem:[%s3347 + $0x18] sm:$0x3]
      %v3353 = vsel %vm841, %v2096, 0
      %v3356 = vsel %vm899, %v3350, 0
      %v3359 = vsel %vm899, %v3351, 0
      %3361 = vmatprep.subr.mxu0 %v3349
      %3362 = vmatpush1.msra.mxu0 %v3348
      %3363 = vmatprep.subr.mxu0 %v3359
      %3364 = vmatpush1.msra.mxu0 %v3356
      %3365 = vmatprep.subr.mxu0 0.0
      %3366 = vmatpush1.msra.mxu0 0.0
      %3367 = vmatprep.subr.mxu0 0.0
      %3368 = vmatpush1.msra.mxu0 0.0
      %3369 = vmatprep.subr.mxu0 0.0
      %3370 = vmatpush1.msra.mxu0 0.0
      %3371 = vmatprep.subr.mxu0 0.0
      %3372 = vmatpush1.msra.mxu0 0.0
      %3373 = vmatprep.subr.mxu0 0.0
      %3374 = vmatpush1.msra.mxu0 0.0
      %3375 = vmatprep.subr.mxu0 0.0
      %3376 = vmatpush1.msra.mxu0 0.0
      %3377 = vmatprep.subr.mxu0 0.0
      %3378 = vmatpush1.msra.mxu0 0.0
      %3379 = vmatprep.subr.mxu0 0.0
      %3380 = vmatpush1.msra.mxu0 0.0
      %3381 = vmatprep.subr.mxu0 0.0
      %3382 = vmatpush1.msra.mxu0 0.0
      %3383 = vmatprep.subr.mxu0 0.0
      %3384 = vmatpush1.msra.mxu0 0.0
      %3385 = vmatprep.subr.mxu0 0.0
      %3386 = vmatpush1.msra.mxu0 0.0
      %3387 = vmatprep.subr.mxu0 0.0
      %3388 = vmatpush1.msra.mxu0 0.0
      %3389 = vmatprep.subr.mxu0 0.0
      %3390 = vmatpush1.msra.mxu0 0.0
      %3391 = vmatprep.subr.mxu0 0.0
      %3392 = vmatpush1.msra.mxu0 0.0
      %3393 = vmatprep.subr.mxu0 0.0
      %3394 = vmatpush1.msra.mxu0 0.0
      %3395 = vmatprep.subr.mxu0 0.0
      %3396 = vmatpush1.msra.mxu0 0.0
      %3397 = vmatprep.subr.mxu0 0.0
      %3398 = vmatpush1.msra.mxu0 0.0
      %3399 = vmatprep.subr.mxu0 0.0
      %3400 = vmatpush1.msra.mxu0 0.0
      %3401 = vmatprep.subr.mxu0 0.0
      %3402 = vmatpush1.msra.mxu0 0.0
      %3403 = vmatprep.subr.mxu0 0.0
      %3404 = vmatpush1.msra.mxu0 0.0
      %3405 = vmatprep.subr.mxu0 0.0
      %3406 = vmatpush1.msra.mxu0 0.0
      %3407 = vmatprep.subr.mxu0 0.0
      %3408 = vmatpush1.msra.mxu0 0.0
      %3409 = vmatprep.subr.mxu0 0.0
      %3410 = vmatpush1.msra.mxu0 0.0
      %3411 = vmatprep.subr.mxu0 0.0
      %3412 = vmatpush1.msra.mxu0 0.0
      %3413 = vmatprep.subr.mxu0 0.0
      %3414 = vmatpush1.msra.mxu0 0.0
      %3415 = vmatprep.subr.mxu0 0.0
      %3416 = vmatpush1.msra.mxu0 0.0
      %3417 = vmatprep.subr.mxu0 0.0
      %3418 = vmatpush1.msra.mxu0 0.0
      %3419 = vmatprep.subr.mxu0 0.0
      %3420 = vmatpush1.msra.mxu0 0.0
      %3421 = vmatprep.subr.mxu0 0.0
      %3422 = vmatpush1.msra.mxu0 0.0
      %3423 = vmatprep.subr.mxu0 0.0
      %3424 = vmatpush1.msra.mxu0 0.0
      %3425 = vmatprep.mubr.f32.mxu0 0.0
      %3426 = vmatmul.mubr.f32.gmra.mrb[0].mxu0 %v3353
      %v3427 = vpop.f32.mrb[0].mxu0
      %v3428 = vadd.f32 0.0, %v3427
      %v3429 = vpop.f32.mrb[0].mxu0
      %v3430 = vadd.f32 0.0, %v3429
      %3431 = vdwg.mxu0
      %v3434 = vcombine.low %v3428, %v3430
      %v3436 = vunpack.c.l.s4 1966171168
      %v3437 = vunpack.c.0.s8 %v3436
      %v3438 = vlaneseq
      %v3439 = vshrl.u32 %v3438, 7
      %v3440 = vsub.s32 %v3437, %v3439
      %v3441 = vrot.slane %v3434, %v3440
      %v3443 = vunpack.c.l.s4 1966171168
      %v3444 = vunpack.c.0.s8 %v3443
      %v3445 = vlaneseq
      %v3446 = vshrl.u32 %v3445, 7
      %v3447 = vsub.s32 %v3444, %v3446
      %v3448 = vrot.slane %v3441, %v3447
      %v3450 = vadd.f32 %v3346, %v3448
      %s3451 = scalar_lea.vmem %s5, 416
      %v3452 = vld [vmem:[%s3451] sm:$0xff]
      %v3453 = vld [vmem:[%s3451 + $0x8] sm:$0xff]
      %v3454 = vld [vmem:[%s3451 + $0x10] sm:$0x3]
      %v3455 = vld [vmem:[%s3451 + $0x18] sm:$0x3]
      %v3456 = vrot.slane %v2096, 1
      %v3457 = vsel %vm841, %v3456, 0
      %v3460 = vsel %vm899, %v3454, 0
      %v3463 = vsel %vm899, %v3455, 0
      %3465 = vmatprep.subr.mxu0 %v3453
      %3466 = vmatpush1.msra.mxu0 %v3452
      %3467 = vmatprep.subr.mxu0 %v3463
      %3468 = vmatpush1.msra.mxu0 %v3460
      %3469 = vmatprep.subr.mxu0 0.0
      %3470 = vmatpush1.msra.mxu0 0.0
      %3471 = vmatprep.subr.mxu0 0.0
      %3472 = vmatpush1.msra.mxu0 0.0
      %3473 = vmatprep.subr.mxu0 0.0
      %3474 = vmatpush1.msra.mxu0 0.0
      %3475 = vmatprep.subr.mxu0 0.0
      %3476 = vmatpush1.msra.mxu0 0.0
      %3477 = vmatprep.subr.mxu0 0.0
      %3478 = vmatpush1.msra.mxu0 0.0
      %3479 = vmatprep.subr.mxu0 0.0
      %3480 = vmatpush1.msra.mxu0 0.0
      %3481 = vmatprep.subr.mxu0 0.0
      %3482 = vmatpush1.msra.mxu0 0.0
      %3483 = vmatprep.subr.mxu0 0.0
      %3484 = vmatpush1.msra.mxu0 0.0
      %3485 = vmatprep.subr.mxu0 0.0
      %3486 = vmatpush1.msra.mxu0 0.0
      %3487 = vmatprep.subr.mxu0 0.0
      %3488 = vmatpush1.msra.mxu0 0.0
      %3489 = vmatprep.subr.mxu0 0.0
      %3490 = vmatpush1.msra.mxu0 0.0
      %3491 = vmatprep.subr.mxu0 0.0
      %3492 = vmatpush1.msra.mxu0 0.0
      %3493 = vmatprep.subr.mxu0 0.0
      %3494 = vmatpush1.msra.mxu0 0.0
      %3495 = vmatprep.subr.mxu0 0.0
      %3496 = vmatpush1.msra.mxu0 0.0
      %3497 = vmatprep.subr.mxu0 0.0
      %3498 = vmatpush1.msra.mxu0 0.0
      %3499 = vmatprep.subr.mxu0 0.0
      %3500 = vmatpush1.msra.mxu0 0.0
      %3501 = vmatprep.subr.mxu0 0.0
      %3502 = vmatpush1.msra.mxu0 0.0
      %3503 = vmatprep.subr.mxu0 0.0
      %3504 = vmatpush1.msra.mxu0 0.0
      %3505 = vmatprep.subr.mxu0 0.0
      %3506 = vmatpush1.msra.mxu0 0.0
      %3507 = vmatprep.subr.mxu0 0.0
      %3508 = vmatpush1.msra.mxu0 0.0
      %3509 = vmatprep.subr.mxu0 0.0
      %3510 = vmatpush1.msra.mxu0 0.0
      %3511 = vmatprep.subr.mxu0 0.0
      %3512 = vmatpush1.msra.mxu0 0.0
      %3513 = vmatprep.subr.mxu0 0.0
      %3514 = vmatpush1.msra.mxu0 0.0
      %3515 = vmatprep.subr.mxu0 0.0
      %3516 = vmatpush1.msra.mxu0 0.0
      %3517 = vmatprep.subr.mxu0 0.0
      %3518 = vmatpush1.msra.mxu0 0.0
      %3519 = vmatprep.subr.mxu0 0.0
      %3520 = vmatpush1.msra.mxu0 0.0
      %3521 = vmatprep.subr.mxu0 0.0
      %3522 = vmatpush1.msra.mxu0 0.0
      %3523 = vmatprep.subr.mxu0 0.0
      %3524 = vmatpush1.msra.mxu0 0.0
      %3525 = vmatprep.subr.mxu0 0.0
      %3526 = vmatpush1.msra.mxu0 0.0
      %3527 = vmatprep.subr.mxu0 0.0
      %3528 = vmatpush1.msra.mxu0 0.0
      %3529 = vmatprep.mubr.f32.mxu0 0.0
      %3530 = vmatmul.mubr.f32.gmra.mrb[0].mxu0 %v3457
      %v3531 = vpop.f32.mrb[0].mxu0
      %v3532 = vadd.f32 0.0, %v3531
      %v3533 = vpop.f32.mrb[0].mxu0
      %v3534 = vadd.f32 0.0, %v3533
      %3535 = vdwg.mxu0
      %v3538 = vcombine.low %v3532, %v3534
      %v3540 = vunpack.c.l.s4 1966171168
      %v3541 = vunpack.c.0.s8 %v3540
      %v3542 = vlaneseq
      %v3543 = vshrl.u32 %v3542, 7
      %v3544 = vsub.s32 %v3541, %v3543
      %v3545 = vrot.slane %v3538, %v3544
      %v3547 = vunpack.c.l.s4 1966171168
      %v3548 = vunpack.c.0.s8 %v3547
      %v3549 = vlaneseq
      %v3550 = vshrl.u32 %v3549, 7
      %v3551 = vsub.s32 %v3548, %v3550
      %v3552 = vrot.slane %v3545, %v3551
      %v3554 = vadd.f32 %v3450, %v3552
      %s3555 = scalar_lea.vmem %s5, 448
      %v3556 = vld [vmem:[%s3555] sm:$0xff]
      %v3557 = vld [vmem:[%s3555 + $0x8] sm:$0xff]
      %v3558 = vld [vmem:[%s3555 + $0x10] sm:$0x3]
      %v3559 = vld [vmem:[%s3555 + $0x18] sm:$0x3]
      %v3560 = vrot.slane %v2096, 2
      %v3561 = vsel %vm841, %v3560, 0
      %v3564 = vsel %vm899, %v3558, 0
      %v3567 = vsel %vm899, %v3559, 0
      %3569 = vmatprep.subr.mxu0 %v3557
      %3570 = vmatpush1.msra.mxu0 %v3556
      %3571 = vmatprep.subr.mxu0 %v3567
      %3572 = vmatpush1.msra.mxu0 %v3564
      %3573 = vmatprep.subr.mxu0 0.0
      %3574 = vmatpush1.msra.mxu0 0.0
      %3575 = vmatprep.subr.mxu0 0.0
      %3576 = vmatpush1.msra.mxu0 0.0
      %3577 = vmatprep.subr.mxu0 0.0
      %3578 = vmatpush1.msra.mxu0 0.0
      %3579 = vmatprep.subr.mxu0 0.0
      %3580 = vmatpush1.msra.mxu0 0.0
      %3581 = vmatprep.subr.mxu0 0.0
      %3582 = vmatpush1.msra.mxu0 0.0
      %3583 = vmatprep.subr.mxu0 0.0
      %3584 = vmatpush1.msra.mxu0 0.0
      %3585 = vmatprep.subr.mxu0 0.0
      %3586 = vmatpush1.msra.mxu0 0.0
      %3587 = vmatprep.subr.mxu0 0.0
      %3588 = vmatpush1.msra.mxu0 0.0
      %3589 = vmatprep.subr.mxu0 0.0
      %3590 = vmatpush1.msra.mxu0 0.0
      %3591 = vmatprep.subr.mxu0 0.0
      %3592 = vmatpush1.msra.mxu0 0.0
      %3593 = vmatprep.subr.mxu0 0.0
      %3594 = vmatpush1.msra.mxu0 0.0
      %3595 = vmatprep.subr.mxu0 0.0
      %3596 = vmatpush1.msra.mxu0 0.0
      %3597 = vmatprep.subr.mxu0 0.0
      %3598 = vmatpush1.msra.mxu0 0.0
      %3599 = vmatprep.subr.mxu0 0.0
      %3600 = vmatpush1.msra.mxu0 0.0
      %3601 = vmatprep.subr.mxu0 0.0
      %3602 = vmatpush1.msra.mxu0 0.0
      %3603 = vmatprep.subr.mxu0 0.0
      %3604 = vmatpush1.msra.mxu0 0.0
      %3605 = vmatprep.subr.mxu0 0.0
      %3606 = vmatpush1.msra.mxu0 0.0
      %3607 = vmatprep.subr.mxu0 0.0
      %3608 = vmatpush1.msra.mxu0 0.0
      %3609 = vmatprep.subr.mxu0 0.0
      %3610 = vmatpush1.msra.mxu0 0.0
      %3611 = vmatprep.subr.mxu0 0.0
      %3612 = vmatpush1.msra.mxu0 0.0
      %3613 = vmatprep.subr.mxu0 0.0
      %3614 = vmatpush1.msra.mxu0 0.0
      %3615 = vmatprep.subr.mxu0 0.0
      %3616 = vmatpush1.msra.mxu0 0.0
      %3617 = vmatprep.subr.mxu0 0.0
      %3618 = vmatpush1.msra.mxu0 0.0
      %3619 = vmatprep.subr.mxu0 0.0
      %3620 = vmatpush1.msra.mxu0 0.0
      %3621 = vmatprep.subr.mxu0 0.0
      %3622 = vmatpush1.msra.mxu0 0.0
      %3623 = vmatprep.subr.mxu0 0.0
      %3624 = vmatpush1.msra.mxu0 0.0
      %3625 = vmatprep.subr.mxu0 0.0
      %3626 = vmatpush1.msra.mxu0 0.0
      %3627 = vmatprep.subr.mxu0 0.0
      %3628 = vmatpush1.msra.mxu0 0.0
      %3629 = vmatprep.subr.mxu0 0.0
      %3630 = vmatpush1.msra.mxu0 0.0
      %3631 = vmatprep.subr.mxu0 0.0
      %3632 = vmatpush1.msra.mxu0 0.0
      %3633 = vmatprep.mubr.f32.mxu0 0.0
      %3634 = vmatmul.mubr.f32.gmra.mrb[0].mxu0 %v3561
      %v3635 = vpop.f32.mrb[0].mxu0
      %v3636 = vadd.f32 0.0, %v3635
      %v3637 = vpop.f32.mrb[0].mxu0
      %v3638 = vadd.f32 0.0, %v3637
      %3639 = vdwg.mxu0
      %v3642 = vcombine.low %v3636, %v3638
      %v3644 = vunpack.c.l.s4 1966171168
      %v3645 = vunpack.c.0.s8 %v3644
      %v3646 = vlaneseq
      %v3647 = vshrl.u32 %v3646, 7
      %v3648 = vsub.s32 %v3645, %v3647
      %v3649 = vrot.slane %v3642, %v3648
      %v3651 = vunpack.c.l.s4 1966171168
      %v3652 = vunpack.c.0.s8 %v3651
      %v3653 = vlaneseq
      %v3654 = vshrl.u32 %v3653, 7
      %v3655 = vsub.s32 %v3652, %v3654
      %v3656 = vrot.slane %v3649, %v3655
      %v3658 = vadd.f32 %v3554, %v3656
      %s3659 = scalar_lea.vmem %s5, 480
      %v3660 = vld [vmem:[%s3659] sm:$0xff]
      %v3661 = vld [vmem:[%s3659 + $0x8] sm:$0xff]
      %v3662 = vld [vmem:[%s3659 + $0x10] sm:$0x3]
      %v3663 = vld [vmem:[%s3659 + $0x18] sm:$0x3]
      %v3664 = vrot.slane %v2096, 5
      %v3665 = vsel %vm841, %v3664, 0
      %v3668 = vsel %vm899, %v3662, 0
      %v3671 = vsel %vm899, %v3663, 0
      %3673 = vmatprep.subr.mxu0 %v3661
      %3674 = vmatpush1.msra.mxu0 %v3660
      %3675 = vmatprep.subr.mxu0 %v3671
      %3676 = vmatpush1.msra.mxu0 %v3668
      %3677 = vmatprep.subr.mxu0 0.0
      %3678 = vmatpush1.msra.mxu0 0.0
      %3679 = vmatprep.subr.mxu0 0.0
      %3680 = vmatpush1.msra.mxu0 0.0
      %3681 = vmatprep.subr.mxu0 0.0
      %3682 = vmatpush1.msra.mxu0 0.0
      %3683 = vmatprep.subr.mxu0 0.0
      %3684 = vmatpush1.msra.mxu0 0.0
      %3685 = vmatprep.subr.mxu0 0.0
      %3686 = vmatpush1.msra.mxu0 0.0
      %3687 = vmatprep.subr.mxu0 0.0
      %3688 = vmatpush1.msra.mxu0 0.0
      %3689 = vmatprep.subr.mxu0 0.0
      %3690 = vmatpush1.msra.mxu0 0.0
      %3691 = vmatprep.subr.mxu0 0.0
      %3692 = vmatpush1.msra.mxu0 0.0
      %3693 = vmatprep.subr.mxu0 0.0
      %3694 = vmatpush1.msra.mxu0 0.0
      %3695 = vmatprep.subr.mxu0 0.0
      %3696 = vmatpush1.msra.mxu0 0.0
      %3697 = vmatprep.subr.mxu0 0.0
      %3698 = vmatpush1.msra.mxu0 0.0
      %3699 = vmatprep.subr.mxu0 0.0
      %3700 = vmatpush1.msra.mxu0 0.0
      %3701 = vmatprep.subr.mxu0 0.0
      %3702 = vmatpush1.msra.mxu0 0.0
      %3703 = vmatprep.subr.mxu0 0.0
      %3704 = vmatpush1.msra.mxu0 0.0
      %3705 = vmatprep.subr.mxu0 0.0
      %3706 = vmatpush1.msra.mxu0 0.0
      %3707 = vmatprep.subr.mxu0 0.0
      %3708 = vmatpush1.msra.mxu0 0.0
      %3709 = vmatprep.subr.mxu0 0.0
      %3710 = vmatpush1.msra.mxu0 0.0
      %3711 = vmatprep.subr.mxu0 0.0
      %3712 = vmatpush1.msra.mxu0 0.0
      %3713 = vmatprep.subr.mxu0 0.0
      %3714 = vmatpush1.msra.mxu0 0.0
      %3715 = vmatprep.subr.mxu0 0.0
      %3716 = vmatpush1.msra.mxu0 0.0
      %3717 = vmatprep.subr.mxu0 0.0
      %3718 = vmatpush1.msra.mxu0 0.0
      %3719 = vmatprep.subr.mxu0 0.0
      %3720 = vmatpush1.msra.mxu0 0.0
      %3721 = vmatprep.subr.mxu0 0.0
      %3722 = vmatpush1.msra.mxu0 0.0
      %3723 = vmatprep.subr.mxu0 0.0
      %3724 = vmatpush1.msra.mxu0 0.0
      %3725 = vmatprep.subr.mxu0 0.0
      %3726 = vmatpush1.msra.mxu0 0.0
      %3727 = vmatprep.subr.mxu0 0.0
      %3728 = vmatpush1.msra.mxu0 0.0
      %3729 = vmatprep.subr.mxu0 0.0
      %3730 = vmatpush1.msra.mxu0 0.0
      %3731 = vmatprep.subr.mxu0 0.0
      %3732 = vmatpush1.msra.mxu0 0.0
      %3733 = vmatprep.subr.mxu0 0.0
      %3734 = vmatpush1.msra.mxu0 0.0
      %3735 = vmatprep.subr.mxu0 0.0
      %3736 = vmatpush1.msra.mxu0 0.0
      %3737 = vmatprep.mubr.f32.mxu0 0.0
      %3738 = vmatmul.mubr.f32.gmra.mrb[0].mxu0 %v3665
      %v3739 = vpop.f32.mrb[0].mxu0
      %v3740 = vadd.f32 0.0, %v3739
      %v3741 = vpop.f32.mrb[0].mxu0
      %v3742 = vadd.f32 0.0, %v3741
      %3743 = vdwg.mxu0
      %v3746 = vcombine.low %v3740, %v3742
      %v3748 = vunpack.c.l.s4 1966171168
      %v3749 = vunpack.c.0.s8 %v3748
      %v3750 = vlaneseq
      %v3751 = vshrl.u32 %v3750, 7
      %v3752 = vsub.s32 %v3749, %v3751
      %v3753 = vrot.slane %v3746, %v3752
      %v3755 = vunpack.c.l.s4 1966171168
      %v3756 = vunpack.c.0.s8 %v3755
      %v3757 = vlaneseq
      %v3758 = vshrl.u32 %v3757, 7
      %v3759 = vsub.s32 %v3756, %v3758
      %v3760 = vrot.slane %v3753, %v3759
      %v3762 = vadd.f32 %v3658, %v3760
      %s3763 = scalar_lea.vmem %s5, 512
      %v3764 = vld [vmem:[%s3763] sm:$0xff]
      %v3765 = vld [vmem:[%s3763 + $0x8] sm:$0xff]
      %v3766 = vld [vmem:[%s3763 + $0x10] sm:$0x3]
      %v3767 = vld [vmem:[%s3763 + $0x18] sm:$0x3]
      %v3768 = vrot.slane %v2096, 6
      %v3769 = vsel %vm841, %v3768, 0
      %v3772 = vsel %vm899, %v3766, 0
      %v3775 = vsel %vm899, %v3767, 0
      %3777 = vmatprep.subr.mxu0 %v3765
      %3778 = vmatpush1.msra.mxu0 %v3764
      %3779 = vmatprep.subr.mxu0 %v3775
      %3780 = vmatpush1.msra.mxu0 %v3772
      %3781 = vmatprep.subr.mxu0 0.0
      %3782 = vmatpush1.msra.mxu0 0.0
      %3783 = vmatprep.subr.mxu0 0.0
      %3784 = vmatpush1.msra.mxu0 0.0
      %3785 = vmatprep.subr.mxu0 0.0
      %3786 = vmatpush1.msra.mxu0 0.0
      %3787 = vmatprep.subr.mxu0 0.0
      %3788 = vmatpush1.msra.mxu0 0.0
      %3789 = vmatprep.subr.mxu0 0.0
      %3790 = vmatpush1.msra.mxu0 0.0
      %3791 = vmatprep.subr.mxu0 0.0
      %3792 = vmatpush1.msra.mxu0 0.0
      %3793 = vmatprep.subr.mxu0 0.0
      %3794 = vmatpush1.msra.mxu0 0.0
      %3795 = vmatprep.subr.mxu0 0.0
      %3796 = vmatpush1.msra.mxu0 0.0
      %3797 = vmatprep.subr.mxu0 0.0
      %3798 = vmatpush1.msra.mxu0 0.0
      %3799 = vmatprep.subr.mxu0 0.0
      %3800 = vmatpush1.msra.mxu0 0.0
      %3801 = vmatprep.subr.mxu0 0.0
      %3802 = vmatpush1.msra.mxu0 0.0
      %3803 = vmatprep.subr.mxu0 0.0
      %3804 = vmatpush1.msra.mxu0 0.0
      %3805 = vmatprep.subr.mxu0 0.0
      %3806 = vmatpush1.msra.mxu0 0.0
      %3807 = vmatprep.subr.mxu0 0.0
      %3808 = vmatpush1.msra.mxu0 0.0
      %3809 = vmatprep.subr.mxu0 0.0
      %3810 = vmatpush1.msra.mxu0 0.0
      %3811 = vmatprep.subr.mxu0 0.0
      %3812 = vmatpush1.msra.mxu0 0.0
      %3813 = vmatprep.subr.mxu0 0.0
      %3814 = vmatpush1.msra.mxu0 0.0
      %3815 = vmatprep.subr.mxu0 0.0
      %3816 = vmatpush1.msra.mxu0 0.0
      %3817 = vmatprep.subr.mxu0 0.0
      %3818 = vmatpush1.msra.mxu0 0.0
      %3819 = vmatprep.subr.mxu0 0.0
      %3820 = vmatpush1.msra.mxu0 0.0
      %3821 = vmatprep.subr.mxu0 0.0
      %3822 = vmatpush1.msra.mxu0 0.0
      %3823 = vmatprep.subr.mxu0 0.0
      %3824 = vmatpush1.msra.mxu0 0.0
      %3825 = vmatprep.subr.mxu0 0.0
      %3826 = vmatpush1.msra.mxu0 0.0
      %3827 = vmatprep.subr.mxu0 0.0
      %3828 = vmatpush1.msra.mxu0 0.0
      %3829 = vmatprep.subr.mxu0 0.0
      %3830 = vmatpush1.msra.mxu0 0.0
      %3831 = vmatprep.subr.mxu0 0.0
      %3832 = vmatpush1.msra.mxu0 0.0
      %3833 = vmatprep.subr.mxu0 0.0
      %3834 = vmatpush1.msra.mxu0 0.0
      %3835 = vmatprep.subr.mxu0 0.0
      %3836 = vmatpush1.msra.mxu0 0.0
      %3837 = vmatprep.subr.mxu0 0.0
      %3838 = vmatpush1.msra.mxu0 0.0
      %3839 = vmatprep.subr.mxu0 0.0
      %3840 = vmatpush1.msra.mxu0 0.0
      %3841 = vmatprep.mubr.f32.mxu0 0.0
      %3842 = vmatmul.mubr.f32.gmra.mrb[0].mxu0 %v3769
      %v3843 = vpop.f32.mrb[0].mxu0
      %v3844 = vadd.f32 0.0, %v3843
      %v3845 = vpop.f32.mrb[0].mxu0
      %v3846 = vadd.f32 0.0, %v3845
      %3847 = vdwg.mxu0
      %v3850 = vcombine.low %v3844, %v3846
      %v3852 = vunpack.c.l.s4 1966171168
      %v3853 = vunpack.c.0.s8 %v3852
      %v3854 = vlaneseq
      %v3855 = vshrl.u32 %v3854, 7
      %v3856 = vsub.s32 %v3853, %v3855
      %v3857 = vrot.slane %v3850, %v3856
      %v3859 = vunpack.c.l.s4 1966171168
      %v3860 = vunpack.c.0.s8 %v3859
      %v3861 = vlaneseq
      %v3862 = vshrl.u32 %v3861, 7
      %v3863 = vsub.s32 %v3860, %v3862
      %v3864 = vrot.slane %v3857, %v3863
      %v3866 = vadd.f32 %v3762, %v3864
      %s3867 = scalar_lea.vmem %s5, 544
      %v3868 = vld [vmem:[%s3867] sm:$0xff]
      %v3869 = vld [vmem:[%s3867 + $0x8] sm:$0xff]
      %v3870 = vld [vmem:[%s3867 + $0x10] sm:$0x3]
      %v3871 = vld [vmem:[%s3867 + $0x18] sm:$0x3]
      %v3872 = vrot.slane %v2096, 7
      %v3873 = vsel %vm841, %v3872, 0
      %v3876 = vsel %vm899, %v3870, 0
      %v3879 = vsel %vm899, %v3871, 0
      %3881 = vmatprep.subr.mxu0 %v3869
      %3882 = vmatpush1.msra.mxu0 %v3868
      %3883 = vmatprep.subr.mxu0 %v3879
      %3884 = vmatpush1.msra.mxu0 %v3876
      %3885 = vmatprep.subr.mxu0 0.0
      %3886 = vmatpush1.msra.mxu0 0.0
      %3887 = vmatprep.subr.mxu0 0.0
      %3888 = vmatpush1.msra.mxu0 0.0
      %3889 = vmatprep.subr.mxu0 0.0
      %3890 = vmatpush1.msra.mxu0 0.0
      %3891 = vmatprep.subr.mxu0 0.0
      %3892 = vmatpush1.msra.mxu0 0.0
      %3893 = vmatprep.subr.mxu0 0.0
      %3894 = vmatpush1.msra.mxu0 0.0
      %3895 = vmatprep.subr.mxu0 0.0
      %3896 = vmatpush1.msra.mxu0 0.0
      %3897 = vmatprep.subr.mxu0 0.0
      %3898 = vmatpush1.msra.mxu0 0.0
      %3899 = vmatprep.subr.mxu0 0.0
      %3900 = vmatpush1.msra.mxu0 0.0
      %3901 = vmatprep.subr.mxu0 0.0
      %3902 = vmatpush1.msra.mxu0 0.0
      %3903 = vmatprep.subr.mxu0 0.0
      %3904 = vmatpush1.msra.mxu0 0.0
      %3905 = vmatprep.subr.mxu0 0.0
      %3906 = vmatpush1.msra.mxu0 0.0
      %3907 = vmatprep.subr.mxu0 0.0
      %3908 = vmatpush1.msra.mxu0 0.0
      %3909 = vmatprep.subr.mxu0 0.0
      %3910 = vmatpush1.msra.mxu0 0.0
      %3911 = vmatprep.subr.mxu0 0.0
      %3912 = vmatpush1.msra.mxu0 0.0
      %3913 = vmatprep.subr.mxu0 0.0
      %3914 = vmatpush1.msra.mxu0 0.0
      %3915 = vmatprep.subr.mxu0 0.0
      %3916 = vmatpush1.msra.mxu0 0.0
      %3917 = vmatprep.subr.mxu0 0.0
      %3918 = vmatpush1.msra.mxu0 0.0
      %3919 = vmatprep.subr.mxu0 0.0
      %3920 = vmatpush1.msra.mxu0 0.0
      %3921 = vmatprep.subr.mxu0 0.0
      %3922 = vmatpush1.msra.mxu0 0.0
      %3923 = vmatprep.subr.mxu0 0.0
      %3924 = vmatpush1.msra.mxu0 0.0
      %3925 = vmatprep.subr.mxu0 0.0
      %3926 = vmatpush1.msra.mxu0 0.0
      %3927 = vmatprep.subr.mxu0 0.0
      %3928 = vmatpush1.msra.mxu0 0.0
      %3929 = vmatprep.subr.mxu0 0.0
      %3930 = vmatpush1.msra.mxu0 0.0
      %3931 = vmatprep.subr.mxu0 0.0
      %3932 = vmatpush1.msra.mxu0 0.0
      %3933 = vmatprep.subr.mxu0 0.0
      %3934 = vmatpush1.msra.mxu0 0.0
      %3935 = vmatprep.subr.mxu0 0.0
      %3936 = vmatpush1.msra.mxu0 0.0
      %3937 = vmatprep.subr.mxu0 0.0
      %3938 = vmatpush1.msra.mxu0 0.0
      %3939 = vmatprep.subr.mxu0 0.0
      %3940 = vmatpush1.msra.mxu0 0.0
      %3941 = vmatprep.subr.mxu0 0.0
      %3942 = vmatpush1.msra.mxu0 0.0
      %3943 = vmatprep.subr.mxu0 0.0
      %3944 = vmatpush1.msra.mxu0 0.0
      %3945 = vmatprep.mubr.f32.mxu0 0.0
      %3946 = vmatmul.mubr.f32.gmra.mrb[0].mxu0 %v3873
      %v3947 = vpop.f32.mrb[0].mxu0
      %v3948 = vadd.f32 0.0, %v3947
      %v3949 = vpop.f32.mrb[0].mxu0
      %v3950 = vadd.f32 0.0, %v3949
      %3951 = vdwg.mxu0
      %v3954 = vcombine.low %v3948, %v3950
      %v3956 = vunpack.c.l.s4 1966171168
      %v3957 = vunpack.c.0.s8 %v3956
      %v3958 = vlaneseq
      %v3959 = vshrl.u32 %v3958, 7
      %v3960 = vsub.s32 %v3957, %v3959
      %v3961 = vrot.slane %v3954, %v3960
      %v3963 = vunpack.c.l.s4 1966171168
      %v3964 = vunpack.c.0.s8 %v3963
      %v3965 = vlaneseq
      %v3966 = vshrl.u32 %v3965, 7
      %v3967 = vsub.s32 %v3964, %v3966
      %v3968 = vrot.slane %v3961, %v3967
      %v3970 = vadd.f32 %v3866, %v3968
      %s3971 = scalar_lea.vmem %s5, 576
      %v3972 = vld [vmem:[%s3971] sm:$0xff]
      %v3973 = vld [vmem:[%s3971 + $0x8] sm:$0xff]
      %v3974 = vld [vmem:[%s3971 + $0x10] sm:$0x3]
      %v3975 = vld [vmem:[%s3971 + $0x18] sm:$0x3]
      %v3977 = vsel %vm841, %v2097, 0
      %v3980 = vsel %vm899, %v3974, 0
      %v3983 = vsel %vm899, %v3975, 0
      %3985 = vmatprep.subr.mxu0 %v3973
      %3986 = vmatpush1.msra.mxu0 %v3972
      %3987 = vmatprep.subr.mxu0 %v3983
      %3988 = vmatpush1.msra.mxu0 %v3980
      %3989 = vmatprep.subr.mxu0 0.0
      %3990 = vmatpush1.msra.mxu0 0.0
      %3991 = vmatprep.subr.mxu0 0.0
      %3992 = vmatpush1.msra.mxu0 0.0
      %3993 = vmatprep.subr.mxu0 0.0
      %3994 = vmatpush1.msra.mxu0 0.0
      %3995 = vmatprep.subr.mxu0 0.0
      %3996 = vmatpush1.msra.mxu0 0.0
      %3997 = vmatprep.subr.mxu0 0.0
      %3998 = vmatpush1.msra.mxu0 0.0
      %3999 = vmatprep.subr.mxu0 0.0
      %4000 = vmatpush1.msra.mxu0 0.0
      %4001 = vmatprep.subr.mxu0 0.0
      %4002 = vmatpush1.msra.mxu0 0.0
      %4003 = vmatprep.subr.mxu0 0.0
      %4004 = vmatpush1.msra.mxu0 0.0
      %4005 = vmatprep.subr.mxu0 0.0
      %4006 = vmatpush1.msra.mxu0 0.0
      %4007 = vmatprep.subr.mxu0 0.0
      %4008 = vmatpush1.msra.mxu0 0.0
      %4009 = vmatprep.subr.mxu0 0.0
      %4010 = vmatpush1.msra.mxu0 0.0
      %4011 = vmatprep.subr.mxu0 0.0
      %4012 = vmatpush1.msra.mxu0 0.0
      %4013 = vmatprep.subr.mxu0 0.0
      %4014 = vmatpush1.msra.mxu0 0.0
      %4015 = vmatprep.subr.mxu0 0.0
      %4016 = vmatpush1.msra.mxu0 0.0
      %4017 = vmatprep.subr.mxu0 0.0
      %4018 = vmatpush1.msra.mxu0 0.0
      %4019 = vmatprep.subr.mxu0 0.0
      %4020 = vmatpush1.msra.mxu0 0.0
      %4021 = vmatprep.subr.mxu0 0.0
      %4022 = vmatpush1.msra.mxu0 0.0
      %4023 = vmatprep.subr.mxu0 0.0
      %4024 = vmatpush1.msra.mxu0 0.0
      %4025 = vmatprep.subr.mxu0 0.0
      %4026 = vmatpush1.msra.mxu0 0.0
      %4027 = vmatprep.subr.mxu0 0.0
      %4028 = vmatpush1.msra.mxu0 0.0
      %4029 = vmatprep.subr.mxu0 0.0
      %4030 = vmatpush1.msra.mxu0 0.0
      %4031 = vmatprep.subr.mxu0 0.0
      %4032 = vmatpush1.msra.mxu0 0.0
      %4033 = vmatprep.subr.mxu0 0.0
      %4034 = vmatpush1.msra.mxu0 0.0
      %4035 = vmatprep.subr.mxu0 0.0
      %4036 = vmatpush1.msra.mxu0 0.0
      %4037 = vmatprep.subr.mxu0 0.0
      %4038 = vmatpush1.msra.mxu0 0.0
      %4039 = vmatprep.subr.mxu0 0.0
      %4040 = vmatpush1.msra.mxu0 0.0
      %4041 = vmatprep.subr.mxu0 0.0
      %4042 = vmatpush1.msra.mxu0 0.0
      %4043 = vmatprep.subr.mxu0 0.0
      %4044 = vmatpush1.msra.mxu0 0.0
      %4045 = vmatprep.subr.mxu0 0.0
      %4046 = vmatpush1.msra.mxu0 0.0
      %4047 = vmatprep.subr.mxu0 0.0
      %4048 = vmatpush1.msra.mxu0 0.0
      %4049 = vmatprep.mubr.f32.mxu0 0.0
      %4050 = vmatmul.mubr.f32.gmra.mrb[0].mxu0 %v3977
      %v4051 = vpop.f32.mrb[0].mxu0
      %v4052 = vadd.f32 0.0, %v4051
      %v4053 = vpop.f32.mrb[0].mxu0
      %v4054 = vadd.f32 0.0, %v4053
      %4055 = vdwg.mxu0
      %v4058 = vcombine.low %v4052, %v4054
      %v4060 = vunpack.c.l.s4 1966171168
      %v4061 = vunpack.c.0.s8 %v4060
      %v4062 = vlaneseq
      %v4063 = vshrl.u32 %v4062, 7
      %v4064 = vsub.s32 %v4061, %v4063
      %v4065 = vrot.slane %v4058, %v4064
      %v4067 = vunpack.c.l.s4 1966171168
      %v4068 = vunpack.c.0.s8 %v4067
      %v4069 = vlaneseq
      %v4070 = vshrl.u32 %v4069, 7
      %v4071 = vsub.s32 %v4068, %v4070
      %v4072 = vrot.slane %v4065, %v4071
      %v4074 = vadd.f32 %v3970, %v4072
      %s4075 = scalar_lea.vmem %s5, 608
      %v4076 = vld [vmem:[%s4075] sm:$0xff]
      %v4077 = vld [vmem:[%s4075 + $0x8] sm:$0xff]
      %v4078 = vld [vmem:[%s4075 + $0x10] sm:$0x3]
      %v4079 = vld [vmem:[%s4075 + $0x18] sm:$0x3]
      %v4080 = vrot.slane %v2097, 1
      %v4081 = vsel %vm841, %v4080, 0
      %v4084 = vsel %vm899, %v4078, 0
      %v4087 = vsel %vm899, %v4079, 0
      %4089 = vmatprep.subr.mxu0 %v4077
      %4090 = vmatpush1.msra.mxu0 %v4076
      %4091 = vmatprep.subr.mxu0 %v4087
      %4092 = vmatpush1.msra.mxu0 %v4084
      %4093 = vmatprep.subr.mxu0 0.0
      %4094 = vmatpush1.msra.mxu0 0.0
      %4095 = vmatprep.subr.mxu0 0.0
      %4096 = vmatpush1.msra.mxu0 0.0
      %4097 = vmatprep.subr.mxu0 0.0
      %4098 = vmatpush1.msra.mxu0 0.0
      %4099 = vmatprep.subr.mxu0 0.0
      %4100 = vmatpush1.msra.mxu0 0.0
      %4101 = vmatprep.subr.mxu0 0.0
      %4102 = vmatpush1.msra.mxu0 0.0
      %4103 = vmatprep.subr.mxu0 0.0
      %4104 = vmatpush1.msra.mxu0 0.0
      %4105 = vmatprep.subr.mxu0 0.0
      %4106 = vmatpush1.msra.mxu0 0.0
      %4107 = vmatprep.subr.mxu0 0.0
      %4108 = vmatpush1.msra.mxu0 0.0
      %4109 = vmatprep.subr.mxu0 0.0
      %4110 = vmatpush1.msra.mxu0 0.0
      %4111 = vmatprep.subr.mxu0 0.0
      %4112 = vmatpush1.msra.mxu0 0.0
      %4113 = vmatprep.subr.mxu0 0.0
      %4114 = vmatpush1.msra.mxu0 0.0
      %4115 = vmatprep.subr.mxu0 0.0
      %4116 = vmatpush1.msra.mxu0 0.0
      %4117 = vmatprep.subr.mxu0 0.0
      %4118 = vmatpush1.msra.mxu0 0.0
      %4119 = vmatprep.subr.mxu0 0.0
      %4120 = vmatpush1.msra.mxu0 0.0
      %4121 = vmatprep.subr.mxu0 0.0
      %4122 = vmatpush1.msra.mxu0 0.0
      %4123 = vmatprep.subr.mxu0 0.0
      %4124 = vmatpush1.msra.mxu0 0.0
      %4125 = vmatprep.subr.mxu0 0.0
      %4126 = vmatpush1.msra.mxu0 0.0
      %4127 = vmatprep.subr.mxu0 0.0
      %4128 = vmatpush1.msra.mxu0 0.0
      %4129 = vmatprep.subr.mxu0 0.0
      %4130 = vmatpush1.msra.mxu0 0.0
      %4131 = vmatprep.subr.mxu0 0.0
      %4132 = vmatpush1.msra.mxu0 0.0
      %4133 = vmatprep.subr.mxu0 0.0
      %4134 = vmatpush1.msra.mxu0 0.0
      %4135 = vmatprep.subr.mxu0 0.0
      %4136 = vmatpush1.msra.mxu0 0.0
      %4137 = vmatprep.subr.mxu0 0.0
      %4138 = vmatpush1.msra.mxu0 0.0
      %4139 = vmatprep.subr.mxu0 0.0
      %4140 = vmatpush1.msra.mxu0 0.0
      %4141 = vmatprep.subr.mxu0 0.0
      %4142 = vmatpush1.msra.mxu0 0.0
      %4143 = vmatprep.subr.mxu0 0.0
      %4144 = vmatpush1.msra.mxu0 0.0
      %4145 = vmatprep.subr.mxu0 0.0
      %4146 = vmatpush1.msra.mxu0 0.0
      %4147 = vmatprep.subr.mxu0 0.0
      %4148 = vmatpush1.msra.mxu0 0.0
      %4149 = vmatprep.subr.mxu0 0.0
      %4150 = vmatpush1.msra.mxu0 0.0
      %4151 = vmatprep.subr.mxu0 0.0
      %4152 = vmatpush1.msra.mxu0 0.0
      %4153 = vmatprep.mubr.f32.mxu0 0.0
      %4154 = vmatmul.mubr.f32.gmra.mrb[0].mxu0 %v4081
      %v4155 = vpop.f32.mrb[0].mxu0
      %v4156 = vadd.f32 0.0, %v4155
      %v4157 = vpop.f32.mrb[0].mxu0
      %v4158 = vadd.f32 0.0, %v4157
      %4159 = vdwg.mxu0
      %v4162 = vcombine.low %v4156, %v4158
      %v4164 = vunpack.c.l.s4 1966171168
      %v4165 = vunpack.c.0.s8 %v4164
      %v4166 = vlaneseq
      %v4167 = vshrl.u32 %v4166, 7
      %v4168 = vsub.s32 %v4165, %v4167
      %v4169 = vrot.slane %v4162, %v4168
      %v4171 = vunpack.c.l.s4 1966171168
      %v4172 = vunpack.c.0.s8 %v4171
      %v4173 = vlaneseq
      %v4174 = vshrl.u32 %v4173, 7
      %v4175 = vsub.s32 %v4172, %v4174
      %v4176 = vrot.slane %v4169, %v4175
      %v4178 = vadd.f32 %v4074, %v4176
      %s4179 = scalar_lea.vmem %s5, 640
      %v4180 = vld [vmem:[%s4179] sm:$0xff]
      %v4181 = vld [vmem:[%s4179 + $0x8] sm:$0xff]
      %v4182 = vld [vmem:[%s4179 + $0x10] sm:$0x3]
      %v4183 = vld [vmem:[%s4179 + $0x18] sm:$0x3]
      %v4184 = vrot.slane %v2097, 4
      %v4185 = vsel %vm841, %v4184, 0
      %v4188 = vsel %vm899, %v4182, 0
      %v4191 = vsel %vm899, %v4183, 0
      %4193 = vmatprep.subr.mxu0 %v4181
      %4194 = vmatpush1.msra.mxu0 %v4180
      %4195 = vmatprep.subr.mxu0 %v4191
      %4196 = vmatpush1.msra.mxu0 %v4188
      %4197 = vmatprep.subr.mxu0 0.0
      %4198 = vmatpush1.msra.mxu0 0.0
      %4199 = vmatprep.subr.mxu0 0.0
      %4200 = vmatpush1.msra.mxu0 0.0
      %4201 = vmatprep.subr.mxu0 0.0
      %4202 = vmatpush1.msra.mxu0 0.0
      %4203 = vmatprep.subr.mxu0 0.0
      %4204 = vmatpush1.msra.mxu0 0.0
      %4205 = vmatprep.subr.mxu0 0.0
      %4206 = vmatpush1.msra.mxu0 0.0
      %4207 = vmatprep.subr.mxu0 0.0
      %4208 = vmatpush1.msra.mxu0 0.0
      %4209 = vmatprep.subr.mxu0 0.0
      %4210 = vmatpush1.msra.mxu0 0.0
      %4211 = vmatprep.subr.mxu0 0.0
      %4212 = vmatpush1.msra.mxu0 0.0
      %4213 = vmatprep.subr.mxu0 0.0
      %4214 = vmatpush1.msra.mxu0 0.0
      %4215 = vmatprep.subr.mxu0 0.0
      %4216 = vmatpush1.msra.mxu0 0.0
      %4217 = vmatprep.subr.mxu0 0.0
      %4218 = vmatpush1.msra.mxu0 0.0
      %4219 = vmatprep.subr.mxu0 0.0
      %4220 = vmatpush1.msra.mxu0 0.0
      %4221 = vmatprep.subr.mxu0 0.0
      %4222 = vmatpush1.msra.mxu0 0.0
      %4223 = vmatprep.subr.mxu0 0.0
      %4224 = vmatpush1.msra.mxu0 0.0
      %4225 = vmatprep.subr.mxu0 0.0
      %4226 = vmatpush1.msra.mxu0 0.0
      %4227 = vmatprep.subr.mxu0 0.0
      %4228 = vmatpush1.msra.mxu0 0.0
      %4229 = vmatprep.subr.mxu0 0.0
      %4230 = vmatpush1.msra.mxu0 0.0
      %4231 = vmatprep.subr.mxu0 0.0
      %4232 = vmatpush1.msra.mxu0 0.0
      %4233 = vmatprep.subr.mxu0 0.0
      %4234 = vmatpush1.msra.mxu0 0.0
      %4235 = vmatprep.subr.mxu0 0.0
      %4236 = vmatpush1.msra.mxu0 0.0
      %4237 = vmatprep.subr.mxu0 0.0
      %4238 = vmatpush1.msra.mxu0 0.0
      %4239 = vmatprep.subr.mxu0 0.0
      %4240 = vmatpush1.msra.mxu0 0.0
      %4241 = vmatprep.subr.mxu0 0.0
      %4242 = vmatpush1.msra.mxu0 0.0
      %4243 = vmatprep.subr.mxu0 0.0
      %4244 = vmatpush1.msra.mxu0 0.0
      %4245 = vmatprep.subr.mxu0 0.0
      %4246 = vmatpush1.msra.mxu0 0.0
      %4247 = vmatprep.subr.mxu0 0.0
      %4248 = vmatpush1.msra.mxu0 0.0
      %4249 = vmatprep.subr.mxu0 0.0
      %4250 = vmatpush1.msra.mxu0 0.0
      %4251 = vmatprep.subr.mxu0 0.0
      %4252 = vmatpush1.msra.mxu0 0.0
      %4253 = vmatprep.subr.mxu0 0.0
      %4254 = vmatpush1.msra.mxu0 0.0
      %4255 = vmatprep.subr.mxu0 0.0
      %4256 = vmatpush1.msra.mxu0 0.0
      %4257 = vmatprep.mubr.f32.mxu0 0.0
      %4258 = vmatmul.mubr.f32.gmra.mrb[0].mxu0 %v4185
      %v4259 = vpop.f32.mrb[0].mxu0
      %v4260 = vadd.f32 0.0, %v4259
      %v4261 = vpop.f32.mrb[0].mxu0
      %v4262 = vadd.f32 0.0, %v4261
      %4263 = vdwg.mxu0
      %v4266 = vcombine.low %v4260, %v4262
      %v4268 = vunpack.c.l.s4 1966171168
      %v4269 = vunpack.c.0.s8 %v4268
      %v4270 = vlaneseq
      %v4271 = vshrl.u32 %v4270, 7
      %v4272 = vsub.s32 %v4269, %v4271
      %v4273 = vrot.slane %v4266, %v4272
      %v4275 = vunpack.c.l.s4 1966171168
      %v4276 = vunpack.c.0.s8 %v4275
      %v4277 = vlaneseq
      %v4278 = vshrl.u32 %v4277, 7
      %v4279 = vsub.s32 %v4276, %v4278
      %v4280 = vrot.slane %v4273, %v4279
      %v4282 = vadd.f32 %v4178, %v4280
      %s4283 = scalar_lea.vmem %s5, 672
      %v4284 = vld [vmem:[%s4283] sm:$0xff]
      %v4285 = vld [vmem:[%s4283 + $0x8] sm:$0xff]
      %v4286 = vld [vmem:[%s4283 + $0x10] sm:$0x3]
      %v4287 = vld [vmem:[%s4283 + $0x18] sm:$0x3]
      %v4288 = vrot.slane %v2097, 5
      %v4289 = vsel %vm841, %v4288, 0
      %v4292 = vsel %vm899, %v4286, 0
      %v4295 = vsel %vm899, %v4287, 0
      %4297 = vmatprep.subr.mxu0 %v4285
      %4298 = vmatpush1.msra.mxu0 %v4284
      %4299 = vmatprep.subr.mxu0 %v4295
      %4300 = vmatpush1.msra.mxu0 %v4292
      %4301 = vmatprep.subr.mxu0 0.0
      %4302 = vmatpush1.msra.mxu0 0.0
      %4303 = vmatprep.subr.mxu0 0.0
      %4304 = vmatpush1.msra.mxu0 0.0
      %4305 = vmatprep.subr.mxu0 0.0
      %4306 = vmatpush1.msra.mxu0 0.0
      %4307 = vmatprep.subr.mxu0 0.0
      %4308 = vmatpush1.msra.mxu0 0.0
      %4309 = vmatprep.subr.mxu0 0.0
      %4310 = vmatpush1.msra.mxu0 0.0
      %4311 = vmatprep.subr.mxu0 0.0
      %4312 = vmatpush1.msra.mxu0 0.0
      %4313 = vmatprep.subr.mxu0 0.0
      %4314 = vmatpush1.msra.mxu0 0.0
      %4315 = vmatprep.subr.mxu0 0.0
      %4316 = vmatpush1.msra.mxu0 0.0
      %4317 = vmatprep.subr.mxu0 0.0
      %4318 = vmatpush1.msra.mxu0 0.0
      %4319 = vmatprep.subr.mxu0 0.0
      %4320 = vmatpush1.msra.mxu0 0.0
      %4321 = vmatprep.subr.mxu0 0.0
      %4322 = vmatpush1.msra.mxu0 0.0
      %4323 = vmatprep.subr.mxu0 0.0
      %4324 = vmatpush1.msra.mxu0 0.0
      %4325 = vmatprep.subr.mxu0 0.0
      %4326 = vmatpush1.msra.mxu0 0.0
      %4327 = vmatprep.subr.mxu0 0.0
      %4328 = vmatpush1.msra.mxu0 0.0
      %4329 = vmatprep.subr.mxu0 0.0
      %4330 = vmatpush1.msra.mxu0 0.0
      %4331 = vmatprep.subr.mxu0 0.0
      %4332 = vmatpush1.msra.mxu0 0.0
      %4333 = vmatprep.subr.mxu0 0.0
      %4334 = vmatpush1.msra.mxu0 0.0
      %4335 = vmatprep.subr.mxu0 0.0
      %4336 = vmatpush1.msra.mxu0 0.0
      %4337 = vmatprep.subr.mxu0 0.0
      %4338 = vmatpush1.msra.mxu0 0.0
      %4339 = vmatprep.subr.mxu0 0.0
      %4340 = vmatpush1.msra.mxu0 0.0
      %4341 = vmatprep.subr.mxu0 0.0
      %4342 = vmatpush1.msra.mxu0 0.0
      %4343 = vmatprep.subr.mxu0 0.0
      %4344 = vmatpush1.msra.mxu0 0.0
      %4345 = vmatprep.subr.mxu0 0.0
      %4346 = vmatpush1.msra.mxu0 0.0
      %4347 = vmatprep.subr.mxu0 0.0
      %4348 = vmatpush1.msra.mxu0 0.0
      %4349 = vmatprep.subr.mxu0 0.0
      %4350 = vmatpush1.msra.mxu0 0.0
      %4351 = vmatprep.subr.mxu0 0.0
      %4352 = vmatpush1.msra.mxu0 0.0
      %4353 = vmatprep.subr.mxu0 0.0
      %4354 = vmatpush1.msra.mxu0 0.0
      %4355 = vmatprep.subr.mxu0 0.0
      %4356 = vmatpush1.msra.mxu0 0.0
      %4357 = vmatprep.subr.mxu0 0.0
      %4358 = vmatpush1.msra.mxu0 0.0
      %4359 = vmatprep.subr.mxu0 0.0
      %4360 = vmatpush1.msra.mxu0 0.0
      %4361 = vmatprep.mubr.f32.mxu0 0.0
      %4362 = vmatmul.mubr.f32.gmra.mrb[0].mxu0 %v4289
      %v4363 = vpop.f32.mrb[0].mxu0
      %v4364 = vadd.f32 0.0, %v4363
      %v4365 = vpop.f32.mrb[0].mxu0
      %v4366 = vadd.f32 0.0, %v4365
      %4367 = vdwg.mxu0
      %v4370 = vcombine.low %v4364, %v4366
      %v4372 = vunpack.c.l.s4 1966171168
      %v4373 = vunpack.c.0.s8 %v4372
      %v4374 = vlaneseq
      %v4375 = vshrl.u32 %v4374, 7
      %v4376 = vsub.s32 %v4373, %v4375
      %v4377 = vrot.slane %v4370, %v4376
      %v4379 = vunpack.c.l.s4 1966171168
      %v4380 = vunpack.c.0.s8 %v4379
      %v4381 = vlaneseq
      %v4382 = vshrl.u32 %v4381, 7
      %v4383 = vsub.s32 %v4380, %v4382
      %v4384 = vrot.slane %v4377, %v4383
      %v4386 = vadd.f32 %v4282, %v4384
      %s4387 = scalar_lea.vmem %s5, 704
      %v4388 = vld [vmem:[%s4387] sm:$0xff]
      %v4389 = vld [vmem:[%s4387 + $0x8] sm:$0xff]
      %v4390 = vld [vmem:[%s4387 + $0x10] sm:$0x3]
      %v4391 = vld [vmem:[%s4387 + $0x18] sm:$0x3]
      %v4392 = vrot.slane %v2097, 6
      %v4393 = vsel %vm841, %v4392, 0
      %v4396 = vsel %vm899, %v4390, 0
      %v4399 = vsel %vm899, %v4391, 0
      %4401 = vmatprep.subr.mxu0 %v4389
      %4402 = vmatpush1.msra.mxu0 %v4388
      %4403 = vmatprep.subr.mxu0 %v4399
      %4404 = vmatpush1.msra.mxu0 %v4396
      %4405 = vmatprep.subr.mxu0 0.0
      %4406 = vmatpush1.msra.mxu0 0.0
      %4407 = vmatprep.subr.mxu0 0.0
      %4408 = vmatpush1.msra.mxu0 0.0
      %4409 = vmatprep.subr.mxu0 0.0
      %4410 = vmatpush1.msra.mxu0 0.0
      %4411 = vmatprep.subr.mxu0 0.0
      %4412 = vmatpush1.msra.mxu0 0.0
      %4413 = vmatprep.subr.mxu0 0.0
      %4414 = vmatpush1.msra.mxu0 0.0
      %4415 = vmatprep.subr.mxu0 0.0
      %4416 = vmatpush1.msra.mxu0 0.0
      %4417 = vmatprep.subr.mxu0 0.0
      %4418 = vmatpush1.msra.mxu0 0.0
      %4419 = vmatprep.subr.mxu0 0.0
      %4420 = vmatpush1.msra.mxu0 0.0
      %4421 = vmatprep.subr.mxu0 0.0
      %4422 = vmatpush1.msra.mxu0 0.0
      %4423 = vmatprep.subr.mxu0 0.0
      %4424 = vmatpush1.msra.mxu0 0.0
      %4425 = vmatprep.subr.mxu0 0.0
      %4426 = vmatpush1.msra.mxu0 0.0
      %4427 = vmatprep.subr.mxu0 0.0
      %4428 = vmatpush1.msra.mxu0 0.0
      %4429 = vmatprep.subr.mxu0 0.0
      %4430 = vmatpush1.msra.mxu0 0.0
      %4431 = vmatprep.subr.mxu0 0.0
      %4432 = vmatpush1.msra.mxu0 0.0
      %4433 = vmatprep.subr.mxu0 0.0
      %4434 = vmatpush1.msra.mxu0 0.0
      %4435 = vmatprep.subr.mxu0 0.0
      %4436 = vmatpush1.msra.mxu0 0.0
      %4437 = vmatprep.subr.mxu0 0.0
      %4438 = vmatpush1.msra.mxu0 0.0
      %4439 = vmatprep.subr.mxu0 0.0
      %4440 = vmatpush1.msra.mxu0 0.0
      %4441 = vmatprep.subr.mxu0 0.0
      %4442 = vmatpush1.msra.mxu0 0.0
      %4443 = vmatprep.subr.mxu0 0.0
      %4444 = vmatpush1.msra.mxu0 0.0
      %4445 = vmatprep.subr.mxu0 0.0
      %4446 = vmatpush1.msra.mxu0 0.0
      %4447 = vmatprep.subr.mxu0 0.0
      %4448 = vmatpush1.msra.mxu0 0.0
      %4449 = vmatprep.subr.mxu0 0.0
      %4450 = vmatpush1.msra.mxu0 0.0
      %4451 = vmatprep.subr.mxu0 0.0
      %4452 = vmatpush1.msra.mxu0 0.0
      %4453 = vmatprep.subr.mxu0 0.0
      %4454 = vmatpush1.msra.mxu0 0.0
      %4455 = vmatprep.subr.mxu0 0.0
      %4456 = vmatpush1.msra.mxu0 0.0
      %4457 = vmatprep.subr.mxu0 0.0
      %4458 = vmatpush1.msra.mxu0 0.0
      %4459 = vmatprep.subr.mxu0 0.0
      %4460 = vmatpush1.msra.mxu0 0.0
      %4461 = vmatprep.subr.mxu0 0.0
      %4462 = vmatpush1.msra.mxu0 0.0
      %4463 = vmatprep.subr.mxu0 0.0
      %4464 = vmatpush1.msra.mxu0 0.0
      %4465 = vmatprep.mubr.f32.mxu0 0.0
      %4466 = vmatmul.mubr.f32.gmra.mrb[0].mxu0 %v4393
      %v4467 = vpop.f32.mrb[0].mxu0
      %v4468 = vadd.f32 0.0, %v4467
      %v4469 = vpop.f32.mrb[0].mxu0
      %v4470 = vadd.f32 0.0, %v4469
      %4471 = vdwg.mxu0
      %v4474 = vcombine.low %v4468, %v4470
      %v4476 = vunpack.c.l.s4 1966171168
      %v4477 = vunpack.c.0.s8 %v4476
      %v4478 = vlaneseq
      %v4479 = vshrl.u32 %v4478, 7
      %v4480 = vsub.s32 %v4477, %v4479
      %v4481 = vrot.slane %v4474, %v4480
      %v4483 = vunpack.c.l.s4 1966171168
      %v4484 = vunpack.c.0.s8 %v4483
      %v4485 = vlaneseq
      %v4486 = vshrl.u32 %v4485, 7
      %v4487 = vsub.s32 %v4484, %v4486
      %v4488 = vrot.slane %v4481, %v4487
      %v4490 = vadd.f32 %v4386, %v4488
      %s4491 = scalar_lea.vmem %s5, 736
      %v4492 = vld [vmem:[%s4491] sm:$0xff]
      %v4493 = vld [vmem:[%s4491 + $0x8] sm:$0xff]
      %v4494 = vld [vmem:[%s4491 + $0x10] sm:$0x3]
      %v4495 = vld [vmem:[%s4491 + $0x18] sm:$0x3]
      %v4496 = vrot.slane %v2097, 7
      %v4497 = vsel %vm841, %v4496, 0
      %v4500 = vsel %vm899, %v4494, 0
      %v4503 = vsel %vm899, %v4495, 0
      %4505 = vmatprep.subr.mxu0 %v4493
      %4506 = vmatpush1.msra.mxu0 %v4492
      %4507 = vmatprep.subr.mxu0 %v4503
      %4508 = vmatpush1.msra.mxu0 %v4500
      %4509 = vmatprep.subr.mxu0 0.0
      %4510 = vmatpush1.msra.mxu0 0.0
      %4511 = vmatprep.subr.mxu0 0.0
      %4512 = vmatpush1.msra.mxu0 0.0
      %4513 = vmatprep.subr.mxu0 0.0
      %4514 = vmatpush1.msra.mxu0 0.0
      %4515 = vmatprep.subr.mxu0 0.0
      %4516 = vmatpush1.msra.mxu0 0.0
      %4517 = vmatprep.subr.mxu0 0.0
      %4518 = vmatpush1.msra.mxu0 0.0
      %4519 = vmatprep.subr.mxu0 0.0
      %4520 = vmatpush1.msra.mxu0 0.0
      %4521 = vmatprep.subr.mxu0 0.0
      %4522 = vmatpush1.msra.mxu0 0.0
      %4523 = vmatprep.subr.mxu0 0.0
      %4524 = vmatpush1.msra.mxu0 0.0
      %4525 = vmatprep.subr.mxu0 0.0
      %4526 = vmatpush1.msra.mxu0 0.0
      %4527 = vmatprep.subr.mxu0 0.0
      %4528 = vmatpush1.msra.mxu0 0.0
      %4529 = vmatprep.subr.mxu0 0.0
      %4530 = vmatpush1.msra.mxu0 0.0
      %4531 = vmatprep.subr.mxu0 0.0
      %4532 = vmatpush1.msra.mxu0 0.0
      %4533 = vmatprep.subr.mxu0 0.0
      %4534 = vmatpush1.msra.mxu0 0.0
      %4535 = vmatprep.subr.mxu0 0.0
      %4536 = vmatpush1.msra.mxu0 0.0
      %4537 = vmatprep.subr.mxu0 0.0
      %4538 = vmatpush1.msra.mxu0 0.0
      %4539 = vmatprep.subr.mxu0 0.0
      %4540 = vmatpush1.msra.mxu0 0.0
      %4541 = vmatprep.subr.mxu0 0.0
      %4542 = vmatpush1.msra.mxu0 0.0
      %4543 = vmatprep.subr.mxu0 0.0
      %4544 = vmatpush1.msra.mxu0 0.0
      %4545 = vmatprep.subr.mxu0 0.0
      %4546 = vmatpush1.msra.mxu0 0.0
      %4547 = vmatprep.subr.mxu0 0.0
      %4548 = vmatpush1.msra.mxu0 0.0
      %4549 = vmatprep.subr.mxu0 0.0
      %4550 = vmatpush1.msra.mxu0 0.0
      %4551 = vmatprep.subr.mxu0 0.0
      %4552 = vmatpush1.msra.mxu0 0.0
      %4553 = vmatprep.subr.mxu0 0.0
      %4554 = vmatpush1.msra.mxu0 0.0
      %4555 = vmatprep.subr.mxu0 0.0
      %4556 = vmatpush1.msra.mxu0 0.0
      %4557 = vmatprep.subr.mxu0 0.0
      %4558 = vmatpush1.msra.mxu0 0.0
      %4559 = vmatprep.subr.mxu0 0.0
      %4560 = vmatpush1.msra.mxu0 0.0
      %4561 = vmatprep.subr.mxu0 0.0
      %4562 = vmatpush1.msra.mxu0 0.0
      %4563 = vmatprep.subr.mxu0 0.0
      %4564 = vmatpush1.msra.mxu0 0.0
      %4565 = vmatprep.subr.mxu0 0.0
      %4566 = vmatpush1.msra.mxu0 0.0
      %4567 = vmatprep.subr.mxu0 0.0
      %4568 = vmatpush1.msra.mxu0 0.0
      %4569 = vmatprep.mubr.f32.mxu0 0.0
      %4570 = vmatmul.mubr.f32.gmra.mrb[0].mxu0 %v4497
      %v4571 = vpop.f32.mrb[0].mxu0
      %v4572 = vadd.f32 0.0, %v4571
      %v4573 = vpop.f32.mrb[0].mxu0
      %v4574 = vadd.f32 0.0, %v4573
      %4575 = vdwg.mxu0
      %v4578 = vcombine.low %v4572, %v4574
      %v4580 = vunpack.c.l.s4 1966171168
      %v4581 = vunpack.c.0.s8 %v4580
      %v4582 = vlaneseq
      %v4583 = vshrl.u32 %v4582, 7
      %v4584 = vsub.s32 %v4581, %v4583
      %v4585 = vrot.slane %v4578, %v4584
      %v4587 = vunpack.c.l.s4 1966171168
      %v4588 = vunpack.c.0.s8 %v4587
      %v4589 = vlaneseq
      %v4590 = vshrl.u32 %v4589, 7
      %v4591 = vsub.s32 %v4588, %v4590
      %v4592 = vrot.slane %v4585, %v4591
      %v4594 = vadd.f32 %v4490, %v4592
      %s4595 = scalar_lea.vmem %s5, 768
      %v4596 = vld [vmem:[%s4595] sm:$0xff]
      %v4597 = vld [vmem:[%s4595 + $0x8] sm:$0xff]
      %v4598 = vld [vmem:[%s4595 + $0x10] sm:$0x3]
      %v4599 = vld [vmem:[%s4595 + $0x18] sm:$0x3]
      %v4601 = vsel %vm841, %v2098, 0
      %v4604 = vsel %vm899, %v4598, 0
      %v4607 = vsel %vm899, %v4599, 0
      %4609 = vmatprep.subr.mxu0 %v4597
      %4610 = vmatpush1.msra.mxu0 %v4596
      %4611 = vmatprep.subr.mxu0 %v4607
      %4612 = vmatpush1.msra.mxu0 %v4604
      %4613 = vmatprep.subr.mxu0 0.0
      %4614 = vmatpush1.msra.mxu0 0.0
      %4615 = vmatprep.subr.mxu0 0.0
      %4616 = vmatpush1.msra.mxu0 0.0
      %4617 = vmatprep.subr.mxu0 0.0
      %4618 = vmatpush1.msra.mxu0 0.0
      %4619 = vmatprep.subr.mxu0 0.0
      %4620 = vmatpush1.msra.mxu0 0.0
      %4621 = vmatprep.subr.mxu0 0.0
      %4622 = vmatpush1.msra.mxu0 0.0
      %4623 = vmatprep.subr.mxu0 0.0
      %4624 = vmatpush1.msra.mxu0 0.0
      %4625 = vmatprep.subr.mxu0 0.0
      %4626 = vmatpush1.msra.mxu0 0.0
      %4627 = vmatprep.subr.mxu0 0.0
      %4628 = vmatpush1.msra.mxu0 0.0
      %4629 = vmatprep.subr.mxu0 0.0
      %4630 = vmatpush1.msra.mxu0 0.0
      %4631 = vmatprep.subr.mxu0 0.0
      %4632 = vmatpush1.msra.mxu0 0.0
      %4633 = vmatprep.subr.mxu0 0.0
      %4634 = vmatpush1.msra.mxu0 0.0
      %4635 = vmatprep.subr.mxu0 0.0
      %4636 = vmatpush1.msra.mxu0 0.0
      %4637 = vmatprep.subr.mxu0 0.0
      %4638 = vmatpush1.msra.mxu0 0.0
      %4639 = vmatprep.subr.mxu0 0.0
      %4640 = vmatpush1.msra.mxu0 0.0
      %4641 = vmatprep.subr.mxu0 0.0
      %4642 = vmatpush1.msra.mxu0 0.0
      %4643 = vmatprep.subr.mxu0 0.0
      %4644 = vmatpush1.msra.mxu0 0.0
      %4645 = vmatprep.subr.mxu0 0.0
      %4646 = vmatpush1.msra.mxu0 0.0
      %4647 = vmatprep.subr.mxu0 0.0
      %4648 = vmatpush1.msra.mxu0 0.0
      %4649 = vmatprep.subr.mxu0 0.0
      %4650 = vmatpush1.msra.mxu0 0.0
      %4651 = vmatprep.subr.mxu0 0.0
      %4652 = vmatpush1.msra.mxu0 0.0
      %4653 = vmatprep.subr.mxu0 0.0
      %4654 = vmatpush1.msra.mxu0 0.0
      %4655 = vmatprep.subr.mxu0 0.0
      %4656 = vmatpush1.msra.mxu0 0.0
      %4657 = vmatprep.subr.mxu0 0.0
      %4658 = vmatpush1.msra.mxu0 0.0
      %4659 = vmatprep.subr.mxu0 0.0
      %4660 = vmatpush1.msra.mxu0 0.0
      %4661 = vmatprep.subr.mxu0 0.0
      %4662 = vmatpush1.msra.mxu0 0.0
      %4663 = vmatprep.subr.mxu0 0.0
      %4664 = vmatpush1.msra.mxu0 0.0
      %4665 = vmatprep.subr.mxu0 0.0
      %4666 = vmatpush1.msra.mxu0 0.0
      %4667 = vmatprep.subr.mxu0 0.0
      %4668 = vmatpush1.msra.mxu0 0.0
      %4669 = vmatprep.subr.mxu0 0.0
      %4670 = vmatpush1.msra.mxu0 0.0
      %4671 = vmatprep.subr.mxu0 0.0
      %4672 = vmatpush1.msra.mxu0 0.0
      %4673 = vmatprep.mubr.f32.mxu0 0.0
      %4674 = vmatmul.mubr.f32.gmra.mrb[0].mxu0 %v4601
      %v4675 = vpop.f32.mrb[0].mxu0
      %v4676 = vadd.f32 0.0, %v4675
      %v4677 = vpop.f32.mrb[0].mxu0
      %v4678 = vadd.f32 0.0, %v4677
      %4679 = vdwg.mxu0
      %v4682 = vcombine.low %v4676, %v4678
      %v4684 = vunpack.c.l.s4 1966171168
      %v4685 = vunpack.c.0.s8 %v4684
      %v4686 = vlaneseq
      %v4687 = vshrl.u32 %v4686, 7
      %v4688 = vsub.s32 %v4685, %v4687
      %v4689 = vrot.slane %v4682, %v4688
      %v4691 = vunpack.c.l.s4 1966171168
      %v4692 = vunpack.c.0.s8 %v4691
      %v4693 = vlaneseq
      %v4694 = vshrl.u32 %v4693, 7
      %v4695 = vsub.s32 %v4692, %v4694
      %v4696 = vrot.slane %v4689, %v4695
      %v4698 = vadd.f32 %v4594, %v4696
      %v4699 = vsub.f32 0.0, %v4698
      %v4700 = vmul.f32 %v4699, 1.442695
      %v4701 = vpow.pop %v4700
      %v4702 = vadd.f32 %v4701, 1.0
      %v4703 = vrcp.pop %v4702
      %v4704 = vmul.f32 1.0, %v4703
      %v4705 = vlaneseq
      %vm4706 = vcmp.ge.s32.totalorder %v4705, 0
      %vm4707 = vcmp.lt.s32.totalorder %v4705, 256
      %vm4708 = vmand %vm4706, %vm4707
      %4709 = vst.msk [vmem:[%s276] sm:$0x3] %vm4708, %v4704
      %p4710 = scmp.lt.s32.totalorder %s18, 1
      %s4711 = scalar_select %p4710, %s18, 1
      %s4712 = smul.addr %s4711, 2
      %s4713 = scalar_lea.vmem %s7, %s4712
      // Predicated region
      $region49: #{cnn_forward.1} parent=47 // pred_check
        %p4714 = pneg %p188
      $region50: #{cnn_forward.1} parent=47 // pred_check_branch
        %4716 = sbr.rel (%p4714) target = $region52
      $region51: #{cnn_forward.1} parent=47 // pred_region
        _
      $region52: #{cnn_forward.1} parent=47 // pred_fallthru
        _
    $region48: #{cnn_forward.1} parent=5 // pred_fallthru
      _
    %p4717 = scmp.le.s32.totalorder 2, %s13
    // Predicated region
    $region53: #{cnn_forward.1} parent=5 // pred_check
      %p4718 = pneg %p4717
    $region54: #{cnn_forward.1} parent=5 // pred_check_branch
      %4720 = sbr.rel (%p4718) target = $region56
    $region55: #{cnn_forward.1} parent=5 // pred_region
      %s4721 = ssub.s32 %s13, 2
      // Predicated region
      $region57: #{cnn_forward.1} parent=55 // pred_check
        %p4722 = pneg %p194
      $region58: #{cnn_forward.1} parent=55 // pred_check_branch
        %4724 = sbr.rel (%p4722) target = $region60
      $region59: #{cnn_forward.1} parent=55 // pred_region
        %p4725 = scmp.lt.s32.totalorder %s19, 1
        %s4726 = scalar_select %p4725, %s19, 1
        %s4727 = smul.addr %s4726, 2
        %s4728 = scalar_lea.vmem %s7, %s4727
      $region60: #{cnn_forward.1} parent=55 // pred_fallthru
        _
    $region56: #{cnn_forward.1} parent=5 // pred_fallthru
      _
  $region6: #{cnn_forward.1} parent=0 // loop_footer
    %s17 = sadd.s32 1, %s13
  $region7: #{cnn_forward.1} parent=0 // loop_footer_branch
    %12 = sbr.rel target = $region3
  $region8: #{cnn_forward.1} parent=0 // loop_exit
    _

</llo_original>
